<compile_context>
chip_gen: v6e
topology: v6e:2x2x1
jax: 0.10.0
libtpu: 0.0.40
codegen_flags: <defaults>
</compile_context>

<pallas_src>
import jax
import jax.numpy as jnp
import numpy as np
from jax import lax
from jax.experimental import pallas as pl
from jax.experimental.pallas import tpu as pltpu


# -----------------------------------------------------------------------------
# Helpers
# -----------------------------------------------------------------------------
def _round_up(x: int, m: int) -> int:
    return ((x + m - 1) // m) * m


def _vmem_tile_bytes(shape, itemsize=4):
    """Approximate padded VMEM footprint of one array / block."""
    shape = tuple(int(d) for d in shape)
    if len(shape) < 2:
        shape = (1,) * (2 - len(shape)) + shape
    lead = 1
    for d in shape[:-2]:
        lead *= d
    return lead * _round_up(shape[-2], 8) * _round_up(shape[-1], 128) * itemsize


def _vmem_budget_bytes(N, K, Cin, hidden, tile_e, const_buffers=2):
    """Rough VMEM usage estimate for the fused kernel at a given tile_e."""
    b = _vmem_tile_bytes
    consts = const_buffers * (
        b((N, K)) + b((N, Cin)) + b((K, Cin, hidden)) + b((K, hidden, hidden))
        + b((2 * hidden, hidden)) + 2 * b((1, hidden)))
    streamed = 2 * b((2, tile_e)) + 2 * b((1, tile_e))          # dbl-buffered idx/out
    scratch = b((2 * N, hidden))                                # P
    interm = 2 * b((2 * N, tile_e)) + 2 * b((tile_e, hidden))   # one-hot + z headroom
    return consts + streamed + scratch + interm


# -----------------------------------------------------------------------------
# Fused kernel
# -----------------------------------------------------------------------------
def _fused_kernel(u_ref, x_ref, w1_ref, w2_ref, wm1_ref, bm1_ref, wm2t_ref,
                  bm2_ref, eidx_ref, out_ref, p_ref):
    """GFNO encoder (once per core, cached in VMEM) + per-E-tile edge MLP."""
    hidden = bm1_ref.shape[1]

    # ---- encoder: runs at the first E step of each core; P stays VMEM
    # ---- resident for the rest of the E loop. ------------------------------
    @pl.when(pl.program_id(1) == 0)
    def _encoder():
        U = u_ref[...]                                   # (N, K)
        X = x_ref[...]                                   # (N, Cin)

        # X_hat = U^T @ X  (contract the node axis directly, no transpose op)
        X_hat = lax.dot_general(U, X, (((0,), (0,)), ((), ())),
                                preferred_element_type=jnp.float32)       # (K, Cin)

        # SpectralConv1/2 as K batched MXU matmuls with M=1 (runs once, cheap).
        # TODO(synk): for large K/Cin reformulate as one block-diagonal matmul
        # (M=1 fills only 1/256 of the MXU rows on v6e/v7x).
        Y_hat = jnp.einsum("kxc,kco->kxo", X_hat[:, None, :], w1_ref[...],
                           preferred_element_type=jnp.float32)[:, 0, :]
        Y_hat = jnp.maximum(Y_hat, 0.0)                  # ReLU; dropout = identity (eval)
        Z_hat = jnp.einsum("kxc,kco->kxo", Y_hat[:, None, :], w2_ref[...],
                           preferred_element_type=jnp.float32)[:, 0, :]

        H = jnp.dot(U, Z_hat, preferred_element_type=jnp.float32)         # (N, hidden)

        # Fold edge-MLP layer 1 into the node features ONCE:
        #   P = [H @ Wm1[:hidden] ; H @ Wm1[hidden:]]  ->  (2N, hidden)
        # so per-tile gather + layer 1 collapses into a single one-hot matmul.
        HWu = jnp.dot(H, wm1_ref[0:hidden, :], preferred_element_type=jnp.float32)
        HWv = jnp.dot(H, wm1_ref[hidden:, :], preferred_element_type=jnp.float32)
        p_ref[...] = jnp.concatenate([HWu, HWv], axis=0).astype(p_ref.dtype)

    # ---- edge MLP on this E tile --------------------------------------------
    P = p_ref[...]                                       # (2N, hidden), compute dtype
    two_n = P.shape[0]
    n_nodes = two_n // 2
    idx = eidx_ref[...]                                  # (2, tile_e) int32, lane-dense
    tile_e = idx.shape[1]

    # One-hot gather fused over both endpoints: column j has ones at rows u_j
    # and N + v_j, so onehot^T @ P == h_u @ Wm1_u + h_v @ Wm1_v exactly.
    # TODO(synk): O(E*N) one-hot work; for N beyond a few thousand switch to
    # scalar-prefetched edge indices + row gather from the P scratch instead.
    rows = lax.broadcasted_iota(jnp.int32, (two_n, tile_e), 0)
    sel = (rows == idx[0:1, :]) | (rows == (idx[1:2, :] + n_nodes))
    onehot = jnp.where(sel, 1.0, 0.0).astype(P.dtype)    # (2N, tile_e)

    z = lax.dot_general(onehot, P, (((0,), (0,)), ((), ())),
                        preferred_element_type=jnp.float32)               # (tile_e, hidden)
    z = jnp.maximum(z + bm1_ref[...], 0.0)               # + bias, ReLU

    # Layer 2 emitted lane-dense: (1, hidden) x (tile_e, hidden)^T -> (1, tile_e)
    out = lax.dot_general(wm2t_ref[...].astype(P.dtype), z.astype(P.dtype),
                          (((1,), (1,)), ((), ())),
                          preferred_element_type=jnp.float32)
    out_ref[...] = out + bm2_ref[0, 0]                   # bm2 scalar lives in SMEM


# -----------------------------------------------------------------------------
# Wrapper
# -----------------------------------------------------------------------------
def link_util_gfno_forward(params, X, edge_index, *, tile_e=1024,
                           compute_dtype=jnp.float32):
    """Full LinkUtilGFNO forward as a single fused pallas_call."""
    U, W1, W2 = params["U"], params["W1"], params["W2"]
    N, K = U.shape
    Cin = X.shape[1]
    hidden = W1.shape[2]
    E = edge_index.shape[0]

    Wm1 = params["Wm1"]                    # (2*hidden, hidden)
    bm1 = params["bm1"]                    # (1, hidden)
    wm2t = params["Wm2"].T                 # (1, hidden)
    bm2 = params["bm2"]                    # (1, 1) -> SMEM scalar

    # ---- E tiling: lane-dense (2, tile_e) index / (1, tile_e) output blocks.
    tile_e = max(128, (tile_e // 128) * 128)
    tile_e = min(tile_e, _round_up(E, 128))

    # Per-generation VMEM budget (v7x: 64 MiB/core, v5e/v6e: 128 MiB).
    try:
        vmem_cap = int(pltpu.get_tpu_info().vmem_capacity_bytes)
    except Exception:
        vmem_cap = 64 * 1024 * 1024        # conservative v7x assumption
    budget_cap = int(0.7 * vmem_cap)
    while tile_e > 128 and _vmem_budget_bytes(N, K, Cin, hidden, tile_e) > budget_cap:
        tile_e = max(128, _round_up(tile_e // 2, 128))
    vmem_limit = min(budget_cap,
                     max(16 * 1024 * 1024,
                         2 * _vmem_budget_bytes(N, K, Cin, hidden, tile_e)))

    n_tiles = -(-E // tile_e)
    # Split the E loop across both TensorCores (v7x megacore). Each core runs
    # the cheap encoder once into its own scratch; no-op cost on 1-TC chips.
    n_cores = 2 if n_tiles >= 2 else 1
    n_per_core = -(-n_tiles // n_cores)
    e_pad = n_cores * n_per_core * tile_e

    # Transposed, lane-dense edge indices (2, e_pad); pad indices are node 0
    # (produce garbage outputs that get sliced off below).
    eidx_t = jnp.pad(edge_index.T.astype(jnp.int32), ((0, 0), (0, e_pad - E)))

    const2 = lambda c, e: (0, 0)
    const3 = lambda c, e: (0, 0, 0)
    edge_map = lambda c, e: (0, c * n_per_core + e)
    out_map = lambda c, e: (0, c * n_per_core + e)

    def run(single_buffer_consts):
        # Constant-index blocks are fetched once; single-buffer them to halve
        # their VMEM footprint (matters most under v7x's 64 MiB VMEM).
        res = {"pipeline_mode": pl.Buffered(1)} if single_buffer_consts else {}
        return pl.pallas_call(
            _fused_kernel,
            out_shape=jax.ShapeDtypeStruct((1, e_pad), jnp.float32),
            grid=(n_cores, n_per_core),
            in_specs=[
                pl.BlockSpec((N, K), const2, **res),                 # U
                pl.BlockSpec((N, Cin), const2, **res),               # X
                pl.BlockSpec((K, Cin, hidden), const3, **res),       # W1
                pl.BlockSpec((K, hidden, hidden), const3, **res),    # W2
                pl.BlockSpec((2 * hidden, hidden), const2, **res),   # Wm1
                pl.BlockSpec((1, hidden), const2, **res),            # bm1
                pl.BlockSpec((1, hidden), const2, **res),            # Wm2^T
                pl.BlockSpec(memory_space=pltpu.MemorySpace.SMEM),   # bm2 scalar
                pl.BlockSpec((2, tile_e), edge_map),                 # edge_index^T tile
            ],
            out_specs=pl.BlockSpec((1, tile_e), out_map),
            scratch_shapes=[pltpu.VMEM((2 * N, hidden), compute_dtype)],  # P
            compiler_params=pltpu.CompilerParams(
                dimension_semantics=("parallel", "arbitrary"),
                vmem_limit_bytes=vmem_limit,
            ),
        )(U, X, W1, W2, Wm1, bm1, wm2t, bm2, eidx_t)

    try:
        out = run(True)
    except Exception:
        # TODO(synk): fall back to default double-buffering if this JAX build
        # rejects pl.Buffered(1) on input BlockSpecs.
        out = run(False)

    return out[0, :E]                      # .squeeze(1) of the PyTorch module


# -----------------------------------------------------------------------------
# Pure-JAX reference (for correctness check)
# -----------------------------------------------------------------------------
def reference_forward(params, X, edge_index):
    U, W1, W2 = params["U"], params["W1"], params["W2"]
    X_hat = U.T @ X
    Y_hat = jax.nn.relu(jnp.einsum("kco,kc->ko", W1, X_hat))
    Z_hat = jnp.einsum("kco,kc->ko", W2, Y_hat)
    H = U @ Z_hat
    h_u = H[edge_index[:, 0]]
    h_v = H[edge_index[:, 1]]
    h = jnp.concatenate([h_u, h_v], axis=1)
    z = jax.nn.relu(h @ params["Wm1"] + params["bm1"])
    return (z @ params["Wm2"] + params["bm2"])[:, 0]


# -----------------------------------------------------------------------------
# Main
# -----------------------------------------------------------------------------
if __name__ == "__main__":
    N, K, Cin, hidden, E = 16, 8, 4, 32, 300

    key = jax.random.PRNGKey(0)
    ks = jax.random.split(key, 8)

    def xavier_uniform(k, shape, fan_in, fan_out):
        bound = float(np.sqrt(6.0 / (fan_in + fan_out)))
        return jax.random.uniform(k, shape, jnp.float32, -bound, bound)

    # Precomputed graph-Fourier basis (synthetic, deterministic).
    U = jax.random.normal(ks[0], (N, K), jnp.float32) / np.sqrt(N)
    X = jax.random.normal(ks[1], (N, Cin), jnp.float32)
    edge_index = jax.random.randint(ks[2], (E, 2), 0, N)

    params = {
        "U": U,
        # SpectralConv weights stored directly as (K, Cin, Cout) = permute(2,0,1)
        # of the PyTorch (Cin, Cout, K) parameter.
        "W1": xavier_uniform(ks[3], (K, Cin, hidden), Cin * K, hidden * K),
        "W2": xavier_uniform(ks[4], (K, hidden, hidden), hidden * K, hidden * K),
        # edge MLP: Linear(2*hidden, hidden) then Linear(hidden, 1), stored (in, out).
        "Wm1": xavier_uniform(ks[5], (2 * hidden, hidden), 2 * hidden, hidden),
        "bm1": jnp.zeros((1, hidden), jnp.float32),
        "Wm2": xavier_uniform(ks[6], (hidden, 1), hidden, 1),
        "bm2": jnp.zeros((1, 1), jnp.float32),
    }

    ref = jax.block_until_ready(reference_forward(params, X, edge_index))

    # Default path: one lane-dense 384-wide tile, single core.
    out = jax.block_until_ready(link_util_gfno_forward(params, X, edge_index))
    np.testing.assert_allclose(np.asarray(out), np.asarray(ref), rtol=1e-4, atol=1e-4)

    # Multi-tile path: exercises the (parallel core, arbitrary E) grid split.
    out_mt = jax.block_until_ready(
        link_util_gfno_forward(params, X, edge_index, tile_e=128))
    np.testing.assert_allclose(np.asarray(out_mt), np.asarray(ref), rtol=1e-4, atol=1e-4)

    # bf16 MXU path (v6e/v7x): f32 accumulation, looser tolerance.
    out_bf16 = jax.block_until_ready(
        link_util_gfno_forward(params, X, edge_index, compute_dtype=jnp.bfloat16))
    np.testing.assert_allclose(np.asarray(out_bf16), np.asarray(ref), rtol=5e-2, atol=1e-2)

    print("KERNEL_OK")
</pallas_src>

<mosaic_0001>
module attributes {stable_mosaic.version = 11 : i64} {
  func.func @_fused_kernel(%arg0: i32, %arg1: i32, %arg2: memref<16x8xf32, #tpu.memory_space<vmem>>, %arg3: memref<16x4xf32, #tpu.memory_space<vmem>>, %arg4: memref<8x4x32xf32, #tpu.memory_space<vmem>>, %arg5: memref<8x32x32xf32, #tpu.memory_space<vmem>>, %arg6: memref<64x32xf32, #tpu.memory_space<vmem>>, %arg7: memref<1x32xf32, #tpu.memory_space<vmem>>, %arg8: memref<1x32xf32, #tpu.memory_space<vmem>>, %arg9: memref<1x1xf32, #tpu.memory_space<smem>>, %arg10: memref<2x384xi32, #tpu.memory_space<vmem>>, %arg11: memref<1x384xf32, #tpu.memory_space<vmem>>, %arg12: memref<32x32xf32, #tpu.memory_space<vmem>>) attributes {dimension_semantics = [#tpu.dimension_semantics<parallel>, #tpu.dimension_semantics<arbitrary>], iteration_bounds = array<i64: 1, 1>, scalar_prefetch = 0 : i64, scratch_operands = 1 : i64, tpu.core_type = #tpu.core_type<tc>, window_params = [{pipeline_mode = #tpu.pipeline_mode<synchronous>, transform_indices = @transform_0, window_bounds = array<i64: 16, 8>}, {pipeline_mode = #tpu.pipeline_mode<synchronous>, transform_indices = @transform_1, window_bounds = array<i64: 16, 4>}, {pipeline_mode = #tpu.pipeline_mode<synchronous>, transform_indices = @transform_2, window_bounds = array<i64: 8, 4, 32>}, {pipeline_mode = #tpu.pipeline_mode<synchronous>, transform_indices = @transform_3, window_bounds = array<i64: 8, 32, 32>}, {pipeline_mode = #tpu.pipeline_mode<synchronous>, transform_indices = @transform_4, window_bounds = array<i64: 64, 32>}, {pipeline_mode = #tpu.pipeline_mode<synchronous>, transform_indices = @transform_5, window_bounds = array<i64: 1, 32>}, {pipeline_mode = #tpu.pipeline_mode<synchronous>, transform_indices = @transform_6, window_bounds = array<i64: 1, 32>}, {transform_indices = @transform_7, window_bounds = array<i64: 1, 1>}, {transform_indices = @transform_8, window_bounds = array<i64: 2, 384>}, {transform_indices = @transform_9, window_bounds = array<i64: 1, 384>}]} {
    %c0_i32 = arith.constant 0 : i32
    %0 = arith.cmpi eq, %arg1, %c0_i32 : i32
    %1 = arith.extui %0 : i1 to i32
    %c0_i32_0 = arith.constant 0 : i32
    %2 = arith.cmpi ne, %1, %c0_i32_0 : i32
    scf.if %2 {
      %c0_16 = arith.constant 0 : index
      %c0_17 = arith.constant 0 : index
      %30 = vector.load %arg2[%c0_16, %c0_17] : memref<16x8xf32, #tpu.memory_space<vmem>>, vector<16x8xf32>
      %c0_18 = arith.constant 0 : index
      %c0_19 = arith.constant 0 : index
      %31 = vector.load %arg3[%c0_18, %c0_19] : memref<16x4xf32, #tpu.memory_space<vmem>>, vector<16x4xf32>
      %cst_20 = arith.constant dense<0.000000e+00> : vector<8x4xf32>
      %32 = tpu.matmul %30, %31, %cst_20 {dimension_numbers = #tpu.dot_dimension_numbers<[0], [0], [1], [1], [0, 1, 1, 1], [], []>} : vector<16x8xf32>, vector<16x4xf32>, vector<8x4xf32> -> vector<8x4xf32>
      %33 = vector.shape_cast %32 : vector<8x4xf32> to vector<8x1x4xf32>
      %c0_21 = arith.constant 0 : index
      %c0_22 = arith.constant 0 : index
      %c0_23 = arith.constant 0 : index
      %34 = vector.load %arg4[%c0_21, %c0_22, %c0_23] : memref<8x4x32xf32, #tpu.memory_space<vmem>>, vector<8x4x32xf32>
      "tpu.trace_start"() <{level = 10 : i32, message = "kxc,kco->kxo"}> : () -> ()
      %cst_24 = arith.constant dense<0.000000e+00> : vector<8x1x32xf32>
      %35 = tpu.matmul %33, %34, %cst_24 {dimension_numbers = #tpu.dot_dimension_numbers<[2], [1], [1], [2], [0, 0, 0, 1, 1, 2], [0], [0]>} : vector<8x1x4xf32>, vector<8x4x32xf32>, vector<8x1x32xf32> -> vector<8x1x32xf32>
      "tpu.trace_stop"() : () -> ()
      %36 = vector.shape_cast %35 : vector<8x1x32xf32> to vector<8x32xf32>
      %cst_25 = arith.constant 0.000000e+00 : f32
      %37 = vector.broadcast %cst_25 : f32 to vector<8x32xf32>
      %38 = arith.maximumf %36, %37 : vector<8x32xf32>
      %39 = vector.shape_cast %38 : vector<8x32xf32> to vector<8x1x32xf32>
      %c0_26 = arith.constant 0 : index
      %c0_27 = arith.constant 0 : index
      %c0_28 = arith.constant 0 : index
      %40 = vector.load %arg5[%c0_26, %c0_27, %c0_28] : memref<8x32x32xf32, #tpu.memory_space<vmem>>, vector<8x32x32xf32>
      "tpu.trace_start"() <{level = 10 : i32, message = "kxc,kco->kxo"}> : () -> ()
      %cst_29 = arith.constant dense<0.000000e+00> : vector<8x1x32xf32>
      %41 = tpu.matmul %39, %40, %cst_29 {dimension_numbers = #tpu.dot_dimension_numbers<[2], [1], [1], [2], [0, 0, 0, 1, 1, 2], [0], [0]>} : vector<8x1x32xf32>, vector<8x32x32xf32>, vector<8x1x32xf32> -> vector<8x1x32xf32>
      "tpu.trace_stop"() : () -> ()
      %42 = vector.shape_cast %41 : vector<8x1x32xf32> to vector<8x32xf32>
      %cst_30 = arith.constant dense<0.000000e+00> : vector<16x32xf32>
      %43 = tpu.matmul %30, %42, %cst_30 {dimension_numbers = #tpu.dot_dimension_numbers<[1], [0], [0], [1], [0, 0, 1, 1], [], []>} : vector<16x8xf32>, vector<8x32xf32>, vector<16x32xf32> -> vector<16x32xf32>
      %c0_31 = arith.constant 0 : index
      %c0_32 = arith.constant 0 : index
      %44 = vector.load %arg6[%c0_31, %c0_32] : memref<64x32xf32, #tpu.memory_space<vmem>>, vector<32x32xf32>
      %cst_33 = arith.constant dense<0.000000e+00> : vector<16x32xf32>
      %45 = tpu.matmul %43, %44, %cst_33 {dimension_numbers = #tpu.dot_dimension_numbers<[1], [0], [0], [1], [0, 0, 1, 1], [], []>} : vector<16x32xf32>, vector<32x32xf32>, vector<16x32xf32> -> vector<16x32xf32>
      %c32 = arith.constant 32 : index
      %c0_34 = arith.constant 0 : index
      %46 = vector.load %arg6[%c32, %c0_34] : memref<64x32xf32, #tpu.memory_space<vmem>>, vector<32x32xf32>
      %cst_35 = arith.constant dense<0.000000e+00> : vector<16x32xf32>
      %47 = tpu.matmul %43, %46, %cst_35 {dimension_numbers = #tpu.dot_dimension_numbers<[1], [0], [0], [1], [0, 0, 1, 1], [], []>} : vector<16x32xf32>, vector<32x32xf32>, vector<16x32xf32> -> vector<16x32xf32>
      %48 = tpu.concatenate %45, %47 in 0 : vector<16x32xf32>, vector<16x32xf32> -> vector<32x32xf32>
      %c0_36 = arith.constant 0 : index
      %c0_37 = arith.constant 0 : index
      %49 = vector.load %arg12[%c0_36, %c0_37] : memref<32x32xf32, #tpu.memory_space<vmem>>, vector<32x32xf32>
      tpu.vector_store %arg12[%c0_36, %c0_37], %48 {strides = array<i32>} : memref<32x32xf32, #tpu.memory_space<vmem>>, vector<32x32xf32>,
    } else {
    }
    %c0 = arith.constant 0 : index
    %c0_1 = arith.constant 0 : index
    %3 = vector.load %arg12[%c0, %c0_1] : memref<32x32xf32, #tpu.memory_space<vmem>>, vector<32x32xf32>
    %c0_2 = arith.constant 0 : index
    %c0_3 = arith.constant 0 : index
    %4 = vector.load %arg10[%c0_2, %c0_3] : memref<2x384xi32, #tpu.memory_space<vmem>>, vector<2x384xi32>
    %5 = tpu.iota {dimensions = array<i32: 0>} : vector<32x384xi32>
    %6 = vector.extract_strided_slice %4 {offsets = [0, 0], sizes = [1, 384], strides = [1, 1]} : vector<2x384xi32> to vector<1x384xi32>
    %7 = vector.broadcast %6 : vector<1x384xi32> to vector<32x384xi32>
    %8 = arith.cmpi eq, %5, %7 : vector<32x384xi32>
    %9 = vector.extract_strided_slice %4 {offsets = [1, 0], sizes = [1, 384], strides = [1, 1]} : vector<2x384xi32> to vector<1x384xi32>
    %c16_i32 = arith.constant 16 : i32
    %10 = vector.broadcast %c16_i32 : i32 to vector<1x384xi32>
    %11 = arith.addi %9, %10 : vector<1x384xi32>
    %12 = vector.broadcast %11 : vector<1x384xi32> to vector<32x384xi32>
    %13 = arith.cmpi eq, %5, %12 : vector<32x384xi32>
    %14 = arith.ori %8, %13 : vector<32x384xi1>
    %cst = arith.constant 1.000000e+00 : f32
    %cst_4 = arith.constant 0.000000e+00 : f32
    %15 = vector.broadcast %cst : f32 to vector<32x384xf32>
    %16 = vector.broadcast %cst_4 : f32 to vector<32x384xf32>
    %17 = arith.select %14, %15, %16 : vector<32x384xi1>, vector<32x384xf32>
    %cst_5 = arith.constant dense<0.000000e+00> : vector<384x32xf32>
    %18 = tpu.matmul %17, %3, %cst_5 {dimension_numbers = #tpu.dot_dimension_numbers<[0], [0], [1], [1], [0, 1, 1, 1], [], []>} : vector<32x384xf32>, vector<32x32xf32>, vector<384x32xf32> -> vector<384x32xf32>
    %c0_6 = arith.constant 0 : index
    %c0_7 = arith.constant 0 : index
    %19 = vector.load %arg7[%c0_6, %c0_7] : memref<1x32xf32, #tpu.memory_space<vmem>>, vector<1x32xf32>
    %20 = vector.broadcast %19 : vector<1x32xf32> to vector<384x32xf32>
    %21 = arith.addf %18, %20 : vector<384x32xf32>
    %cst_8 = arith.constant 0.000000e+00 : f32
    %22 = vector.broadcast %cst_8 : f32 to vector<384x32xf32>
    %23 = arith.maximumf %21, %22 : vector<384x32xf32>
    %c0_9 = arith.constant 0 : index
    %c0_10 = arith.constant 0 : index
    %24 = vector.load %arg8[%c0_9, %c0_10] : memref<1x32xf32, #tpu.memory_space<vmem>>, vector<1x32xf32>
    %cst_11 = arith.constant dense<0.000000e+00> : vector<1x384xf32>
    %25 = tpu.matmul %24, %23, %cst_11 {dimension_numbers = #tpu.dot_dimension_numbers<[1], [1], [0], [0], [0, 0, 1, 0], [], []>} : vector<1x32xf32>, vector<384x32xf32>, vector<1x384xf32> -> vector<1x384xf32>
    %c0_12 = arith.constant 0 : index
    %c0_13 = arith.constant 0 : index
    %26 = memref.load %arg9[%c0_12, %c0_13] : memref<1x1xf32, #tpu.memory_space<smem>>
    %27 = vector.broadcast %26 : f32 to vector<1x384xf32>
    %28 = arith.addf %25, %27 : vector<1x384xf32>
    %c0_14 = arith.constant 0 : index
    %c0_15 = arith.constant 0 : index
    %29 = vector.load %arg11[%c0_14, %c0_15] : memref<1x384xf32, #tpu.memory_space<vmem>>, vector<1x384xf32>
    tpu.vector_store %arg11[%c0_14, %c0_15], %28 {strides = array<i32>} : memref<1x384xf32, #tpu.memory_space<vmem>>, vector<1x384xf32>,
    return
  }
  func.func @transform_0(%arg0: i32, %arg1: i32) -> (i32, i32) {
    %c0_i32 = arith.constant 0 : i32
    %c0_i32_0 = arith.constant 0 : i32
    %c0_i32_1 = arith.constant 0 : i32
    return %c0_i32, %c0_i32_0 : i32, i32
  }
  func.func @transform_1(%arg0: i32, %arg1: i32) -> (i32, i32) {
    %c0_i32 = arith.constant 0 : i32
    %c0_i32_0 = arith.constant 0 : i32
    %c0_i32_1 = arith.constant 0 : i32
    return %c0_i32, %c0_i32_0 : i32, i32
  }
  func.func @transform_2(%arg0: i32, %arg1: i32) -> (i32, i32, i32) {
    %c0_i32 = arith.constant 0 : i32
    %c0_i32_0 = arith.constant 0 : i32
    %c0_i32_1 = arith.constant 0 : i32
    %c0_i32_2 = arith.constant 0 : i32
    return %c0_i32, %c0_i32_0, %c0_i32_1 : i32, i32, i32
  }
  func.func @transform_3(%arg0: i32, %arg1: i32) -> (i32, i32, i32) {
    %c0_i32 = arith.constant 0 : i32
    %c0_i32_0 = arith.constant 0 : i32
    %c0_i32_1 = arith.constant 0 : i32
    %c0_i32_2 = arith.constant 0 : i32
    return %c0_i32, %c0_i32_0, %c0_i32_1 : i32, i32, i32
  }
  func.func @transform_4(%arg0: i32, %arg1: i32) -> (i32, i32) {
    %c0_i32 = arith.constant 0 : i32
    %c0_i32_0 = arith.constant 0 : i32
    %c0_i32_1 = arith.constant 0 : i32
    return %c0_i32, %c0_i32_0 : i32, i32
  }
  func.func @transform_5(%arg0: i32, %arg1: i32) -> (i32, i32) {
    %c0_i32 = arith.constant 0 : i32
    %c0_i32_0 = arith.constant 0 : i32
    %c0_i32_1 = arith.constant 0 : i32
    return %c0_i32, %c0_i32_0 : i32, i32
  }
  func.func @transform_6(%arg0: i32, %arg1: i32) -> (i32, i32) {
    %c0_i32 = arith.constant 0 : i32
    %c0_i32_0 = arith.constant 0 : i32
    %c0_i32_1 = arith.constant 0 : i32
    return %c0_i32, %c0_i32_0 : i32, i32
  }
  func.func @transform_7(%arg0: i32, %arg1: i32) -> (i32, i32) {
    %c0_i32 = arith.constant 0 : i32
    %c0_i32_0 = arith.constant 0 : i32
    %c0_i32_1 = arith.constant 0 : i32
    return %c0_i32, %c0_i32_0 : i32, i32
  }
  func.func @transform_8(%arg0: i32, %arg1: i32) -> (i32, i32) {
    %c1_i32 = arith.constant 1 : i32
    %0 = arith.muli %arg0, %c1_i32 : i32
    %1 = arith.addi %0, %arg1 : i32
    %c0_i32 = arith.constant 0 : i32
    %c0_i32_0 = arith.constant 0 : i32
    return %c0_i32, %1 : i32, i32
  }
  func.func @transform_9(%arg0: i32, %arg1: i32) -> (i32, i32) {
    %c1_i32 = arith.constant 1 : i32
    %0 = arith.muli %arg0, %c1_i32 : i32
    %1 = arith.addi %0, %arg1 : i32
    %c0_i32 = arith.constant 0 : i32
    %c0_i32_0 = arith.constant 0 : i32
    return %c0_i32, %1 : i32, i32
  }
}

module attributes {stable_mosaic.version = 11 : i64} {
  func.func @_fused_kernel(%arg0: i32, %arg1: i32, %arg2: memref<16x8xf32, #tpu.memory_space<vmem>>, %arg3: memref<16x4xf32, #tpu.memory_space<vmem>>, %arg4: memref<8x4x32xf32, #tpu.memory_space<vmem>>, %arg5: memref<8x32x32xf32, #tpu.memory_space<vmem>>, %arg6: memref<64x32xf32, #tpu.memory_space<vmem>>, %arg7: memref<1x32xf32, #tpu.memory_space<vmem>>, %arg8: memref<1x32xf32, #tpu.memory_space<vmem>>, %arg9: memref<1x1xf32, #tpu.memory_space<smem>>, %arg10: memref<2x384xi32, #tpu.memory_space<vmem>>, %arg11: memref<1x384xf32, #tpu.memory_space<vmem>>, %arg12: memref<32x32xf32, #tpu.memory_space<vmem>>) attributes {dimension_semantics = [#tpu.dimension_semantics<parallel>, #tpu.dimension_semantics<arbitrary>], iteration_bounds = array<i64: 1, 1>, scalar_prefetch = 0 : i64, scratch_operands = 1 : i64, tpu.core_type = #tpu.core_type<tc>, window_params = [{pipeline_mode = #tpu.pipeline_mode<synchronous>, transform_indices = @transform_0, window_bounds = array<i64: 16, 8>}, {pipeline_mode = #tpu.pipeline_mode<synchronous>, transform_indices = @transform_1, window_bounds = array<i64: 16, 4>}, {pipeline_mode = #tpu.pipeline_mode<synchronous>, transform_indices = @transform_2, window_bounds = array<i64: 8, 4, 32>}, {pipeline_mode = #tpu.pipeline_mode<synchronous>, transform_indices = @transform_3, window_bounds = array<i64: 8, 32, 32>}, {pipeline_mode = #tpu.pipeline_mode<synchronous>, transform_indices = @transform_4, window_bounds = array<i64: 64, 32>}, {pipeline_mode = #tpu.pipeline_mode<synchronous>, transform_indices = @transform_5, window_bounds = array<i64: 1, 32>}, {pipeline_mode = #tpu.pipeline_mode<synchronous>, transform_indices = @transform_6, window_bounds = array<i64: 1, 32>}, {transform_indices = @transform_7, window_bounds = array<i64: 1, 1>}, {transform_indices = @transform_8, window_bounds = array<i64: 2, 384>}, {transform_indices = @transform_9, window_bounds = array<i64: 1, 384>}]} {
    %c0_i32 = arith.constant 0 : i32
    %0 = arith.cmpi eq, %arg1, %c0_i32 : i32
    %1 = arith.extui %0 : i1 to i32
    %c0_i32_0 = arith.constant 0 : i32
    %2 = arith.cmpi ne, %1, %c0_i32_0 : i32
    scf.if %2 {
      %c0_16 = arith.constant 0 : index
      %c0_17 = arith.constant 0 : index
      %30 = vector.load %arg2[%c0_16, %c0_17] : memref<16x8xf32, #tpu.memory_space<vmem>>, vector<16x8xf32>
      %c0_18 = arith.constant 0 : index
      %c0_19 = arith.constant 0 : index
      %31 = vector.load %arg3[%c0_18, %c0_19] : memref<16x4xf32, #tpu.memory_space<vmem>>, vector<16x4xf32>
      %cst_20 = arith.constant dense<0.000000e+00> : vector<8x4xf32>
      %32 = tpu.matmul %30, %31, %cst_20 {dimension_numbers = #tpu.dot_dimension_numbers<[0], [0], [1], [1], [0, 1, 1, 1], [], []>} : vector<16x8xf32>, vector<16x4xf32>, vector<8x4xf32> -> vector<8x4xf32>
      %33 = vector.shape_cast %32 : vector<8x4xf32> to vector<8x1x4xf32>
      %c0_21 = arith.constant 0 : index
      %c0_22 = arith.constant 0 : index
      %c0_23 = arith.constant 0 : index
      %34 = vector.load %arg4[%c0_21, %c0_22, %c0_23] : memref<8x4x32xf32, #tpu.memory_space<vmem>>, vector<8x4x32xf32>
      "tpu.trace_start"() <{level = 10 : i32, message = "kxc,kco->kxo"}> : () -> ()
      %cst_24 = arith.constant dense<0.000000e+00> : vector<8x1x32xf32>
      %35 = tpu.matmul %33, %34, %cst_24 {dimension_numbers = #tpu.dot_dimension_numbers<[2], [1], [1], [2], [0, 0, 0, 1, 1, 2], [0], [0]>} : vector<8x1x4xf32>, vector<8x4x32xf32>, vector<8x1x32xf32> -> vector<8x1x32xf32>
      "tpu.trace_stop"() : () -> ()
      %36 = vector.shape_cast %35 : vector<8x1x32xf32> to vector<8x32xf32>
      %cst_25 = arith.constant 0.000000e+00 : f32
      %37 = vector.broadcast %cst_25 : f32 to vector<8x32xf32>
      %38 = arith.maximumf %36, %37 : vector<8x32xf32>
      %39 = vector.shape_cast %38 : vector<8x32xf32> to vector<8x1x32xf32>
      %c0_26 = arith.constant 0 : index
      %c0_27 = arith.constant 0 : index
      %c0_28 = arith.constant 0 : index
      %40 = vector.load %arg5[%c0_26, %c0_27, %c0_28] : memref<8x32x32xf32, #tpu.memory_space<vmem>>, vector<8x32x32xf32>
      "tpu.trace_start"() <{level = 10 : i32, message = "kxc,kco->kxo"}> : () -> ()
      %cst_29 = arith.constant dense<0.000000e+00> : vector<8x1x32xf32>
      %41 = tpu.matmul %39, %40, %cst_29 {dimension_numbers = #tpu.dot_dimension_numbers<[2], [1], [1], [2], [0, 0, 0, 1, 1, 2], [0], [0]>} : vector<8x1x32xf32>, vector<8x32x32xf32>, vector<8x1x32xf32> -> vector<8x1x32xf32>
      "tpu.trace_stop"() : () -> ()
      %42 = vector.shape_cast %41 : vector<8x1x32xf32> to vector<8x32xf32>
      %cst_30 = arith.constant dense<0.000000e+00> : vector<16x32xf32>
      %43 = tpu.matmul %30, %42, %cst_30 {dimension_numbers = #tpu.dot_dimension_numbers<[1], [0], [0], [1], [0, 0, 1, 1], [], []>} : vector<16x8xf32>, vector<8x32xf32>, vector<16x32xf32> -> vector<16x32xf32>
      %c0_31 = arith.constant 0 : index
      %c0_32 = arith.constant 0 : index
      %44 = vector.load %arg6[%c0_31, %c0_32] : memref<64x32xf32, #tpu.memory_space<vmem>>, vector<32x32xf32>
      %cst_33 = arith.constant dense<0.000000e+00> : vector<16x32xf32>
      %45 = tpu.matmul %43, %44, %cst_33 {dimension_numbers = #tpu.dot_dimension_numbers<[1], [0], [0], [1], [0, 0, 1, 1], [], []>} : vector<16x32xf32>, vector<32x32xf32>, vector<16x32xf32> -> vector<16x32xf32>
      %c32 = arith.constant 32 : index
      %c0_34 = arith.constant 0 : index
      %46 = vector.load %arg6[%c32, %c0_34] : memref<64x32xf32, #tpu.memory_space<vmem>>, vector<32x32xf32>
      %cst_35 = arith.constant dense<0.000000e+00> : vector<16x32xf32>
      %47 = tpu.matmul %43, %46, %cst_35 {dimension_numbers = #tpu.dot_dimension_numbers<[1], [0], [0], [1], [0, 0, 1, 1], [], []>} : vector<16x32xf32>, vector<32x32xf32>, vector<16x32xf32> -> vector<16x32xf32>
      %48 = tpu.concatenate %45, %47 in 0 : vector<16x32xf32>, vector<16x32xf32> -> vector<32x32xf32>
      %c0_36 = arith.constant 0 : index
      %c0_37 = arith.constant 0 : index
      %49 = vector.load %arg12[%c0_36, %c0_37] : memref<32x32xf32, #tpu.memory_space<vmem>>, vector<32x32xf32>
      tpu.vector_store %arg12[%c0_36, %c0_37], %48 {strides = array<i32>} : memref<32x32xf32, #tpu.memory_space<vmem>>, vector<32x32xf32>,
    } else {
    }
    %c0 = arith.constant 0 : index
    %c0_1 = arith.constant 0 : index
    %3 = vector.load %arg12[%c0, %c0_1] : memref<32x32xf32, #tpu.memory_space<vmem>>, vector<32x32xf32>
    %c0_2 = arith.constant 0 : index
    %c0_3 = arith.constant 0 : index
    %4 = vector.load %arg10[%c0_2, %c0_3] : memref<2x384xi32, #tpu.memory_space<vmem>>, vector<2x384xi32>
    %5 = tpu.iota {dimensions = array<i32: 0>} : vector<32x384xi32>
    %6 = vector.extract_strided_slice %4 {offsets = [0, 0], sizes = [1, 384], strides = [1, 1]} : vector<2x384xi32> to vector<1x384xi32>
    %7 = vector.broadcast %6 : vector<1x384xi32> to vector<32x384xi32>
    %8 = arith.cmpi eq, %5, %7 : vector<32x384xi32>
    %9 = vector.extract_strided_slice %4 {offsets = [1, 0], sizes = [1, 384], strides = [1, 1]} : vector<2x384xi32> to vector<1x384xi32>
    %c16_i32 = arith.constant 16 : i32
    %10 = vector.broadcast %c16_i32 : i32 to vector<1x384xi32>
    %11 = arith.addi %9, %10 : vector<1x384xi32>
    %12 = vector.broadcast %11 : vector<1x384xi32> to vector<32x384xi32>
    %13 = arith.cmpi eq, %5, %12 : vector<32x384xi32>
    %14 = arith.ori %8, %13 : vector<32x384xi1>
    %cst = arith.constant 1.000000e+00 : f32
    %cst_4 = arith.constant 0.000000e+00 : f32
    %15 = vector.broadcast %cst : f32 to vector<32x384xf32>
    %16 = vector.broadcast %cst_4 : f32 to vector<32x384xf32>
    %17 = arith.select %14, %15, %16 : vector<32x384xi1>, vector<32x384xf32>
    %cst_5 = arith.constant dense<0.000000e+00> : vector<384x32xf32>
    %18 = tpu.matmul %17, %3, %cst_5 {dimension_numbers = #tpu.dot_dimension_numbers<[0], [0], [1], [1], [0, 1, 1, 1], [], []>} : vector<32x384xf32>, vector<32x32xf32>, vector<384x32xf32> -> vector<384x32xf32>
    %c0_6 = arith.constant 0 : index
    %c0_7 = arith.constant 0 : index
    %19 = vector.load %arg7[%c0_6, %c0_7] : memref<1x32xf32, #tpu.memory_space<vmem>>, vector<1x32xf32>
    %20 = vector.broadcast %19 : vector<1x32xf32> to vector<384x32xf32>
    %21 = arith.addf %18, %20 : vector<384x32xf32>
    %cst_8 = arith.constant 0.000000e+00 : f32
    %22 = vector.broadcast %cst_8 : f32 to vector<384x32xf32>
    %23 = arith.maximumf %21, %22 : vector<384x32xf32>
    %c0_9 = arith.constant 0 : index
    %c0_10 = arith.constant 0 : index
    %24 = vector.load %arg8[%c0_9, %c0_10] : memref<1x32xf32, #tpu.memory_space<vmem>>, vector<1x32xf32>
    %cst_11 = arith.constant dense<0.000000e+00> : vector<1x384xf32>
    %25 = tpu.matmul %24, %23, %cst_11 {dimension_numbers = #tpu.dot_dimension_numbers<[1], [1], [0], [0], [0, 0, 1, 0], [], []>} : vector<1x32xf32>, vector<384x32xf32>, vector<1x384xf32> -> vector<1x384xf32>
    %c0_12 = arith.constant 0 : index
    %c0_13 = arith.constant 0 : index
    %26 = memref.load %arg9[%c0_12, %c0_13] : memref<1x1xf32, #tpu.memory_space<smem>>
    %27 = vector.broadcast %26 : f32 to vector<1x384xf32>
    %28 = arith.addf %25, %27 : vector<1x384xf32>
    %c0_14 = arith.constant 0 : index
    %c0_15 = arith.constant 0 : index
    %29 = vector.load %arg11[%c0_14, %c0_15] : memref<1x384xf32, #tpu.memory_space<vmem>>, vector<1x384xf32>
    tpu.vector_store %arg11[%c0_14, %c0_15], %28 {strides = array<i32>} : memref<1x384xf32, #tpu.memory_space<vmem>>, vector<1x384xf32>,
    return
  }
  func.func @transform_0(%arg0: i32, %arg1: i32) -> (i32, i32) {
    %c0_i32 = arith.constant 0 : i32
    %c0_i32_0 = arith.constant 0 : i32
    %c0_i32_1 = arith.constant 0 : i32
    return %c0_i32, %c0_i32_0 : i32, i32
  }
  func.func @transform_1(%arg0: i32, %arg1: i32) -> (i32, i32) {
    %c0_i32 = arith.constant 0 : i32
    %c0_i32_0 = arith.constant 0 : i32
    %c0_i32_1 = arith.constant 0 : i32
    return %c0_i32, %c0_i32_0 : i32, i32
  }
  func.func @transform_2(%arg0: i32, %arg1: i32) -> (i32, i32, i32) {
    %c0_i32 = arith.constant 0 : i32
    %c0_i32_0 = arith.constant 0 : i32
    %c0_i32_1 = arith.constant 0 : i32
    %c0_i32_2 = arith.constant 0 : i32
    return %c0_i32, %c0_i32_0, %c0_i32_1 : i32, i32, i32
  }
  func.func @transform_3(%arg0: i32, %arg1: i32) -> (i32, i32, i32) {
    %c0_i32 = arith.constant 0 : i32
    %c0_i32_0 = arith.constant 0 : i32
    %c0_i32_1 = arith.constant 0 : i32
    %c0_i32_2 = arith.constant 0 : i32
    return %c0_i32, %c0_i32_0, %c0_i32_1 : i32, i32, i32
  }
  func.func @transform_4(%arg0: i32, %arg1: i32) -> (i32, i32) {
    %c0_i32 = arith.constant 0 : i32
    %c0_i32_0 = arith.constant 0 : i32
    %c0_i32_1 = arith.constant 0 : i32
    return %c0_i32, %c0_i32_0 : i32, i32
  }
  func.func @transform_5(%arg0: i32, %arg1: i32) -> (i32, i32) {
    %c0_i32 = arith.constant 0 : i32
    %c0_i32_0 = arith.constant 0 : i32
    %c0_i32_1 = arith.constant 0 : i32
    return %c0_i32, %c0_i32_0 : i32, i32
  }
  func.func @transform_6(%arg0: i32, %arg1: i32) -> (i32, i32) {
    %c0_i32 = arith.constant 0 : i32
    %c0_i32_0 = arith.constant 0 : i32
    %c0_i32_1 = arith.constant 0 : i32
    return %c0_i32, %c0_i32_0 : i32, i32
  }
  func.func @transform_7(%arg0: i32, %arg1: i32) -> (i32, i32) {
    %c0_i32 = arith.constant 0 : i32
    %c0_i32_0 = arith.constant 0 : i32
    %c0_i32_1 = arith.constant 0 : i32
    return %c0_i32, %c0_i32_0 : i32, i32
  }
  func.func @transform_8(%arg0: i32, %arg1: i32) -> (i32, i32) {
    %c1_i32 = arith.constant 1 : i32
    %0 = arith.muli %arg0, %c1_i32 : i32
    %1 = arith.addi %0, %arg1 : i32
    %c0_i32 = arith.constant 0 : i32
    %c0_i32_0 = arith.constant 0 : i32
    return %c0_i32, %1 : i32, i32
  }
  func.func @transform_9(%arg0: i32, %arg1: i32) -> (i32, i32) {
    %c1_i32 = arith.constant 1 : i32
    %0 = arith.muli %arg0, %c1_i32 : i32
    %1 = arith.addi %0, %arg1 : i32
    %c0_i32 = arith.constant 0 : i32
    %c0_i32_0 = arith.constant 0 : i32
    return %c0_i32, %1 : i32, i32
  }
}

</mosaic_0001>

<llo_original>
// kernel: tpu_custom_call.1
$region0: #{tpu_custom_call.1}
  #allocation0 [shape = 'u32[]', space=smem, size = 0x4, offset = 0x4, fixed_abs, tag = 'smem constant byte address 0x4 - core index']
  #allocation1 [shape = 'u32[144,128]{1,0:T(1,128)}', space=vmem, size = 0x12000, scoped, tag = 'internal scratch']
  #allocation2 [shape = 'f32[32,32]{1,0:T(8,128)}', space=vmem, size = 0x4000, scoped, tag = 'scratch operand']
  #allocation3 [shape = 'f32[1,1]{1,0:T(1,128)S(6)}', space=smem, size = 0x200, scoped, tag = 'scoped memory for tpu_custom_call.1']
  %s0 = inlined_call_operand.vmem [shape: f32[16,8], index: 0, kind: input, shape index: {}]
  %s1 = inlined_call_operand.vmem [shape: f32[16,4], index: 1, kind: input, shape index: {}]
  %s2 = inlined_call_operand.vmem [shape: f32[8,4,32], index: 2, kind: input, shape index: {}]
  %s3 = inlined_call_operand.hbm [shape: f32[8,32,32], index: 3, kind: input, shape index: {}]
  %s4 = inlined_call_operand.vmem [shape: f32[64,32], index: 4, kind: input, shape index: {}]
  %s5 = inlined_call_operand.vmem [shape: f32[1,32], index: 5, kind: input, shape index: {}]
  %s6 = inlined_call_operand.vmem [shape: f32[1,32], index: 6, kind: input, shape index: {}]
  %s7 = inlined_call_operand.<no memory space> [shape: f32[1,1], index: 7, kind: input, shape index: {}]
  %s8 = inlined_call_operand.vmem [shape: s32[2,384], index: 8, kind: input, shape index: {}]
  %s9 = inlined_call_operand.hbm [shape: f32[1,384], index: 9, kind: output, shape index: {}]
  %s10 = sld [smem:[#allocation0]]
  $region54: #{tpu_custom_call.1} parent=0
    _
  %s12 = ssub.s32 1, %s10
  %s13 = scalar_select 0, %s12, %s10
  %14 = sst [smem:[#allocation3]] %s7
  $region1: #{tpu_custom_call.1} parent=0
    #allocation4 [shape = 'u8[131072]{0}', space=vmem, size = 0x20000, scoped, tag = 'input window, operand 3, single buffered']
    #allocation5 [shape = 's32[1]{0}', space=sflag, size = 0x4, scoped, tag = 'scoped memory for tpu_custom_call.1']
    #allocation6 [shape = 's32[1]{0}', space=sflag, size = 0x4, scoped, tag = 'scoped memory for tpu_custom_call.1']
    #allocation7 [shape = 'u8[1536]{0}', space=vmem, size = 0x800, scoped, tag = 'output window, operand 0, single buffered']
    %15 = vsyncpa [#allocation5], 0
    %16 = vsyncpa [#allocation6], 0
    // Predicated region
    $region2: #{tpu_custom_call.1} parent=1 // pred_check
      _
    $region3: #{tpu_custom_call.1} parent=1 // pred_check_branch
      %18 = sbr.rel (0) target = $region5
    $region4: #{tpu_custom_call.1} parent=1 // pred_region
      _
    $region5: #{tpu_custom_call.1} parent=1 // pred_fallthru
      _
    // Predicated region
    $region6: #{tpu_custom_call.1} parent=1 // pred_check
      _
    $region7: #{tpu_custom_call.1} parent=1 // pred_check_branch
      %20 = sbr.rel (0) target = $region9
    $region8: #{tpu_custom_call.1} parent=1 // pred_region
      _
    $region9: #{tpu_custom_call.1} parent=1 // pred_fallthru
      _
    // Predicated region
    $region10: #{tpu_custom_call.1} parent=1 // pred_check
      _
    $region11: #{tpu_custom_call.1} parent=1 // pred_check_branch
      %22 = sbr.rel (0) target = $region13
    $region12: #{tpu_custom_call.1} parent=1 // pred_region
      _
    $region13: #{tpu_custom_call.1} parent=1 // pred_fallthru
      _
    // Predicated region
    $region14: #{tpu_custom_call.1} parent=1 // pred_check
      _
    $region15: #{tpu_custom_call.1} parent=1 // pred_check_branch
      %24 = sbr.rel (0) target = $region17
    $region16: #{tpu_custom_call.1} parent=1 // pred_region
      %s26 = ssub.s32 4096, 4096
      %27 = vsyncadd [#allocation5], %s26
      %s28 = sshll.u32 [#allocation4], 4
      %s29 = int_to_ptr.vmem [resolvable:$true] %s28
      %34 = dma.hbm_to_vmem [thread:$0]  %s3, 4096, %s29, [#allocation5], 128, 128, 8
    $region17: #{tpu_custom_call.1} parent=1 // pred_fallthru
      _
    // Predicated region
    $region18: #{tpu_custom_call.1} parent=1 // pred_check
      _
    $region19: #{tpu_custom_call.1} parent=1 // pred_check_branch
      %36 = sbr.rel (0) target = $region21
    $region20: #{tpu_custom_call.1} parent=1 // pred_region
      _
    $region21: #{tpu_custom_call.1} parent=1 // pred_fallthru
      _
    // Predicated region
    $region22: #{tpu_custom_call.1} parent=1 // pred_check
      _
    $region23: #{tpu_custom_call.1} parent=1 // pred_check_branch
      %38 = sbr.rel (0) target = $region25
    $region24: #{tpu_custom_call.1} parent=1 // pred_region
      _
    $region25: #{tpu_custom_call.1} parent=1 // pred_fallthru
      _
    // Predicated region
    $region26: #{tpu_custom_call.1} parent=1 // pred_check
      _
    $region27: #{tpu_custom_call.1} parent=1 // pred_check_branch
      %40 = sbr.rel (0) target = $region29
    $region28: #{tpu_custom_call.1} parent=1 // pred_region
      _
    $region29: #{tpu_custom_call.1} parent=1 // pred_fallthru
      _
    // Predicated region
    $region30: #{tpu_custom_call.1} parent=1 // pred_check
      _
    $region31: #{tpu_custom_call.1} parent=1 // pred_check_branch
      %42 = sbr.rel (0) target = $region33
    $region32: #{tpu_custom_call.1} parent=1 // pred_region
      _
    $region33: #{tpu_custom_call.1} parent=1 // pred_fallthru
      _
    // Predicated region
    $region34: #{tpu_custom_call.1} parent=1 // pred_check
      _
    $region35: #{tpu_custom_call.1} parent=1 // pred_check_branch
      %44 = sbr.rel (0) target = $region37
    $region36: #{tpu_custom_call.1} parent=1 // pred_region
      %s45 = sadd.s32 0, 0
      %s46 = smul.u32 3, %s45
      %p47 = scmp.lt.s32.totalorder %s46, 2
      %s48 = scalar_select %p47, %s46, 2
      %s49 = smul.addr %s48, 2
      %s50 = scalar_lea.vmem %s8, %s49
      %s51 = sadd.s32 0, 0
      %s52 = smul.u32 3, %s51
    $region37: #{tpu_custom_call.1} parent=1 // pred_fallthru
      _
    // Predicated region
    $region38: #{tpu_custom_call.1} parent=1 // pred_check
      _
    $region39: #{tpu_custom_call.1} parent=1 // pred_check_branch
      %54 = sbr.rel (0) target = $region41
    $region40: #{tpu_custom_call.1} parent=1 // pred_region
      %55 = dma.done [#allocation5], 4096
    $region41: #{tpu_custom_call.1} parent=1 // pred_fallthru
      _
    %s56 = sadd.s32 0, 0
    %s57 = smul.u32 3, %s56
    %p58 = scmp.lt.s32.totalorder %s57, 2
    %s59 = scalar_select %p58, %s57, 2
    %s60 = smul.addr %s59, 2
    %s61 = scalar_lea.vmem %s8, %s60
    %s62 = sadd.s32 0, 0
    %s63 = smul.u32 3, %s62
    %p64 = scmp.lt.s32.totalorder %s63, 2
    %s65 = scalar_select %p64, %s63, 2
    %s66 = smul.addr %s65, 2
    %s67 = scalar_lea.vmem %s8, %s66
    %s68 = sadd.s32 0, 0
    %s69 = smul.u32 3, %s68
    %s70 = sadd.s32 0, 0
    %s71 = smul.u32 3, %s70
    %p72 = scmp.eq.s32.totalorder 0, 0
    // Predicated region
    $region42: #{tpu_custom_call.1} parent=1 // pred_check
      %p73 = pneg %p72
    $region43: #{tpu_custom_call.1} parent=1 // pred_check_branch
      %75 = sbr.rel (%p73) target = $region45
    $region44: #{tpu_custom_call.1} parent=1 // pred_region
      %v76 = vld [vmem:[%s0] sm:$0xff]
      %v77 = vld [vmem:[%s0 + $0x8] sm:$0xff]
      %v78 = vld [vmem:[%s1] sm:$0xff]
      %v79 = vld [vmem:[%s1 + $0x8] sm:$0xff]
      %80 = vxpose.xlu0.b32.start [1/16] %v76, 128
      %81 = vxpose.xlu0.b32.cont [2/16] %v77, 128
      %82 = vxpose.xlu0.b32.cont [3/16] 0.0, 128
      %83 = vxpose.xlu0.b32.cont [4/16] 0.0, 128
      %84 = vxpose.xlu0.b32.cont [5/16] 0.0, 128
      %85 = vxpose.xlu0.b32.cont [6/16] 0.0, 128
      %86 = vxpose.xlu0.b32.cont [7/16] 0.0, 128
      %87 = vxpose.xlu0.b32.cont [8/16] 0.0, 128
      %88 = vxpose.xlu0.b32.cont [9/16] 0.0, 128
      %89 = vxpose.xlu0.b32.cont [10/16] 0.0, 128
      %90 = vxpose.xlu0.b32.cont [11/16] 0.0, 128
      %91 = vxpose.xlu0.b32.cont [12/16] 0.0, 128
      %92 = vxpose.xlu0.b32.cont [13/16] 0.0, 128
      %93 = vxpose.xlu0.b32.cont [14/16] 0.0, 128
      %94 = vxpose.xlu0.b32.cont [15/16] 0.0, 128
      %95 = vxpose.xlu0.b32.end [16/16] 0.0, 128
      %v96 = vpop.trf.xlu0
      %v97 = vpop.trf.xlu0
      %v98 = vpop.trf.xlu0
      %v99 = vpop.trf.xlu0
      %v100 = vpop.trf.xlu0
      %v101 = vpop.trf.xlu0
      %v102 = vpop.trf.xlu0
      %v103 = vpop.trf.xlu0
      %v104 = vpop.trf.xlu0
      %v105 = vpop.trf.xlu0
      %v106 = vpop.trf.xlu0
      %v107 = vpop.trf.xlu0
      %v108 = vpop.trf.xlu0
      %v109 = vpop.trf.xlu0
      %v110 = vpop.trf.xlu0
      %v111 = vpop.trf.xlu0
      %vm112 = vcmask 130048
      %v114 = vsel %vm112, %v96, 0
      %116 = vmatprep.subr.mxu0 0.0
      %117 = vmatpush1.msra.mxu0 0.0
      %118 = vmatprep.subr.mxu0 0.0
      %119 = vmatpush1.msra.mxu0 0.0
      %120 = vmatprep.subr.mxu0 0.0
      %121 = vmatpush1.msra.mxu0 0.0
      %122 = vmatprep.subr.mxu0 0.0
      %123 = vmatpush1.msra.mxu0 0.0
      %124 = vmatprep.subr.mxu0 0.0
      %125 = vmatpush1.msra.mxu0 0.0
      %126 = vmatprep.subr.mxu0 0.0
      %127 = vmatpush1.msra.mxu0 0.0
      %128 = vmatprep.subr.mxu0 0.0
      %129 = vmatpush1.msra.mxu0 0.0
      %130 = vmatprep.subr.mxu0 0.0
      %131 = vmatpush1.msra.mxu0 0.0
      %132 = vmatprep.subr.mxu0 0.0
      %133 = vmatpush1.msra.mxu0 0.0
      %134 = vmatprep.subr.mxu0 0.0
      %135 = vmatpush1.msra.mxu0 0.0
      %136 = vmatprep.subr.mxu0 0.0
      %137 = vmatpush1.msra.mxu0 0.0
      %138 = vmatprep.subr.mxu0 0.0
      %139 = vmatpush1.msra.mxu0 0.0
      %140 = vmatprep.subr.mxu0 0.0
      %141 = vmatpush1.msra.mxu0 0.0
      %142 = vmatprep.subr.mxu0 0.0
      %143 = vmatpush1.msra.mxu0 0.0
      %144 = vmatprep.subr.mxu0 0.0
      %145 = vmatpush1.msra.mxu0 %v79
      %146 = vmatprep.subr.mxu0 0.0
      %147 = vmatpush1.msra.mxu0 %v78
      %148 = vmatprep.subr.mxu0 0.0
      %149 = vmatpush2.msra.mxu0 0.0
      %150 = vmatprep.subr.mxu0 0.0
      %151 = vmatpush2.msra.mxu0 0.0
      %152 = vmatprep.subr.mxu0 0.0
      %153 = vmatpush2.msra.mxu0 0.0
      %154 = vmatprep.subr.mxu0 0.0
      %155 = vmatpush2.msra.mxu0 0.0
      %156 = vmatprep.subr.mxu0 0.0
      %157 = vmatpush2.msra.mxu0 0.0
      %158 = vmatprep.subr.mxu0 0.0
      %159 = vmatpush2.msra.mxu0 0.0
      %160 = vmatprep.subr.mxu0 0.0
      %161 = vmatpush2.msra.mxu0 0.0
      %162 = vmatprep.subr.mxu0 0.0
      %163 = vmatpush2.msra.mxu0 0.0
      %164 = vmatprep.subr.mxu0 0.0
      %165 = vmatpush2.msra.mxu0 0.0
      %166 = vmatprep.subr.mxu0 0.0
      %167 = vmatpush2.msra.mxu0 0.0
      %168 = vmatprep.subr.mxu0 0.0
      %169 = vmatpush2.msra.mxu0 0.0
      %170 = vmatprep.subr.mxu0 0.0
      %171 = vmatpush2.msra.mxu0 0.0
      %172 = vmatprep.subr.mxu0 0.0
      %173 = vmatpush2.msra.mxu0 0.0
      %174 = vmatprep.subr.mxu0 0.0
      %175 = vmatpush2.msra.mxu0 0.0
      %176 = vmatprep.subr.mxu0 0.0
      %177 = vmatpush2.msra.mxu0 0.0
      %178 = vmatprep.subr.mxu0 0.0
      %179 = vmatpush2.msra.mxu0 0.0
      %180 = vmatprep.mubr.f32.mxu0 0.0
      %181 = vmatmul.mubr.f32.gmra.mxu0 %v114
      %v182 = vpop.f32.mrf.mxu0
      %v183 = vadd.f32 0.0, %v182
      %v184 = vpop.f32.mrf.mxu0
      %185 = vdwg.mxu0
      %v187 = vcombine.high %v183, %v183
      %v189 = vunpack.c.l.s4 1966171168
      %v190 = vunpack.c.0.s8 %v189
      %v191 = vlaneseq
      %v192 = vshrl.u32 %v191, 7
      %v193 = vsub.s32 %v190, %v192
      %v194 = vrot.slane %v183, %v193
      %v196 = vunpack.c.l.s4 1966171168
      %v197 = vunpack.c.0.s8 %v196
      %v198 = vlaneseq
      %v199 = vshrl.u32 %v198, 7
      %v200 = vsub.s32 %v197, %v199
      %v201 = vrot.slane %v187, %v200
      %v202 = vcombine.high %v194, %v194
      %v203 = vcombine.high %v201, %v201
      %v205 = vunpack.c.l.s4 1966171168
      %v206 = vunpack.c.0.s8 %v205
      %v207 = vlaneseq
      %v208 = vshrl.u32 %v207, 7
      %v209 = vsub.s32 %v206, %v208
      %v210 = vrot.slane %v194, %v209
      %v212 = vunpack.c.l.s4 1966171168
      %v213 = vunpack.c.0.s8 %v212
      %v214 = vlaneseq
      %v215 = vshrl.u32 %v214, 7
      %v216 = vsub.s32 %v213, %v215
      %v217 = vrot.slane %v201, %v216
      %v219 = vunpack.c.l.s4 1966171168
      %v220 = vunpack.c.0.s8 %v219
      %v221 = vlaneseq
      %v222 = vshrl.u32 %v221, 7
      %v223 = vsub.s32 %v220, %v222
      %v224 = vrot.slane %v202, %v223
      %v226 = vunpack.c.l.s4 1966171168
      %v227 = vunpack.c.0.s8 %v226
      %v228 = vlaneseq
      %v229 = vshrl.u32 %v228, 7
      %v230 = vsub.s32 %v227, %v229
      %v231 = vrot.slane %v203, %v230
      %v232 = vcombine.high %v210, %v210
      %v233 = vcombine.high %v217, %v217
      %v234 = vcombine.high %v224, %v224
      %v235 = vcombine.high %v231, %v231
      %v236 = vld [vmem:[%s2] sm:$0xf]
      %v237 = vld [vmem:[%s2 + $0x4] sm:$0xf]
      %v238 = vld [vmem:[%s2 + $0x8] sm:$0xf]
      %v239 = vld [vmem:[%s2 + $0xc] sm:$0xf]
      %v240 = vld [vmem:[%s2 + $0x10] sm:$0xf]
      %v241 = vld [vmem:[%s2 + $0x14] sm:$0xf]
      %v242 = vld [vmem:[%s2 + $0x18] sm:$0xf]
      %v243 = vld [vmem:[%s2 + $0x1c] sm:$0xf]
      %vm244 = vcmask 31744
      %v245 = vsel %vm244, %v210, 0
      %vm247 = vcmask 1043456
      %v249 = vsel %vm247, %v236, 0
      %251 = vmatprep.subr.mxu0 0.0
      %252 = vmatpush1.msra.mxu0 0.0
      %253 = vmatprep.subr.mxu0 0.0
      %254 = vmatpush1.msra.mxu0 0.0
      %255 = vmatprep.subr.mxu0 0.0
      %256 = vmatpush1.msra.mxu0 0.0
      %257 = vmatprep.subr.mxu0 0.0
      %258 = vmatpush1.msra.mxu0 0.0
      %259 = vmatprep.subr.mxu0 0.0
      %260 = vmatpush1.msra.mxu0 0.0
      %261 = vmatprep.subr.mxu0 0.0
      %262 = vmatpush1.msra.mxu0 0.0
      %263 = vmatprep.subr.mxu0 0.0
      %264 = vmatpush1.msra.mxu0 0.0
      %265 = vmatprep.subr.mxu0 0.0
      %266 = vmatpush1.msra.mxu0 0.0
      %267 = vmatprep.subr.mxu0 0.0
      %268 = vmatpush1.msra.mxu0 0.0
      %269 = vmatprep.subr.mxu0 0.0
      %270 = vmatpush1.msra.mxu0 0.0
      %271 = vmatprep.subr.mxu0 0.0
      %272 = vmatpush1.msra.mxu0 0.0
      %273 = vmatprep.subr.mxu0 0.0
      %274 = vmatpush1.msra.mxu0 0.0
      %275 = vmatprep.subr.mxu0 0.0
      %276 = vmatpush1.msra.mxu0 0.0
      %277 = vmatprep.subr.mxu0 0.0
      %278 = vmatpush1.msra.mxu0 0.0
      %279 = vmatprep.subr.mxu0 0.0
      %280 = vmatpush1.msra.mxu0 0.0
      %281 = vmatprep.subr.mxu0 0.0
      %282 = vmatpush1.msra.mxu0 %v249
      %283 = vmatprep.subr.mxu0 0.0
      %284 = vmatpush2.msra.mxu0 0.0
      %285 = vmatprep.subr.mxu0 0.0
      %286 = vmatpush2.msra.mxu0 0.0
      %287 = vmatprep.subr.mxu0 0.0
      %288 = vmatpush2.msra.mxu0 0.0
      %289 = vmatprep.subr.mxu0 0.0
      %290 = vmatpush2.msra.mxu0 0.0
      %291 = vmatprep.subr.mxu0 0.0
      %292 = vmatpush2.msra.mxu0 0.0
      %293 = vmatprep.subr.mxu0 0.0
      %294 = vmatpush2.msra.mxu0 0.0
      %295 = vmatprep.subr.mxu0 0.0
      %296 = vmatpush2.msra.mxu0 0.0
      %297 = vmatprep.subr.mxu0 0.0
      %298 = vmatpush2.msra.mxu0 0.0
      %299 = vmatprep.subr.mxu0 0.0
      %300 = vmatpush2.msra.mxu0 0.0
      %301 = vmatprep.subr.mxu0 0.0
      %302 = vmatpush2.msra.mxu0 0.0
      %303 = vmatprep.subr.mxu0 0.0
      %304 = vmatpush2.msra.mxu0 0.0
      %305 = vmatprep.subr.mxu0 0.0
      %306 = vmatpush2.msra.mxu0 0.0
      %307 = vmatprep.subr.mxu0 0.0
      %308 = vmatpush2.msra.mxu0 0.0
      %309 = vmatprep.subr.mxu0 0.0
      %310 = vmatpush2.msra.mxu0 0.0
      %311 = vmatprep.subr.mxu0 0.0
      %312 = vmatpush2.msra.mxu0 0.0
      %313 = vmatprep.subr.mxu0 0.0
      %314 = vmatpush2.msra.mxu0 0.0
      %315 = vmatprep.mubr.f32.mxu0 0.0
      %316 = vmatmul.mubr.f32.gmra.mxu0 %v245
      %v317 = vpop.f32.mrf.mxu0
      %v318 = vadd.f32 0.0, %v317
      %v319 = vpop.f32.mrf.mxu0
      %320 = vdwg.mxu0
      %v321 = vsel %vm244, %v224, 0
      %v324 = vsel %vm247, %v237, 0
      %326 = vmatprep.subr.mxu0 0.0
      %327 = vmatpush1.msra.mxu0 0.0
      %328 = vmatprep.subr.mxu0 0.0
      %329 = vmatpush1.msra.mxu0 0.0
      %330 = vmatprep.subr.mxu0 0.0
      %331 = vmatpush1.msra.mxu0 0.0
      %332 = vmatprep.subr.mxu0 0.0
      %333 = vmatpush1.msra.mxu0 0.0
      %334 = vmatprep.subr.mxu0 0.0
      %335 = vmatpush1.msra.mxu0 0.0
      %336 = vmatprep.subr.mxu0 0.0
      %337 = vmatpush1.msra.mxu0 0.0
      %338 = vmatprep.subr.mxu0 0.0
      %339 = vmatpush1.msra.mxu0 0.0
      %340 = vmatprep.subr.mxu0 0.0
      %341 = vmatpush1.msra.mxu0 0.0
      %342 = vmatprep.subr.mxu0 0.0
      %343 = vmatpush1.msra.mxu0 0.0
      %344 = vmatprep.subr.mxu0 0.0
      %345 = vmatpush1.msra.mxu0 0.0
      %346 = vmatprep.subr.mxu0 0.0
      %347 = vmatpush1.msra.mxu0 0.0
      %348 = vmatprep.subr.mxu0 0.0
      %349 = vmatpush1.msra.mxu0 0.0
      %350 = vmatprep.subr.mxu0 0.0
      %351 = vmatpush1.msra.mxu0 0.0
      %352 = vmatprep.subr.mxu0 0.0
      %353 = vmatpush1.msra.mxu0 0.0
      %354 = vmatprep.subr.mxu0 0.0
      %355 = vmatpush1.msra.mxu0 0.0
      %356 = vmatprep.subr.mxu0 0.0
      %357 = vmatpush1.msra.mxu0 %v324
      %358 = vmatprep.subr.mxu0 0.0
      %359 = vmatpush2.msra.mxu0 0.0
      %360 = vmatprep.subr.mxu0 0.0
      %361 = vmatpush2.msra.mxu0 0.0
      %362 = vmatprep.subr.mxu0 0.0
      %363 = vmatpush2.msra.mxu0 0.0
      %364 = vmatprep.subr.mxu0 0.0
      %365 = vmatpush2.msra.mxu0 0.0
      %366 = vmatprep.subr.mxu0 0.0
      %367 = vmatpush2.msra.mxu0 0.0
      %368 = vmatprep.subr.mxu0 0.0
      %369 = vmatpush2.msra.mxu0 0.0
      %370 = vmatprep.subr.mxu0 0.0
      %371 = vmatpush2.msra.mxu0 0.0
      %372 = vmatprep.subr.mxu0 0.0
      %373 = vmatpush2.msra.mxu0 0.0
      %374 = vmatprep.subr.mxu0 0.0
      %375 = vmatpush2.msra.mxu0 0.0
      %376 = vmatprep.subr.mxu0 0.0
      %377 = vmatpush2.msra.mxu0 0.0
      %378 = vmatprep.subr.mxu0 0.0
      %379 = vmatpush2.msra.mxu0 0.0
      %380 = vmatprep.subr.mxu0 0.0
      %381 = vmatpush2.msra.mxu0 0.0
      %382 = vmatprep.subr.mxu0 0.0
      %383 = vmatpush2.msra.mxu0 0.0
      %384 = vmatprep.subr.mxu0 0.0
      %385 = vmatpush2.msra.mxu0 0.0
      %386 = vmatprep.subr.mxu0 0.0
      %387 = vmatpush2.msra.mxu0 0.0
      %388 = vmatprep.subr.mxu0 0.0
      %389 = vmatpush2.msra.mxu0 0.0
      %390 = vmatprep.mubr.f32.mxu0 0.0
      %391 = vmatmul.mubr.f32.gmra.mxu0 %v321
      %v392 = vpop.f32.mrf.mxu0
      %v393 = vadd.f32 0.0, %v392
      %v394 = vpop.f32.mrf.mxu0
      %395 = vdwg.mxu0
      %v396 = vsel %vm244, %v232, 0
      %v399 = vsel %vm247, %v238, 0
      %401 = vmatprep.subr.mxu0 0.0
      %402 = vmatpush1.msra.mxu0 0.0
      %403 = vmatprep.subr.mxu0 0.0
      %404 = vmatpush1.msra.mxu0 0.0
      %405 = vmatprep.subr.mxu0 0.0
      %406 = vmatpush1.msra.mxu0 0.0
      %407 = vmatprep.subr.mxu0 0.0
      %408 = vmatpush1.msra.mxu0 0.0
      %409 = vmatprep.subr.mxu0 0.0
      %410 = vmatpush1.msra.mxu0 0.0
      %411 = vmatprep.subr.mxu0 0.0
      %412 = vmatpush1.msra.mxu0 0.0
      %413 = vmatprep.subr.mxu0 0.0
      %414 = vmatpush1.msra.mxu0 0.0
      %415 = vmatprep.subr.mxu0 0.0
      %416 = vmatpush1.msra.mxu0 0.0
      %417 = vmatprep.subr.mxu0 0.0
      %418 = vmatpush1.msra.mxu0 0.0
      %419 = vmatprep.subr.mxu0 0.0
      %420 = vmatpush1.msra.mxu0 0.0
      %421 = vmatprep.subr.mxu0 0.0
      %422 = vmatpush1.msra.mxu0 0.0
      %423 = vmatprep.subr.mxu0 0.0
      %424 = vmatpush1.msra.mxu0 0.0
      %425 = vmatprep.subr.mxu0 0.0
      %426 = vmatpush1.msra.mxu0 0.0
      %427 = vmatprep.subr.mxu0 0.0
      %428 = vmatpush1.msra.mxu0 0.0
      %429 = vmatprep.subr.mxu0 0.0
      %430 = vmatpush1.msra.mxu0 0.0
      %431 = vmatprep.subr.mxu0 0.0
      %432 = vmatpush1.msra.mxu0 %v399
      %433 = vmatprep.subr.mxu0 0.0
      %434 = vmatpush2.msra.mxu0 0.0
      %435 = vmatprep.subr.mxu0 0.0
      %436 = vmatpush2.msra.mxu0 0.0
      %437 = vmatprep.subr.mxu0 0.0
      %438 = vmatpush2.msra.mxu0 0.0
      %439 = vmatprep.subr.mxu0 0.0
      %440 = vmatpush2.msra.mxu0 0.0
      %441 = vmatprep.subr.mxu0 0.0
      %442 = vmatpush2.msra.mxu0 0.0
      %443 = vmatprep.subr.mxu0 0.0
      %444 = vmatpush2.msra.mxu0 0.0
      %445 = vmatprep.subr.mxu0 0.0
      %446 = vmatpush2.msra.mxu0 0.0
      %447 = vmatprep.subr.mxu0 0.0
      %448 = vmatpush2.msra.mxu0 0.0
      %449 = vmatprep.subr.mxu0 0.0
      %450 = vmatpush2.msra.mxu0 0.0
      %451 = vmatprep.subr.mxu0 0.0
      %452 = vmatpush2.msra.mxu0 0.0
      %453 = vmatprep.subr.mxu0 0.0
      %454 = vmatpush2.msra.mxu0 0.0
      %455 = vmatprep.subr.mxu0 0.0
      %456 = vmatpush2.msra.mxu0 0.0
      %457 = vmatprep.subr.mxu0 0.0
      %458 = vmatpush2.msra.mxu0 0.0
      %459 = vmatprep.subr.mxu0 0.0
      %460 = vmatpush2.msra.mxu0 0.0
      %461 = vmatprep.subr.mxu0 0.0
      %462 = vmatpush2.msra.mxu0 0.0
      %463 = vmatprep.subr.mxu0 0.0
      %464 = vmatpush2.msra.mxu0 0.0
      %465 = vmatprep.mubr.f32.mxu0 0.0
      %466 = vmatmul.mubr.f32.gmra.mxu0 %v396
      %v467 = vpop.f32.mrf.mxu0
      %v468 = vadd.f32 0.0, %v467
      %v469 = vpop.f32.mrf.mxu0
      %470 = vdwg.mxu0
      %v471 = vsel %vm244, %v234, 0
      %v474 = vsel %vm247, %v239, 0
      %476 = vmatprep.subr.mxu0 0.0
      %477 = vmatpush1.msra.mxu0 0.0
      %478 = vmatprep.subr.mxu0 0.0
      %479 = vmatpush1.msra.mxu0 0.0
      %480 = vmatprep.subr.mxu0 0.0
      %481 = vmatpush1.msra.mxu0 0.0
      %482 = vmatprep.subr.mxu0 0.0
      %483 = vmatpush1.msra.mxu0 0.0
      %484 = vmatprep.subr.mxu0 0.0
      %485 = vmatpush1.msra.mxu0 0.0
      %486 = vmatprep.subr.mxu0 0.0
      %487 = vmatpush1.msra.mxu0 0.0
      %488 = vmatprep.subr.mxu0 0.0
      %489 = vmatpush1.msra.mxu0 0.0
      %490 = vmatprep.subr.mxu0 0.0
      %491 = vmatpush1.msra.mxu0 0.0
      %492 = vmatprep.subr.mxu0 0.0
      %493 = vmatpush1.msra.mxu0 0.0
      %494 = vmatprep.subr.mxu0 0.0
      %495 = vmatpush1.msra.mxu0 0.0
      %496 = vmatprep.subr.mxu0 0.0
      %497 = vmatpush1.msra.mxu0 0.0
      %498 = vmatprep.subr.mxu0 0.0
      %499 = vmatpush1.msra.mxu0 0.0
      %500 = vmatprep.subr.mxu0 0.0
      %501 = vmatpush1.msra.mxu0 0.0
      %502 = vmatprep.subr.mxu0 0.0
      %503 = vmatpush1.msra.mxu0 0.0
      %504 = vmatprep.subr.mxu0 0.0
      %505 = vmatpush1.msra.mxu0 0.0
      %506 = vmatprep.subr.mxu0 0.0
      %507 = vmatpush1.msra.mxu0 %v474
      %508 = vmatprep.subr.mxu0 0.0
      %509 = vmatpush2.msra.mxu0 0.0
      %510 = vmatprep.subr.mxu0 0.0
      %511 = vmatpush2.msra.mxu0 0.0
      %512 = vmatprep.subr.mxu0 0.0
      %513 = vmatpush2.msra.mxu0 0.0
      %514 = vmatprep.subr.mxu0 0.0
      %515 = vmatpush2.msra.mxu0 0.0
      %516 = vmatprep.subr.mxu0 0.0
      %517 = vmatpush2.msra.mxu0 0.0
      %518 = vmatprep.subr.mxu0 0.0
      %519 = vmatpush2.msra.mxu0 0.0
      %520 = vmatprep.subr.mxu0 0.0
      %521 = vmatpush2.msra.mxu0 0.0
      %522 = vmatprep.subr.mxu0 0.0
      %523 = vmatpush2.msra.mxu0 0.0
      %524 = vmatprep.subr.mxu0 0.0
      %525 = vmatpush2.msra.mxu0 0.0
      %526 = vmatprep.subr.mxu0 0.0
      %527 = vmatpush2.msra.mxu0 0.0
      %528 = vmatprep.subr.mxu0 0.0
      %529 = vmatpush2.msra.mxu0 0.0
      %530 = vmatprep.subr.mxu0 0.0
      %531 = vmatpush2.msra.mxu0 0.0
      %532 = vmatprep.subr.mxu0 0.0
      %533 = vmatpush2.msra.mxu0 0.0
      %534 = vmatprep.subr.mxu0 0.0
      %535 = vmatpush2.msra.mxu0 0.0
      %536 = vmatprep.subr.mxu0 0.0
      %537 = vmatpush2.msra.mxu0 0.0
      %538 = vmatprep.subr.mxu0 0.0
      %539 = vmatpush2.msra.mxu0 0.0
      %540 = vmatprep.mubr.f32.mxu0 0.0
      %541 = vmatmul.mubr.f32.gmra.mxu0 %v471
      %v542 = vpop.f32.mrf.mxu0
      %v543 = vadd.f32 0.0, %v542
      %v544 = vpop.f32.mrf.mxu0
      %545 = vdwg.mxu0
      %v546 = vsel %vm244, %v217, 0
      %v549 = vsel %vm247, %v240, 0
      %551 = vmatprep.subr.mxu0 0.0
      %552 = vmatpush1.msra.mxu0 0.0
      %553 = vmatprep.subr.mxu0 0.0
      %554 = vmatpush1.msra.mxu0 0.0
      %555 = vmatprep.subr.mxu0 0.0
      %556 = vmatpush1.msra.mxu0 0.0
      %557 = vmatprep.subr.mxu0 0.0
      %558 = vmatpush1.msra.mxu0 0.0
      %559 = vmatprep.subr.mxu0 0.0
      %560 = vmatpush1.msra.mxu0 0.0
      %561 = vmatprep.subr.mxu0 0.0
      %562 = vmatpush1.msra.mxu0 0.0
      %563 = vmatprep.subr.mxu0 0.0
      %564 = vmatpush1.msra.mxu0 0.0
      %565 = vmatprep.subr.mxu0 0.0
      %566 = vmatpush1.msra.mxu0 0.0
      %567 = vmatprep.subr.mxu0 0.0
      %568 = vmatpush1.msra.mxu0 0.0
      %569 = vmatprep.subr.mxu0 0.0
      %570 = vmatpush1.msra.mxu0 0.0
      %571 = vmatprep.subr.mxu0 0.0
      %572 = vmatpush1.msra.mxu0 0.0
      %573 = vmatprep.subr.mxu0 0.0
      %574 = vmatpush1.msra.mxu0 0.0
      %575 = vmatprep.subr.mxu0 0.0
      %576 = vmatpush1.msra.mxu0 0.0
      %577 = vmatprep.subr.mxu0 0.0
      %578 = vmatpush1.msra.mxu0 0.0
      %579 = vmatprep.subr.mxu0 0.0
      %580 = vmatpush1.msra.mxu0 0.0
      %581 = vmatprep.subr.mxu0 0.0
      %582 = vmatpush1.msra.mxu0 %v549
      %583 = vmatprep.subr.mxu0 0.0
      %584 = vmatpush2.msra.mxu0 0.0
      %585 = vmatprep.subr.mxu0 0.0
      %586 = vmatpush2.msra.mxu0 0.0
      %587 = vmatprep.subr.mxu0 0.0
      %588 = vmatpush2.msra.mxu0 0.0
      %589 = vmatprep.subr.mxu0 0.0
      %590 = vmatpush2.msra.mxu0 0.0
      %591 = vmatprep.subr.mxu0 0.0
      %592 = vmatpush2.msra.mxu0 0.0
      %593 = vmatprep.subr.mxu0 0.0
      %594 = vmatpush2.msra.mxu0 0.0
      %595 = vmatprep.subr.mxu0 0.0
      %596 = vmatpush2.msra.mxu0 0.0
      %597 = vmatprep.subr.mxu0 0.0
      %598 = vmatpush2.msra.mxu0 0.0
      %599 = vmatprep.subr.mxu0 0.0
      %600 = vmatpush2.msra.mxu0 0.0
      %601 = vmatprep.subr.mxu0 0.0
      %602 = vmatpush2.msra.mxu0 0.0
      %603 = vmatprep.subr.mxu0 0.0
      %604 = vmatpush2.msra.mxu0 0.0
      %605 = vmatprep.subr.mxu0 0.0
      %606 = vmatpush2.msra.mxu0 0.0
      %607 = vmatprep.subr.mxu0 0.0
      %608 = vmatpush2.msra.mxu0 0.0
      %609 = vmatprep.subr.mxu0 0.0
      %610 = vmatpush2.msra.mxu0 0.0
      %611 = vmatprep.subr.mxu0 0.0
      %612 = vmatpush2.msra.mxu0 0.0
      %613 = vmatprep.subr.mxu0 0.0
      %614 = vmatpush2.msra.mxu0 0.0
      %615 = vmatprep.mubr.f32.mxu0 0.0
      %616 = vmatmul.mubr.f32.gmra.mxu0 %v546
      %v617 = vpop.f32.mrf.mxu0
      %v618 = vadd.f32 0.0, %v617
      %v619 = vpop.f32.mrf.mxu0
      %620 = vdwg.mxu0
      %v621 = vsel %vm244, %v231, 0
      %v624 = vsel %vm247, %v241, 0
      %626 = vmatprep.subr.mxu0 0.0
      %627 = vmatpush1.msra.mxu0 0.0
      %628 = vmatprep.subr.mxu0 0.0
      %629 = vmatpush1.msra.mxu0 0.0
      %630 = vmatprep.subr.mxu0 0.0
      %631 = vmatpush1.msra.mxu0 0.0
      %632 = vmatprep.subr.mxu0 0.0
      %633 = vmatpush1.msra.mxu0 0.0
      %634 = vmatprep.subr.mxu0 0.0
      %635 = vmatpush1.msra.mxu0 0.0
      %636 = vmatprep.subr.mxu0 0.0
      %637 = vmatpush1.msra.mxu0 0.0
      %638 = vmatprep.subr.mxu0 0.0
      %639 = vmatpush1.msra.mxu0 0.0
      %640 = vmatprep.subr.mxu0 0.0
      %641 = vmatpush1.msra.mxu0 0.0
      %642 = vmatprep.subr.mxu0 0.0
      %643 = vmatpush1.msra.mxu0 0.0
      %644 = vmatprep.subr.mxu0 0.0
      %645 = vmatpush1.msra.mxu0 0.0
      %646 = vmatprep.subr.mxu0 0.0
      %647 = vmatpush1.msra.mxu0 0.0
      %648 = vmatprep.subr.mxu0 0.0
      %649 = vmatpush1.msra.mxu0 0.0
      %650 = vmatprep.subr.mxu0 0.0
      %651 = vmatpush1.msra.mxu0 0.0
      %652 = vmatprep.subr.mxu0 0.0
      %653 = vmatpush1.msra.mxu0 0.0
      %654 = vmatprep.subr.mxu0 0.0
      %655 = vmatpush1.msra.mxu0 0.0
      %656 = vmatprep.subr.mxu0 0.0
      %657 = vmatpush1.msra.mxu0 %v624
      %658 = vmatprep.subr.mxu0 0.0
      %659 = vmatpush2.msra.mxu0 0.0
      %660 = vmatprep.subr.mxu0 0.0
      %661 = vmatpush2.msra.mxu0 0.0
      %662 = vmatprep.subr.mxu0 0.0
      %663 = vmatpush2.msra.mxu0 0.0
      %664 = vmatprep.subr.mxu0 0.0
      %665 = vmatpush2.msra.mxu0 0.0
      %666 = vmatprep.subr.mxu0 0.0
      %667 = vmatpush2.msra.mxu0 0.0
      %668 = vmatprep.subr.mxu0 0.0
      %669 = vmatpush2.msra.mxu0 0.0
      %670 = vmatprep.subr.mxu0 0.0
      %671 = vmatpush2.msra.mxu0 0.0
      %672 = vmatprep.subr.mxu0 0.0
      %673 = vmatpush2.msra.mxu0 0.0
      %674 = vmatprep.subr.mxu0 0.0
      %675 = vmatpush2.msra.mxu0 0.0
      %676 = vmatprep.subr.mxu0 0.0
      %677 = vmatpush2.msra.mxu0 0.0
      %678 = vmatprep.subr.mxu0 0.0
      %679 = vmatpush2.msra.mxu0 0.0
      %680 = vmatprep.subr.mxu0 0.0
      %681 = vmatpush2.msra.mxu0 0.0
      %682 = vmatprep.subr.mxu0 0.0
      %683 = vmatpush2.msra.mxu0 0.0
      %684 = vmatprep.subr.mxu0 0.0
      %685 = vmatpush2.msra.mxu0 0.0
      %686 = vmatprep.subr.mxu0 0.0
      %687 = vmatpush2.msra.mxu0 0.0
      %688 = vmatprep.subr.mxu0 0.0
      %689 = vmatpush2.msra.mxu0 0.0
      %690 = vmatprep.mubr.f32.mxu0 0.0
      %691 = vmatmul.mubr.f32.gmra.mxu0 %v621
      %v692 = vpop.f32.mrf.mxu0
      %v693 = vadd.f32 0.0, %v692
      %v694 = vpop.f32.mrf.mxu0
      %695 = vdwg.mxu0
      %v696 = vsel %vm244, %v233, 0
      %v699 = vsel %vm247, %v242, 0
      %701 = vmatprep.subr.mxu0 0.0
      %702 = vmatpush1.msra.mxu0 0.0
      %703 = vmatprep.subr.mxu0 0.0
      %704 = vmatpush1.msra.mxu0 0.0
      %705 = vmatprep.subr.mxu0 0.0
      %706 = vmatpush1.msra.mxu0 0.0
      %707 = vmatprep.subr.mxu0 0.0
      %708 = vmatpush1.msra.mxu0 0.0
      %709 = vmatprep.subr.mxu0 0.0
      %710 = vmatpush1.msra.mxu0 0.0
      %711 = vmatprep.subr.mxu0 0.0
      %712 = vmatpush1.msra.mxu0 0.0
      %713 = vmatprep.subr.mxu0 0.0
      %714 = vmatpush1.msra.mxu0 0.0
      %715 = vmatprep.subr.mxu0 0.0
      %716 = vmatpush1.msra.mxu0 0.0
      %717 = vmatprep.subr.mxu0 0.0
      %718 = vmatpush1.msra.mxu0 0.0
      %719 = vmatprep.subr.mxu0 0.0
      %720 = vmatpush1.msra.mxu0 0.0
      %721 = vmatprep.subr.mxu0 0.0
      %722 = vmatpush1.msra.mxu0 0.0
      %723 = vmatprep.subr.mxu0 0.0
      %724 = vmatpush1.msra.mxu0 0.0
      %725 = vmatprep.subr.mxu0 0.0
      %726 = vmatpush1.msra.mxu0 0.0
      %727 = vmatprep.subr.mxu0 0.0
      %728 = vmatpush1.msra.mxu0 0.0
      %729 = vmatprep.subr.mxu0 0.0
      %730 = vmatpush1.msra.mxu0 0.0
      %731 = vmatprep.subr.mxu0 0.0
      %732 = vmatpush1.msra.mxu0 %v699
      %733 = vmatprep.subr.mxu0 0.0
      %734 = vmatpush2.msra.mxu0 0.0
      %735 = vmatprep.subr.mxu0 0.0
      %736 = vmatpush2.msra.mxu0 0.0
      %737 = vmatprep.subr.mxu0 0.0
      %738 = vmatpush2.msra.mxu0 0.0
      %739 = vmatprep.subr.mxu0 0.0
      %740 = vmatpush2.msra.mxu0 0.0
      %741 = vmatprep.subr.mxu0 0.0
      %742 = vmatpush2.msra.mxu0 0.0
      %743 = vmatprep.subr.mxu0 0.0
      %744 = vmatpush2.msra.mxu0 0.0
      %745 = vmatprep.subr.mxu0 0.0
      %746 = vmatpush2.msra.mxu0 0.0
      %747 = vmatprep.subr.mxu0 0.0
      %748 = vmatpush2.msra.mxu0 0.0
      %749 = vmatprep.subr.mxu0 0.0
      %750 = vmatpush2.msra.mxu0 0.0
      %751 = vmatprep.subr.mxu0 0.0
      %752 = vmatpush2.msra.mxu0 0.0
      %753 = vmatprep.subr.mxu0 0.0
      %754 = vmatpush2.msra.mxu0 0.0
      %755 = vmatprep.subr.mxu0 0.0
      %756 = vmatpush2.msra.mxu0 0.0
      %757 = vmatprep.subr.mxu0 0.0
      %758 = vmatpush2.msra.mxu0 0.0
      %759 = vmatprep.subr.mxu0 0.0
      %760 = vmatpush2.msra.mxu0 0.0
      %761 = vmatprep.subr.mxu0 0.0
      %762 = vmatpush2.msra.mxu0 0.0
      %763 = vmatprep.subr.mxu0 0.0
      %764 = vmatpush2.msra.mxu0 0.0
      %765 = vmatprep.mubr.f32.mxu0 0.0
      %766 = vmatmul.mubr.f32.gmra.mxu0 %v696
      %v767 = vpop.f32.mrf.mxu0
      %v768 = vadd.f32 0.0, %v767
      %v769 = vpop.f32.mrf.mxu0
      %770 = vdwg.mxu0
      %v771 = vsel %vm244, %v235, 0
      %v774 = vsel %vm247, %v243, 0
      %776 = vmatprep.subr.mxu0 0.0
      %777 = vmatpush1.msra.mxu0 0.0
      %778 = vmatprep.subr.mxu0 0.0
      %779 = vmatpush1.msra.mxu0 0.0
      %780 = vmatprep.subr.mxu0 0.0
      %781 = vmatpush1.msra.mxu0 0.0
      %782 = vmatprep.subr.mxu0 0.0
      %783 = vmatpush1.msra.mxu0 0.0
      %784 = vmatprep.subr.mxu0 0.0
      %785 = vmatpush1.msra.mxu0 0.0
      %786 = vmatprep.subr.mxu0 0.0
      %787 = vmatpush1.msra.mxu0 0.0
      %788 = vmatprep.subr.mxu0 0.0
      %789 = vmatpush1.msra.mxu0 0.0
      %790 = vmatprep.subr.mxu0 0.0
      %791 = vmatpush1.msra.mxu0 0.0
      %792 = vmatprep.subr.mxu0 0.0
      %793 = vmatpush1.msra.mxu0 0.0
      %794 = vmatprep.subr.mxu0 0.0
      %795 = vmatpush1.msra.mxu0 0.0
      %796 = vmatprep.subr.mxu0 0.0
      %797 = vmatpush1.msra.mxu0 0.0
      %798 = vmatprep.subr.mxu0 0.0
      %799 = vmatpush1.msra.mxu0 0.0
      %800 = vmatprep.subr.mxu0 0.0
      %801 = vmatpush1.msra.mxu0 0.0
      %802 = vmatprep.subr.mxu0 0.0
      %803 = vmatpush1.msra.mxu0 0.0
      %804 = vmatprep.subr.mxu0 0.0
      %805 = vmatpush1.msra.mxu0 0.0
      %806 = vmatprep.subr.mxu0 0.0
      %807 = vmatpush1.msra.mxu0 %v774
      %808 = vmatprep.subr.mxu0 0.0
      %809 = vmatpush2.msra.mxu0 0.0
      %810 = vmatprep.subr.mxu0 0.0
      %811 = vmatpush2.msra.mxu0 0.0
      %812 = vmatprep.subr.mxu0 0.0
      %813 = vmatpush2.msra.mxu0 0.0
      %814 = vmatprep.subr.mxu0 0.0
      %815 = vmatpush2.msra.mxu0 0.0
      %816 = vmatprep.subr.mxu0 0.0
      %817 = vmatpush2.msra.mxu0 0.0
      %818 = vmatprep.subr.mxu0 0.0
      %819 = vmatpush2.msra.mxu0 0.0
      %820 = vmatprep.subr.mxu0 0.0
      %821 = vmatpush2.msra.mxu0 0.0
      %822 = vmatprep.subr.mxu0 0.0
      %823 = vmatpush2.msra.mxu0 0.0
      %824 = vmatprep.subr.mxu0 0.0
      %825 = vmatpush2.msra.mxu0 0.0
      %826 = vmatprep.subr.mxu0 0.0
      %827 = vmatpush2.msra.mxu0 0.0
      %828 = vmatprep.subr.mxu0 0.0
      %829 = vmatpush2.msra.mxu0 0.0
      %830 = vmatprep.subr.mxu0 0.0
      %831 = vmatpush2.msra.mxu0 0.0
      %832 = vmatprep.subr.mxu0 0.0
      %833 = vmatpush2.msra.mxu0 0.0
      %834 = vmatprep.subr.mxu0 0.0
      %835 = vmatpush2.msra.mxu0 0.0
      %836 = vmatprep.subr.mxu0 0.0
      %837 = vmatpush2.msra.mxu0 0.0
      %838 = vmatprep.subr.mxu0 0.0
      %839 = vmatpush2.msra.mxu0 0.0
      %840 = vmatprep.mubr.f32.mxu0 0.0
      %841 = vmatmul.mubr.f32.gmra.mxu0 %v771
      %v842 = vpop.f32.mrf.mxu0
      %v843 = vadd.f32 0.0, %v842
      %v844 = vpop.f32.mrf.mxu0
      %845 = vdwg.mxu0
      %v846 = vmax.f32 %v318, 0.0
      %v847 = vmax.f32 %v393, 0.0
      %v848 = vmax.f32 %v468, 0.0
      %v849 = vmax.f32 %v543, 0.0
      %v850 = vmax.f32 %v618, 0.0
      %v851 = vmax.f32 %v693, 0.0
      %v852 = vmax.f32 %v768, 0.0
      %v853 = vmax.f32 %v843, 0.0
      %v854 = vld [vmem:[#allocation4] sm:$0xff]
      %v855 = vld [vmem:[#allocation4 + $0x8] sm:$0xff]
      %v856 = vld [vmem:[#allocation4 + $0x10] sm:$0xff]
      %v857 = vld [vmem:[#allocation4 + $0x18] sm:$0xff]
      %v858 = vld [vmem:[#allocation4 + $0x20] sm:$0xff]
      %v859 = vld [vmem:[#allocation4 + $0x28] sm:$0xff]
      %v860 = vld [vmem:[#allocation4 + $0x30] sm:$0xff]
      %v861 = vld [vmem:[#allocation4 + $0x38] sm:$0xff]
      %v862 = vld [vmem:[#allocation4 + $0x40] sm:$0xff]
      %v863 = vld [vmem:[#allocation4 + $0x48] sm:$0xff]
      %v864 = vld [vmem:[#allocation4 + $0x50] sm:$0xff]
      %v865 = vld [vmem:[#allocation4 + $0x58] sm:$0xff]
      %v866 = vld [vmem:[#allocation4 + $0x60] sm:$0xff]
      %v867 = vld [vmem:[#allocation4 + $0x68] sm:$0xff]
      %v868 = vld [vmem:[#allocation4 + $0x70] sm:$0xff]
      %v869 = vld [vmem:[#allocation4 + $0x78] sm:$0xff]
      %v870 = vld [vmem:[#allocation4 + $0x80] sm:$0xff]
      %v871 = vld [vmem:[#allocation4 + $0x88] sm:$0xff]
      %v872 = vld [vmem:[#allocation4 + $0x90] sm:$0xff]
      %v873 = vld [vmem:[#allocation4 + $0x98] sm:$0xff]
      %v874 = vld [vmem:[#allocation4 + $0xa0] sm:$0xff]
      %v875 = vld [vmem:[#allocation4 + $0xa8] sm:$0xff]
      %v876 = vld [vmem:[#allocation4 + $0xb0] sm:$0xff]
      %v877 = vld [vmem:[#allocation4 + $0xb8] sm:$0xff]
      %v878 = vld [vmem:[#allocation4 + $0xc0] sm:$0xff]
      %v879 = vld [vmem:[#allocation4 + $0xc8] sm:$0xff]
      %v880 = vld [vmem:[#allocation4 + $0xd0] sm:$0xff]
      %v881 = vld [vmem:[#allocation4 + $0xd8] sm:$0xff]
      %v882 = vld [vmem:[#allocation4 + $0xe0] sm:$0xff]
      %v883 = vld [vmem:[#allocation4 + $0xe8] sm:$0xff]
      %v884 = vld [vmem:[#allocation4 + $0xf0] sm:$0xff]
      %v885 = vld [vmem:[#allocation4 + $0xf8] sm:$0xff]
      %vm886 = vcmask 261120
      %v888 = vsel %vm886, %v846, 0
      %890 = vmatprep.subr.mxu0 0.0
      %891 = vmatpush1.msra.mxu0 0.0
      %892 = vmatprep.subr.mxu0 0.0
      %893 = vmatpush1.msra.mxu0 0.0
      %894 = vmatprep.subr.mxu0 0.0
      %895 = vmatpush1.msra.mxu0 0.0
      %896 = vmatprep.subr.mxu0 0.0
      %897 = vmatpush1.msra.mxu0 0.0
      %898 = vmatprep.subr.mxu0 0.0
      %899 = vmatpush1.msra.mxu0 0.0
      %900 = vmatprep.subr.mxu0 0.0
      %901 = vmatpush1.msra.mxu0 0.0
      %902 = vmatprep.subr.mxu0 0.0
      %903 = vmatpush1.msra.mxu0 0.0
      %904 = vmatprep.subr.mxu0 0.0
      %905 = vmatpush1.msra.mxu0 0.0
      %906 = vmatprep.subr.mxu0 0.0
      %907 = vmatpush1.msra.mxu0 0.0
      %908 = vmatprep.subr.mxu0 0.0
      %909 = vmatpush1.msra.mxu0 0.0
      %910 = vmatprep.subr.mxu0 0.0
      %911 = vmatpush1.msra.mxu0 0.0
      %912 = vmatprep.subr.mxu0 0.0
      %913 = vmatpush1.msra.mxu0 0.0
      %914 = vmatprep.subr.mxu0 0.0
      %915 = vmatpush1.msra.mxu0 %v857
      %916 = vmatprep.subr.mxu0 0.0
      %917 = vmatpush1.msra.mxu0 %v856
      %918 = vmatprep.subr.mxu0 0.0
      %919 = vmatpush1.msra.mxu0 %v855
      %920 = vmatprep.subr.mxu0 0.0
      %921 = vmatpush1.msra.mxu0 %v854
      %922 = vmatprep.subr.mxu0 0.0
      %923 = vmatpush2.msra.mxu0 0.0
      %924 = vmatprep.subr.mxu0 0.0
      %925 = vmatpush2.msra.mxu0 0.0
      %926 = vmatprep.subr.mxu0 0.0
      %927 = vmatpush2.msra.mxu0 0.0
      %928 = vmatprep.subr.mxu0 0.0
      %929 = vmatpush2.msra.mxu0 0.0
      %930 = vmatprep.subr.mxu0 0.0
      %931 = vmatpush2.msra.mxu0 0.0
      %932 = vmatprep.subr.mxu0 0.0
      %933 = vmatpush2.msra.mxu0 0.0
      %934 = vmatprep.subr.mxu0 0.0
      %935 = vmatpush2.msra.mxu0 0.0
      %936 = vmatprep.subr.mxu0 0.0
      %937 = vmatpush2.msra.mxu0 0.0
      %938 = vmatprep.subr.mxu0 0.0
      %939 = vmatpush2.msra.mxu0 0.0
      %940 = vmatprep.subr.mxu0 0.0
      %941 = vmatpush2.msra.mxu0 0.0
      %942 = vmatprep.subr.mxu0 0.0
      %943 = vmatpush2.msra.mxu0 0.0
      %944 = vmatprep.subr.mxu0 0.0
      %945 = vmatpush2.msra.mxu0 0.0
      %946 = vmatprep.subr.mxu0 0.0
      %947 = vmatpush2.msra.mxu0 0.0
      %948 = vmatprep.subr.mxu0 0.0
      %949 = vmatpush2.msra.mxu0 0.0
      %950 = vmatprep.subr.mxu0 0.0
      %951 = vmatpush2.msra.mxu0 0.0
      %952 = vmatprep.subr.mxu0 0.0
      %953 = vmatpush2.msra.mxu0 0.0
      %954 = vmatprep.mubr.f32.mxu0 0.0
      %955 = vmatmul.mubr.f32.gmra.mxu0 %v888
      %v956 = vpop.f32.mrf.mxu0
      %v957 = vadd.f32 0.0, %v956
      %v958 = vpop.f32.mrf.mxu0
      %959 = vdwg.mxu0
      %v961 = vsel %vm886, %v847, 0
      %963 = vmatprep.subr.mxu0 0.0
      %964 = vmatpush1.msra.mxu0 0.0
      %965 = vmatprep.subr.mxu0 0.0
      %966 = vmatpush1.msra.mxu0 0.0
      %967 = vmatprep.subr.mxu0 0.0
      %968 = vmatpush1.msra.mxu0 0.0
      %969 = vmatprep.subr.mxu0 0.0
      %970 = vmatpush1.msra.mxu0 0.0
      %971 = vmatprep.subr.mxu0 0.0
      %972 = vmatpush1.msra.mxu0 0.0
      %973 = vmatprep.subr.mxu0 0.0
      %974 = vmatpush1.msra.mxu0 0.0
      %975 = vmatprep.subr.mxu0 0.0
      %976 = vmatpush1.msra.mxu0 0.0
      %977 = vmatprep.subr.mxu0 0.0
      %978 = vmatpush1.msra.mxu0 0.0
      %979 = vmatprep.subr.mxu0 0.0
      %980 = vmatpush1.msra.mxu0 0.0
      %981 = vmatprep.subr.mxu0 0.0
      %982 = vmatpush1.msra.mxu0 0.0
      %983 = vmatprep.subr.mxu0 0.0
      %984 = vmatpush1.msra.mxu0 0.0
      %985 = vmatprep.subr.mxu0 0.0
      %986 = vmatpush1.msra.mxu0 0.0
      %987 = vmatprep.subr.mxu0 0.0
      %988 = vmatpush1.msra.mxu0 %v861
      %989 = vmatprep.subr.mxu0 0.0
      %990 = vmatpush1.msra.mxu0 %v860
      %991 = vmatprep.subr.mxu0 0.0
      %992 = vmatpush1.msra.mxu0 %v859
      %993 = vmatprep.subr.mxu0 0.0
      %994 = vmatpush1.msra.mxu0 %v858
      %995 = vmatprep.subr.mxu0 0.0
      %996 = vmatpush2.msra.mxu0 0.0
      %997 = vmatprep.subr.mxu0 0.0
      %998 = vmatpush2.msra.mxu0 0.0
      %999 = vmatprep.subr.mxu0 0.0
      %1000 = vmatpush2.msra.mxu0 0.0
      %1001 = vmatprep.subr.mxu0 0.0
      %1002 = vmatpush2.msra.mxu0 0.0
      %1003 = vmatprep.subr.mxu0 0.0
      %1004 = vmatpush2.msra.mxu0 0.0
      %1005 = vmatprep.subr.mxu0 0.0
      %1006 = vmatpush2.msra.mxu0 0.0
      %1007 = vmatprep.subr.mxu0 0.0
      %1008 = vmatpush2.msra.mxu0 0.0
      %1009 = vmatprep.subr.mxu0 0.0
      %1010 = vmatpush2.msra.mxu0 0.0
      %1011 = vmatprep.subr.mxu0 0.0
      %1012 = vmatpush2.msra.mxu0 0.0
      %1013 = vmatprep.subr.mxu0 0.0
      %1014 = vmatpush2.msra.mxu0 0.0
      %1015 = vmatprep.subr.mxu0 0.0
      %1016 = vmatpush2.msra.mxu0 0.0
      %1017 = vmatprep.subr.mxu0 0.0
      %1018 = vmatpush2.msra.mxu0 0.0
      %1019 = vmatprep.subr.mxu0 0.0
      %1020 = vmatpush2.msra.mxu0 0.0
      %1021 = vmatprep.subr.mxu0 0.0
      %1022 = vmatpush2.msra.mxu0 0.0
      %1023 = vmatprep.subr.mxu0 0.0
      %1024 = vmatpush2.msra.mxu0 0.0
      %1025 = vmatprep.subr.mxu0 0.0
      %1026 = vmatpush2.msra.mxu0 0.0
      %1027 = vmatprep.mubr.f32.mxu0 0.0
      %1028 = vmatmul.mubr.f32.gmra.mxu0 %v961
      %v1029 = vpop.f32.mrf.mxu0
      %v1030 = vadd.f32 0.0, %v1029
      %v1031 = vpop.f32.mrf.mxu0
      %1032 = vdwg.mxu0
      %v1034 = vsel %vm886, %v848, 0
      %1036 = vmatprep.subr.mxu0 0.0
      %1037 = vmatpush1.msra.mxu0 0.0
      %1038 = vmatprep.subr.mxu0 0.0
      %1039 = vmatpush1.msra.mxu0 0.0
      %1040 = vmatprep.subr.mxu0 0.0
      %1041 = vmatpush1.msra.mxu0 0.0
      %1042 = vmatprep.subr.mxu0 0.0
      %1043 = vmatpush1.msra.mxu0 0.0
      %1044 = vmatprep.subr.mxu0 0.0
      %1045 = vmatpush1.msra.mxu0 0.0
      %1046 = vmatprep.subr.mxu0 0.0
      %1047 = vmatpush1.msra.mxu0 0.0
      %1048 = vmatprep.subr.mxu0 0.0
      %1049 = vmatpush1.msra.mxu0 0.0
      %1050 = vmatprep.subr.mxu0 0.0
      %1051 = vmatpush1.msra.mxu0 0.0
      %1052 = vmatprep.subr.mxu0 0.0
      %1053 = vmatpush1.msra.mxu0 0.0
      %1054 = vmatprep.subr.mxu0 0.0
      %1055 = vmatpush1.msra.mxu0 0.0
      %1056 = vmatprep.subr.mxu0 0.0
      %1057 = vmatpush1.msra.mxu0 0.0
      %1058 = vmatprep.subr.mxu0 0.0
      %1059 = vmatpush1.msra.mxu0 0.0
      %1060 = vmatprep.subr.mxu0 0.0
      %1061 = vmatpush1.msra.mxu0 %v865
      %1062 = vmatprep.subr.mxu0 0.0
      %1063 = vmatpush1.msra.mxu0 %v864
      %1064 = vmatprep.subr.mxu0 0.0
      %1065 = vmatpush1.msra.mxu0 %v863
      %1066 = vmatprep.subr.mxu0 0.0
      %1067 = vmatpush1.msra.mxu0 %v862
      %1068 = vmatprep.subr.mxu0 0.0
      %1069 = vmatpush2.msra.mxu0 0.0
      %1070 = vmatprep.subr.mxu0 0.0
      %1071 = vmatpush2.msra.mxu0 0.0
      %1072 = vmatprep.subr.mxu0 0.0
      %1073 = vmatpush2.msra.mxu0 0.0
      %1074 = vmatprep.subr.mxu0 0.0
      %1075 = vmatpush2.msra.mxu0 0.0
      %1076 = vmatprep.subr.mxu0 0.0
      %1077 = vmatpush2.msra.mxu0 0.0
      %1078 = vmatprep.subr.mxu0 0.0
      %1079 = vmatpush2.msra.mxu0 0.0
      %1080 = vmatprep.subr.mxu0 0.0
      %1081 = vmatpush2.msra.mxu0 0.0
      %1082 = vmatprep.subr.mxu0 0.0
      %1083 = vmatpush2.msra.mxu0 0.0
      %1084 = vmatprep.subr.mxu0 0.0
      %1085 = vmatpush2.msra.mxu0 0.0
      %1086 = vmatprep.subr.mxu0 0.0
      %1087 = vmatpush2.msra.mxu0 0.0
      %1088 = vmatprep.subr.mxu0 0.0
      %1089 = vmatpush2.msra.mxu0 0.0
      %1090 = vmatprep.subr.mxu0 0.0
      %1091 = vmatpush2.msra.mxu0 0.0
      %1092 = vmatprep.subr.mxu0 0.0
      %1093 = vmatpush2.msra.mxu0 0.0
      %1094 = vmatprep.subr.mxu0 0.0
      %1095 = vmatpush2.msra.mxu0 0.0
      %1096 = vmatprep.subr.mxu0 0.0
      %1097 = vmatpush2.msra.mxu0 0.0
      %1098 = vmatprep.subr.mxu0 0.0
      %1099 = vmatpush2.msra.mxu0 0.0
      %1100 = vmatprep.mubr.f32.mxu0 0.0
      %1101 = vmatmul.mubr.f32.gmra.mxu0 %v1034
      %v1102 = vpop.f32.mrf.mxu0
      %v1103 = vadd.f32 0.0, %v1102
      %v1104 = vpop.f32.mrf.mxu0
      %1105 = vdwg.mxu0
      %v1107 = vsel %vm886, %v849, 0
      %1109 = vmatprep.subr.mxu0 0.0
      %1110 = vmatpush1.msra.mxu0 0.0
      %1111 = vmatprep.subr.mxu0 0.0
      %1112 = vmatpush1.msra.mxu0 0.0
      %1113 = vmatprep.subr.mxu0 0.0
      %1114 = vmatpush1.msra.mxu0 0.0
      %1115 = vmatprep.subr.mxu0 0.0
      %1116 = vmatpush1.msra.mxu0 0.0
      %1117 = vmatprep.subr.mxu0 0.0
      %1118 = vmatpush1.msra.mxu0 0.0
      %1119 = vmatprep.subr.mxu0 0.0
      %1120 = vmatpush1.msra.mxu0 0.0
      %1121 = vmatprep.subr.mxu0 0.0
      %1122 = vmatpush1.msra.mxu0 0.0
      %1123 = vmatprep.subr.mxu0 0.0
      %1124 = vmatpush1.msra.mxu0 0.0
      %1125 = vmatprep.subr.mxu0 0.0
      %1126 = vmatpush1.msra.mxu0 0.0
      %1127 = vmatprep.subr.mxu0 0.0
      %1128 = vmatpush1.msra.mxu0 0.0
      %1129 = vmatprep.subr.mxu0 0.0
      %1130 = vmatpush1.msra.mxu0 0.0
      %1131 = vmatprep.subr.mxu0 0.0
      %1132 = vmatpush1.msra.mxu0 0.0
      %1133 = vmatprep.subr.mxu0 0.0
      %1134 = vmatpush1.msra.mxu0 %v869
      %1135 = vmatprep.subr.mxu0 0.0
      %1136 = vmatpush1.msra.mxu0 %v868
      %1137 = vmatprep.subr.mxu0 0.0
      %1138 = vmatpush1.msra.mxu0 %v867
      %1139 = vmatprep.subr.mxu0 0.0
      %1140 = vmatpush1.msra.mxu0 %v866
      %1141 = vmatprep.subr.mxu0 0.0
      %1142 = vmatpush2.msra.mxu0 0.0
      %1143 = vmatprep.subr.mxu0 0.0
      %1144 = vmatpush2.msra.mxu0 0.0
      %1145 = vmatprep.subr.mxu0 0.0
      %1146 = vmatpush2.msra.mxu0 0.0
      %1147 = vmatprep.subr.mxu0 0.0
      %1148 = vmatpush2.msra.mxu0 0.0
      %1149 = vmatprep.subr.mxu0 0.0
      %1150 = vmatpush2.msra.mxu0 0.0
      %1151 = vmatprep.subr.mxu0 0.0
      %1152 = vmatpush2.msra.mxu0 0.0
      %1153 = vmatprep.subr.mxu0 0.0
      %1154 = vmatpush2.msra.mxu0 0.0
      %1155 = vmatprep.subr.mxu0 0.0
      %1156 = vmatpush2.msra.mxu0 0.0
      %1157 = vmatprep.subr.mxu0 0.0
      %1158 = vmatpush2.msra.mxu0 0.0
      %1159 = vmatprep.subr.mxu0 0.0
      %1160 = vmatpush2.msra.mxu0 0.0
      %1161 = vmatprep.subr.mxu0 0.0
      %1162 = vmatpush2.msra.mxu0 0.0
      %1163 = vmatprep.subr.mxu0 0.0
      %1164 = vmatpush2.msra.mxu0 0.0
      %1165 = vmatprep.subr.mxu0 0.0
      %1166 = vmatpush2.msra.mxu0 0.0
      %1167 = vmatprep.subr.mxu0 0.0
      %1168 = vmatpush2.msra.mxu0 0.0
      %1169 = vmatprep.subr.mxu0 0.0
      %1170 = vmatpush2.msra.mxu0 0.0
      %1171 = vmatprep.subr.mxu0 0.0
      %1172 = vmatpush2.msra.mxu0 0.0
      %1173 = vmatprep.mubr.f32.mxu0 0.0
      %1174 = vmatmul.mubr.f32.gmra.mxu0 %v1107
      %v1175 = vpop.f32.mrf.mxu0
      %v1176 = vadd.f32 0.0, %v1175
      %v1177 = vpop.f32.mrf.mxu0
      %1178 = vdwg.mxu0
      %v1180 = vsel %vm886, %v850, 0
      %1182 = vmatprep.subr.mxu0 0.0
      %1183 = vmatpush1.msra.mxu0 0.0
      %1184 = vmatprep.subr.mxu0 0.0
      %1185 = vmatpush1.msra.mxu0 0.0
      %1186 = vmatprep.subr.mxu0 0.0
      %1187 = vmatpush1.msra.mxu0 0.0
      %1188 = vmatprep.subr.mxu0 0.0
      %1189 = vmatpush1.msra.mxu0 0.0
      %1190 = vmatprep.subr.mxu0 0.0
      %1191 = vmatpush1.msra.mxu0 0.0
      %1192 = vmatprep.subr.mxu0 0.0
      %1193 = vmatpush1.msra.mxu0 0.0
      %1194 = vmatprep.subr.mxu0 0.0
      %1195 = vmatpush1.msra.mxu0 0.0
      %1196 = vmatprep.subr.mxu0 0.0
      %1197 = vmatpush1.msra.mxu0 0.0
      %1198 = vmatprep.subr.mxu0 0.0
      %1199 = vmatpush1.msra.mxu0 0.0
      %1200 = vmatprep.subr.mxu0 0.0
      %1201 = vmatpush1.msra.mxu0 0.0
      %1202 = vmatprep.subr.mxu0 0.0
      %1203 = vmatpush1.msra.mxu0 0.0
      %1204 = vmatprep.subr.mxu0 0.0
      %1205 = vmatpush1.msra.mxu0 0.0
      %1206 = vmatprep.subr.mxu0 0.0
      %1207 = vmatpush1.msra.mxu0 %v873
      %1208 = vmatprep.subr.mxu0 0.0
      %1209 = vmatpush1.msra.mxu0 %v872
      %1210 = vmatprep.subr.mxu0 0.0
      %1211 = vmatpush1.msra.mxu0 %v871
      %1212 = vmatprep.subr.mxu0 0.0
      %1213 = vmatpush1.msra.mxu0 %v870
      %1214 = vmatprep.subr.mxu0 0.0
      %1215 = vmatpush2.msra.mxu0 0.0
      %1216 = vmatprep.subr.mxu0 0.0
      %1217 = vmatpush2.msra.mxu0 0.0
      %1218 = vmatprep.subr.mxu0 0.0
      %1219 = vmatpush2.msra.mxu0 0.0
      %1220 = vmatprep.subr.mxu0 0.0
      %1221 = vmatpush2.msra.mxu0 0.0
      %1222 = vmatprep.subr.mxu0 0.0
      %1223 = vmatpush2.msra.mxu0 0.0
      %1224 = vmatprep.subr.mxu0 0.0
      %1225 = vmatpush2.msra.mxu0 0.0
      %1226 = vmatprep.subr.mxu0 0.0
      %1227 = vmatpush2.msra.mxu0 0.0
      %1228 = vmatprep.subr.mxu0 0.0
      %1229 = vmatpush2.msra.mxu0 0.0
      %1230 = vmatprep.subr.mxu0 0.0
      %1231 = vmatpush2.msra.mxu0 0.0
      %1232 = vmatprep.subr.mxu0 0.0
      %1233 = vmatpush2.msra.mxu0 0.0
      %1234 = vmatprep.subr.mxu0 0.0
      %1235 = vmatpush2.msra.mxu0 0.0
      %1236 = vmatprep.subr.mxu0 0.0
      %1237 = vmatpush2.msra.mxu0 0.0
      %1238 = vmatprep.subr.mxu0 0.0
      %1239 = vmatpush2.msra.mxu0 0.0
      %1240 = vmatprep.subr.mxu0 0.0
      %1241 = vmatpush2.msra.mxu0 0.0
      %1242 = vmatprep.subr.mxu0 0.0
      %1243 = vmatpush2.msra.mxu0 0.0
      %1244 = vmatprep.subr.mxu0 0.0
      %1245 = vmatpush2.msra.mxu0 0.0
      %1246 = vmatprep.mubr.f32.mxu0 0.0
      %1247 = vmatmul.mubr.f32.gmra.mxu0 %v1180
      %v1248 = vpop.f32.mrf.mxu0
      %v1249 = vadd.f32 0.0, %v1248
      %v1250 = vpop.f32.mrf.mxu0
      %1251 = vdwg.mxu0
      %v1253 = vsel %vm886, %v851, 0
      %1255 = vmatprep.subr.mxu0 0.0
      %1256 = vmatpush1.msra.mxu0 0.0
      %1257 = vmatprep.subr.mxu0 0.0
      %1258 = vmatpush1.msra.mxu0 0.0
      %1259 = vmatprep.subr.mxu0 0.0
      %1260 = vmatpush1.msra.mxu0 0.0
      %1261 = vmatprep.subr.mxu0 0.0
      %1262 = vmatpush1.msra.mxu0 0.0
      %1263 = vmatprep.subr.mxu0 0.0
      %1264 = vmatpush1.msra.mxu0 0.0
      %1265 = vmatprep.subr.mxu0 0.0
      %1266 = vmatpush1.msra.mxu0 0.0
      %1267 = vmatprep.subr.mxu0 0.0
      %1268 = vmatpush1.msra.mxu0 0.0
      %1269 = vmatprep.subr.mxu0 0.0
      %1270 = vmatpush1.msra.mxu0 0.0
      %1271 = vmatprep.subr.mxu0 0.0
      %1272 = vmatpush1.msra.mxu0 0.0
      %1273 = vmatprep.subr.mxu0 0.0
      %1274 = vmatpush1.msra.mxu0 0.0
      %1275 = vmatprep.subr.mxu0 0.0
      %1276 = vmatpush1.msra.mxu0 0.0
      %1277 = vmatprep.subr.mxu0 0.0
      %1278 = vmatpush1.msra.mxu0 0.0
      %1279 = vmatprep.subr.mxu0 0.0
      %1280 = vmatpush1.msra.mxu0 %v877
      %1281 = vmatprep.subr.mxu0 0.0
      %1282 = vmatpush1.msra.mxu0 %v876
      %1283 = vmatprep.subr.mxu0 0.0
      %1284 = vmatpush1.msra.mxu0 %v875
      %1285 = vmatprep.subr.mxu0 0.0
      %1286 = vmatpush1.msra.mxu0 %v874
      %1287 = vmatprep.subr.mxu0 0.0
      %1288 = vmatpush2.msra.mxu0 0.0
      %1289 = vmatprep.subr.mxu0 0.0
      %1290 = vmatpush2.msra.mxu0 0.0
      %1291 = vmatprep.subr.mxu0 0.0
      %1292 = vmatpush2.msra.mxu0 0.0
      %1293 = vmatprep.subr.mxu0 0.0
      %1294 = vmatpush2.msra.mxu0 0.0
      %1295 = vmatprep.subr.mxu0 0.0
      %1296 = vmatpush2.msra.mxu0 0.0
      %1297 = vmatprep.subr.mxu0 0.0
      %1298 = vmatpush2.msra.mxu0 0.0
      %1299 = vmatprep.subr.mxu0 0.0
      %1300 = vmatpush2.msra.mxu0 0.0
      %1301 = vmatprep.subr.mxu0 0.0
      %1302 = vmatpush2.msra.mxu0 0.0
      %1303 = vmatprep.subr.mxu0 0.0
      %1304 = vmatpush2.msra.mxu0 0.0
      %1305 = vmatprep.subr.mxu0 0.0
      %1306 = vmatpush2.msra.mxu0 0.0
      %1307 = vmatprep.subr.mxu0 0.0
      %1308 = vmatpush2.msra.mxu0 0.0
      %1309 = vmatprep.subr.mxu0 0.0
      %1310 = vmatpush2.msra.mxu0 0.0
      %1311 = vmatprep.subr.mxu0 0.0
      %1312 = vmatpush2.msra.mxu0 0.0
      %1313 = vmatprep.subr.mxu0 0.0
      %1314 = vmatpush2.msra.mxu0 0.0
      %1315 = vmatprep.subr.mxu0 0.0
      %1316 = vmatpush2.msra.mxu0 0.0
      %1317 = vmatprep.subr.mxu0 0.0
      %1318 = vmatpush2.msra.mxu0 0.0
      %1319 = vmatprep.mubr.f32.mxu0 0.0
      %1320 = vmatmul.mubr.f32.gmra.mxu0 %v1253
      %v1321 = vpop.f32.mrf.mxu0
      %v1322 = vadd.f32 0.0, %v1321
      %v1323 = vpop.f32.mrf.mxu0
      %1324 = vdwg.mxu0
      %v1326 = vsel %vm886, %v852, 0
      %1328 = vmatprep.subr.mxu0 0.0
      %1329 = vmatpush1.msra.mxu0 0.0
      %1330 = vmatprep.subr.mxu0 0.0
      %1331 = vmatpush1.msra.mxu0 0.0
      %1332 = vmatprep.subr.mxu0 0.0
      %1333 = vmatpush1.msra.mxu0 0.0
      %1334 = vmatprep.subr.mxu0 0.0
      %1335 = vmatpush1.msra.mxu0 0.0
      %1336 = vmatprep.subr.mxu0 0.0
      %1337 = vmatpush1.msra.mxu0 0.0
      %1338 = vmatprep.subr.mxu0 0.0
      %1339 = vmatpush1.msra.mxu0 0.0
      %1340 = vmatprep.subr.mxu0 0.0
      %1341 = vmatpush1.msra.mxu0 0.0
      %1342 = vmatprep.subr.mxu0 0.0
      %1343 = vmatpush1.msra.mxu0 0.0
      %1344 = vmatprep.subr.mxu0 0.0
      %1345 = vmatpush1.msra.mxu0 0.0
      %1346 = vmatprep.subr.mxu0 0.0
      %1347 = vmatpush1.msra.mxu0 0.0
      %1348 = vmatprep.subr.mxu0 0.0
      %1349 = vmatpush1.msra.mxu0 0.0
      %1350 = vmatprep.subr.mxu0 0.0
      %1351 = vmatpush1.msra.mxu0 0.0
      %1352 = vmatprep.subr.mxu0 0.0
      %1353 = vmatpush1.msra.mxu0 %v881
      %1354 = vmatprep.subr.mxu0 0.0
      %1355 = vmatpush1.msra.mxu0 %v880
      %1356 = vmatprep.subr.mxu0 0.0
      %1357 = vmatpush1.msra.mxu0 %v879
      %1358 = vmatprep.subr.mxu0 0.0
      %1359 = vmatpush1.msra.mxu0 %v878
      %1360 = vmatprep.subr.mxu0 0.0
      %1361 = vmatpush2.msra.mxu0 0.0
      %1362 = vmatprep.subr.mxu0 0.0
      %1363 = vmatpush2.msra.mxu0 0.0
      %1364 = vmatprep.subr.mxu0 0.0
      %1365 = vmatpush2.msra.mxu0 0.0
      %1366 = vmatprep.subr.mxu0 0.0
      %1367 = vmatpush2.msra.mxu0 0.0
      %1368 = vmatprep.subr.mxu0 0.0
      %1369 = vmatpush2.msra.mxu0 0.0
      %1370 = vmatprep.subr.mxu0 0.0
      %1371 = vmatpush2.msra.mxu0 0.0
      %1372 = vmatprep.subr.mxu0 0.0
      %1373 = vmatpush2.msra.mxu0 0.0
      %1374 = vmatprep.subr.mxu0 0.0
      %1375 = vmatpush2.msra.mxu0 0.0
      %1376 = vmatprep.subr.mxu0 0.0
      %1377 = vmatpush2.msra.mxu0 0.0
      %1378 = vmatprep.subr.mxu0 0.0
      %1379 = vmatpush2.msra.mxu0 0.0
      %1380 = vmatprep.subr.mxu0 0.0
      %1381 = vmatpush2.msra.mxu0 0.0
      %1382 = vmatprep.subr.mxu0 0.0
      %1383 = vmatpush2.msra.mxu0 0.0
      %1384 = vmatprep.subr.mxu0 0.0
      %1385 = vmatpush2.msra.mxu0 0.0
      %1386 = vmatprep.subr.mxu0 0.0
      %1387 = vmatpush2.msra.mxu0 0.0
      %1388 = vmatprep.subr.mxu0 0.0
      %1389 = vmatpush2.msra.mxu0 0.0
      %1390 = vmatprep.subr.mxu0 0.0
      %1391 = vmatpush2.msra.mxu0 0.0
      %1392 = vmatprep.mubr.f32.mxu0 0.0
      %1393 = vmatmul.mubr.f32.gmra.mxu0 %v1326
      %v1394 = vpop.f32.mrf.mxu0
      %v1395 = vadd.f32 0.0, %v1394
      %v1396 = vpop.f32.mrf.mxu0
      %1397 = vdwg.mxu0
      %v1399 = vsel %vm886, %v853, 0
      %1401 = vmatprep.subr.mxu0 0.0
      %1402 = vmatpush1.msra.mxu0 0.0
      %1403 = vmatprep.subr.mxu0 0.0
      %1404 = vmatpush1.msra.mxu0 0.0
      %1405 = vmatprep.subr.mxu0 0.0
      %1406 = vmatpush1.msra.mxu0 0.0
      %1407 = vmatprep.subr.mxu0 0.0
      %1408 = vmatpush1.msra.mxu0 0.0
      %1409 = vmatprep.subr.mxu0 0.0
      %1410 = vmatpush1.msra.mxu0 0.0
      %1411 = vmatprep.subr.mxu0 0.0
      %1412 = vmatpush1.msra.mxu0 0.0
      %1413 = vmatprep.subr.mxu0 0.0
      %1414 = vmatpush1.msra.mxu0 0.0
      %1415 = vmatprep.subr.mxu0 0.0
      %1416 = vmatpush1.msra.mxu0 0.0
      %1417 = vmatprep.subr.mxu0 0.0
      %1418 = vmatpush1.msra.mxu0 0.0
      %1419 = vmatprep.subr.mxu0 0.0
      %1420 = vmatpush1.msra.mxu0 0.0
      %1421 = vmatprep.subr.mxu0 0.0
      %1422 = vmatpush1.msra.mxu0 0.0
      %1423 = vmatprep.subr.mxu0 0.0
      %1424 = vmatpush1.msra.mxu0 0.0
      %1425 = vmatprep.subr.mxu0 0.0
      %1426 = vmatpush1.msra.mxu0 %v885
      %1427 = vmatprep.subr.mxu0 0.0
      %1428 = vmatpush1.msra.mxu0 %v884
      %1429 = vmatprep.subr.mxu0 0.0
      %1430 = vmatpush1.msra.mxu0 %v883
      %1431 = vmatprep.subr.mxu0 0.0
      %1432 = vmatpush1.msra.mxu0 %v882
      %1433 = vmatprep.subr.mxu0 0.0
      %1434 = vmatpush2.msra.mxu0 0.0
      %1435 = vmatprep.subr.mxu0 0.0
      %1436 = vmatpush2.msra.mxu0 0.0
      %1437 = vmatprep.subr.mxu0 0.0
      %1438 = vmatpush2.msra.mxu0 0.0
      %1439 = vmatprep.subr.mxu0 0.0
      %1440 = vmatpush2.msra.mxu0 0.0
      %1441 = vmatprep.subr.mxu0 0.0
      %1442 = vmatpush2.msra.mxu0 0.0
      %1443 = vmatprep.subr.mxu0 0.0
      %1444 = vmatpush2.msra.mxu0 0.0
      %1445 = vmatprep.subr.mxu0 0.0
      %1446 = vmatpush2.msra.mxu0 0.0
      %1447 = vmatprep.subr.mxu0 0.0
      %1448 = vmatpush2.msra.mxu0 0.0
      %1449 = vmatprep.subr.mxu0 0.0
      %1450 = vmatpush2.msra.mxu0 0.0
      %1451 = vmatprep.subr.mxu0 0.0
      %1452 = vmatpush2.msra.mxu0 0.0
      %1453 = vmatprep.subr.mxu0 0.0
      %1454 = vmatpush2.msra.mxu0 0.0
      %1455 = vmatprep.subr.mxu0 0.0
      %1456 = vmatpush2.msra.mxu0 0.0
      %1457 = vmatprep.subr.mxu0 0.0
      %1458 = vmatpush2.msra.mxu0 0.0
      %1459 = vmatprep.subr.mxu0 0.0
      %1460 = vmatpush2.msra.mxu0 0.0
      %1461 = vmatprep.subr.mxu0 0.0
      %1462 = vmatpush2.msra.mxu0 0.0
      %1463 = vmatprep.subr.mxu0 0.0
      %1464 = vmatpush2.msra.mxu0 0.0
      %1465 = vmatprep.mubr.f32.mxu0 0.0
      %1466 = vmatmul.mubr.f32.gmra.mxu0 %v1399
      %v1467 = vpop.f32.mrf.mxu0
      %v1468 = vadd.f32 0.0, %v1467
      %v1469 = vpop.f32.mrf.mxu0
      %1470 = vdwg.mxu0
      %v1479 = vrot.slane %v1030, 7
      %vm1480 = vcmask 1041409
      %v1481 = vsel %vm1480, %v1479, %v957
      %v1482 = vrot.slane %v1103, 6
      %vm1483 = vcmask 1042434
      %v1484 = vsel %vm1483, %v1482, %v1481
      %v1485 = vrot.slane %v1176, 5
      %vm1486 = vcmask 1043459
      %v1487 = vsel %vm1486, %v1485, %v1484
      %v1488 = vrot.slane %v1249, 4
      %vm1489 = vcmask 1044484
      %v1490 = vsel %vm1489, %v1488, %v1487
      %v1491 = vrot.slane %v1322, 3
      %vm1492 = vcmask 1045509
      %v1493 = vsel %vm1492, %v1491, %v1490
      %v1494 = vrot.slane %v1395, 2
      %vm1495 = vcmask 1046534
      %v1496 = vsel %vm1495, %v1494, %v1493
      %v1497 = vrot.slane %v1468, 1
      %vm1498 = vcmask 1047559
      %v1499 = vsel %vm1498, %v1497, %v1496
      %vm1501 = vcmask 64512
      %v1503 = vsel %vm1501, %v76, 0
      %v1506 = vsel %vm1501, %v77, 0
      %1508 = vmatprep.subr.mxu0 0.0
      %1509 = vmatpush1.msra.mxu0 0.0
      %1510 = vmatprep.subr.mxu0 0.0
      %1511 = vmatpush1.msra.mxu0 0.0
      %1512 = vmatprep.subr.mxu0 0.0
      %1513 = vmatpush1.msra.mxu0 0.0
      %1514 = vmatprep.subr.mxu0 0.0
      %1515 = vmatpush1.msra.mxu0 0.0
      %1516 = vmatprep.subr.mxu0 0.0
      %1517 = vmatpush1.msra.mxu0 0.0
      %1518 = vmatprep.subr.mxu0 0.0
      %1519 = vmatpush1.msra.mxu0 0.0
      %1520 = vmatprep.subr.mxu0 0.0
      %1521 = vmatpush1.msra.mxu0 0.0
      %1522 = vmatprep.subr.mxu0 0.0
      %1523 = vmatpush1.msra.mxu0 0.0
      %1524 = vmatprep.subr.mxu0 0.0
      %1525 = vmatpush1.msra.mxu0 0.0
      %1526 = vmatprep.subr.mxu0 0.0
      %1527 = vmatpush1.msra.mxu0 0.0
      %1528 = vmatprep.subr.mxu0 0.0
      %1529 = vmatpush1.msra.mxu0 0.0
      %1530 = vmatprep.subr.mxu0 0.0
      %1531 = vmatpush1.msra.mxu0 0.0
      %1532 = vmatprep.subr.mxu0 0.0
      %1533 = vmatpush1.msra.mxu0 0.0
      %1534 = vmatprep.subr.mxu0 0.0
      %1535 = vmatpush1.msra.mxu0 0.0
      %1536 = vmatprep.subr.mxu0 0.0
      %1537 = vmatpush1.msra.mxu0 0.0
      %1538 = vmatprep.subr.mxu0 0.0
      %1539 = vmatpush1.msra.mxu0 %v1499
      %1540 = vmatprep.subr.mxu0 0.0
      %1541 = vmatpush2.msra.mxu0 0.0
      %1542 = vmatprep.subr.mxu0 0.0
      %1543 = vmatpush2.msra.mxu0 0.0
      %1544 = vmatprep.subr.mxu0 0.0
      %1545 = vmatpush2.msra.mxu0 0.0
      %1546 = vmatprep.subr.mxu0 0.0
      %1547 = vmatpush2.msra.mxu0 0.0
      %1548 = vmatprep.subr.mxu0 0.0
      %1549 = vmatpush2.msra.mxu0 0.0
      %1550 = vmatprep.subr.mxu0 0.0
      %1551 = vmatpush2.msra.mxu0 0.0
      %1552 = vmatprep.subr.mxu0 0.0
      %1553 = vmatpush2.msra.mxu0 0.0
      %1554 = vmatprep.subr.mxu0 0.0
      %1555 = vmatpush2.msra.mxu0 0.0
      %1556 = vmatprep.subr.mxu0 0.0
      %1557 = vmatpush2.msra.mxu0 0.0
      %1558 = vmatprep.subr.mxu0 0.0
      %1559 = vmatpush2.msra.mxu0 0.0
      %1560 = vmatprep.subr.mxu0 0.0
      %1561 = vmatpush2.msra.mxu0 0.0
      %1562 = vmatprep.subr.mxu0 0.0
      %1563 = vmatpush2.msra.mxu0 0.0
      %1564 = vmatprep.subr.mxu0 0.0
      %1565 = vmatpush2.msra.mxu0 0.0
      %1566 = vmatprep.subr.mxu0 0.0
      %1567 = vmatpush2.msra.mxu0 0.0
      %1568 = vmatprep.subr.mxu0 0.0
      %1569 = vmatpush2.msra.mxu0 0.0
      %1570 = vmatprep.subr.mxu0 0.0
      %1571 = vmatpush2.msra.mxu0 0.0
      %1572 = vmatprep.mubr.f32.mxu0 0.0
      %1573 = vmatmul.mubr.f32.gmra.mxu0 %v1503
      %v1574 = vpop.f32.mrf.mxu0
      %v1575 = vadd.f32 0.0, %v1574
      %v1576 = vpop.f32.mrf.mxu0
      %1577 = vmatprep.mubr.f32.mxu0 0.0
      %1578 = vmatmul.mubr.f32.gmra.mxu0 %v1506
      %v1579 = vpop.f32.mrf.mxu0
      %v1580 = vadd.f32 0.0, %v1579
      %v1581 = vpop.f32.mrf.mxu0
      %1582 = vdwg.mxu0
      %v1583 = vld [vmem:[%s4] sm:$0xff]
      %v1584 = vld [vmem:[%s4 + $0x8] sm:$0xff]
      %v1585 = vld [vmem:[%s4 + $0x10] sm:$0xff]
      %v1586 = vld [vmem:[%s4 + $0x18] sm:$0xff]
      %v1588 = vsel %vm886, %v1575, 0
      %v1591 = vsel %vm886, %v1580, 0
      %1593 = vmatprep.subr.mxu0 0.0
      %1594 = vmatpush1.msra.mxu0 0.0
      %1595 = vmatprep.subr.mxu0 0.0
      %1596 = vmatpush1.msra.mxu0 0.0
      %1597 = vmatprep.subr.mxu0 0.0
      %1598 = vmatpush1.msra.mxu0 0.0
      %1599 = vmatprep.subr.mxu0 0.0
      %1600 = vmatpush1.msra.mxu0 0.0
      %1601 = vmatprep.subr.mxu0 0.0
      %1602 = vmatpush1.msra.mxu0 0.0
      %1603 = vmatprep.subr.mxu0 0.0
      %1604 = vmatpush1.msra.mxu0 0.0
      %1605 = vmatprep.subr.mxu0 0.0
      %1606 = vmatpush1.msra.mxu0 0.0
      %1607 = vmatprep.subr.mxu0 0.0
      %1608 = vmatpush1.msra.mxu0 0.0
      %1609 = vmatprep.subr.mxu0 0.0
      %1610 = vmatpush1.msra.mxu0 0.0
      %1611 = vmatprep.subr.mxu0 0.0
      %1612 = vmatpush1.msra.mxu0 0.0
      %1613 = vmatprep.subr.mxu0 0.0
      %1614 = vmatpush1.msra.mxu0 0.0
      %1615 = vmatprep.subr.mxu0 0.0
      %1616 = vmatpush1.msra.mxu0 0.0
      %1617 = vmatprep.subr.mxu0 0.0
      %1618 = vmatpush1.msra.mxu0 %v1586
      %1619 = vmatprep.subr.mxu0 0.0
      %1620 = vmatpush1.msra.mxu0 %v1585
      %1621 = vmatprep.subr.mxu0 0.0
      %1622 = vmatpush1.msra.mxu0 %v1584
      %1623 = vmatprep.subr.mxu0 0.0
      %1624 = vmatpush1.msra.mxu0 %v1583
      %1625 = vmatprep.subr.mxu0 0.0
      %1626 = vmatpush2.msra.mxu0 0.0
      %1627 = vmatprep.subr.mxu0 0.0
      %1628 = vmatpush2.msra.mxu0 0.0
      %1629 = vmatprep.subr.mxu0 0.0
      %1630 = vmatpush2.msra.mxu0 0.0
      %1631 = vmatprep.subr.mxu0 0.0
      %1632 = vmatpush2.msra.mxu0 0.0
      %1633 = vmatprep.subr.mxu0 0.0
      %1634 = vmatpush2.msra.mxu0 0.0
      %1635 = vmatprep.subr.mxu0 0.0
      %1636 = vmatpush2.msra.mxu0 0.0
      %1637 = vmatprep.subr.mxu0 0.0
      %1638 = vmatpush2.msra.mxu0 0.0
      %1639 = vmatprep.subr.mxu0 0.0
      %1640 = vmatpush2.msra.mxu0 0.0
      %1641 = vmatprep.subr.mxu0 0.0
      %1642 = vmatpush2.msra.mxu0 0.0
      %1643 = vmatprep.subr.mxu0 0.0
      %1644 = vmatpush2.msra.mxu0 0.0
      %1645 = vmatprep.subr.mxu0 0.0
      %1646 = vmatpush2.msra.mxu0 0.0
      %1647 = vmatprep.subr.mxu0 0.0
      %1648 = vmatpush2.msra.mxu0 0.0
      %1649 = vmatprep.subr.mxu0 0.0
      %1650 = vmatpush2.msra.mxu0 0.0
      %1651 = vmatprep.subr.mxu0 0.0
      %1652 = vmatpush2.msra.mxu0 0.0
      %1653 = vmatprep.subr.mxu0 0.0
      %1654 = vmatpush2.msra.mxu0 0.0
      %1655 = vmatprep.subr.mxu0 0.0
      %1656 = vmatpush2.msra.mxu0 0.0
      %1657 = vmatprep.mubr.f32.mxu0 0.0
      %1658 = vmatmul.mubr.f32.gmra.mxu0 %v1588
      %v1659 = vpop.f32.mrf.mxu0
      %v1660 = vadd.f32 0.0, %v1659
      %v1661 = vpop.f32.mrf.mxu0
      %1662 = vmatprep.mubr.f32.mxu0 0.0
      %1663 = vmatmul.mubr.f32.gmra.mxu0 %v1591
      %v1664 = vpop.f32.mrf.mxu0
      %v1665 = vadd.f32 0.0, %v1664
      %v1666 = vpop.f32.mrf.mxu0
      %1667 = vdwg.mxu0
      %v1668 = vld [vmem:[%s4 + $0x20] sm:$0xff]
      %v1669 = vld [vmem:[%s4 + $0x28] sm:$0xff]
      %v1670 = vld [vmem:[%s4 + $0x30] sm:$0xff]
      %v1671 = vld [vmem:[%s4 + $0x38] sm:$0xff]
      %1672 = vmatprep.subr.mxu0 0.0
      %1673 = vmatpush1.msra.mxu0 0.0
      %1674 = vmatprep.subr.mxu0 0.0
      %1675 = vmatpush1.msra.mxu0 0.0
      %1676 = vmatprep.subr.mxu0 0.0
      %1677 = vmatpush1.msra.mxu0 0.0
      %1678 = vmatprep.subr.mxu0 0.0
      %1679 = vmatpush1.msra.mxu0 0.0
      %1680 = vmatprep.subr.mxu0 0.0
      %1681 = vmatpush1.msra.mxu0 0.0
      %1682 = vmatprep.subr.mxu0 0.0
      %1683 = vmatpush1.msra.mxu0 0.0
      %1684 = vmatprep.subr.mxu0 0.0
      %1685 = vmatpush1.msra.mxu0 0.0
      %1686 = vmatprep.subr.mxu0 0.0
      %1687 = vmatpush1.msra.mxu0 0.0
      %1688 = vmatprep.subr.mxu0 0.0
      %1689 = vmatpush1.msra.mxu0 0.0
      %1690 = vmatprep.subr.mxu0 0.0
      %1691 = vmatpush1.msra.mxu0 0.0
      %1692 = vmatprep.subr.mxu0 0.0
      %1693 = vmatpush1.msra.mxu0 0.0
      %1694 = vmatprep.subr.mxu0 0.0
      %1695 = vmatpush1.msra.mxu0 0.0
      %1696 = vmatprep.subr.mxu0 0.0
      %1697 = vmatpush1.msra.mxu0 %v1671
      %1698 = vmatprep.subr.mxu0 0.0
      %1699 = vmatpush1.msra.mxu0 %v1670
      %1700 = vmatprep.subr.mxu0 0.0
      %1701 = vmatpush1.msra.mxu0 %v1669
      %1702 = vmatprep.subr.mxu0 0.0
      %1703 = vmatpush1.msra.mxu0 %v1668
      %1704 = vmatprep.subr.mxu0 0.0
      %1705 = vmatpush2.msra.mxu0 0.0
      %1706 = vmatprep.subr.mxu0 0.0
      %1707 = vmatpush2.msra.mxu0 0.0
      %1708 = vmatprep.subr.mxu0 0.0
      %1709 = vmatpush2.msra.mxu0 0.0
      %1710 = vmatprep.subr.mxu0 0.0
      %1711 = vmatpush2.msra.mxu0 0.0
      %1712 = vmatprep.subr.mxu0 0.0
      %1713 = vmatpush2.msra.mxu0 0.0
      %1714 = vmatprep.subr.mxu0 0.0
      %1715 = vmatpush2.msra.mxu0 0.0
      %1716 = vmatprep.subr.mxu0 0.0
      %1717 = vmatpush2.msra.mxu0 0.0
      %1718 = vmatprep.subr.mxu0 0.0
      %1719 = vmatpush2.msra.mxu0 0.0
      %1720 = vmatprep.subr.mxu0 0.0
      %1721 = vmatpush2.msra.mxu0 0.0
      %1722 = vmatprep.subr.mxu0 0.0
      %1723 = vmatpush2.msra.mxu0 0.0
      %1724 = vmatprep.subr.mxu0 0.0
      %1725 = vmatpush2.msra.mxu0 0.0
      %1726 = vmatprep.subr.mxu0 0.0
      %1727 = vmatpush2.msra.mxu0 0.0
      %1728 = vmatprep.subr.mxu0 0.0
      %1729 = vmatpush2.msra.mxu0 0.0
      %1730 = vmatprep.subr.mxu0 0.0
      %1731 = vmatpush2.msra.mxu0 0.0
      %1732 = vmatprep.subr.mxu0 0.0
      %1733 = vmatpush2.msra.mxu0 0.0
      %1734 = vmatprep.subr.mxu0 0.0
      %1735 = vmatpush2.msra.mxu0 0.0
      %1736 = vmatprep.mubr.f32.mxu0 0.0
      %1737 = vmatmul.mubr.f32.gmra.mxu0 %v1588
      %v1738 = vpop.f32.mrf.mxu0
      %v1739 = vadd.f32 0.0, %v1738
      %v1740 = vpop.f32.mrf.mxu0
      %1741 = vmatprep.mubr.f32.mxu0 0.0
      %1742 = vmatmul.mubr.f32.gmra.mxu0 %v1591
      %v1743 = vpop.f32.mrf.mxu0
      %v1744 = vadd.f32 0.0, %v1743
      %v1745 = vpop.f32.mrf.mxu0
      %1746 = vdwg.mxu0
      %1747 = vst.msk [vmem:[#allocation2] sm:$0xff] %vm886, %v1660
      %1748 = vst.msk [vmem:[#allocation2 + $0x8] sm:$0xff] %vm886, %v1665
      %1749 = vst.msk [vmem:[#allocation2 + $0x10] sm:$0xff] %vm886, %v1739
      %1750 = vst.msk [vmem:[#allocation2 + $0x18] sm:$0xff] %vm886, %v1744
    $region45: #{tpu_custom_call.1} parent=1 // pred_fallthru
      _
    %v1751 = vld [vmem:[#allocation2] sm:$0xff]
    %v1752 = vld [vmem:[#allocation2 + $0x8] sm:$0xff]
    %v1753 = vld [vmem:[#allocation2 + $0x10] sm:$0xff]
    %v1754 = vld [vmem:[#allocation2 + $0x18] sm:$0xff]
    %v1755 = vld [vmem:[%s67] sm:$0x3f]
    %v1756 = vlaneseq
    %v1757 = vshrl.u32 %v1756, 7
    %v1758 = vadd.s32 %v1757, 8
    %v1759 = vadd.s32 %v1757, 16
    %v1760 = vadd.s32 %v1757, 24
    %v1761 = vlaneseq
    %v1762 = vshrl.u32 %v1761, 7
    %v1763 = vsub.s32 0, %v1762
    %v1764 = vrot.slane %v1755, %v1763
    %v1765 = vlaneseq
    %v1766 = vshrl.u32 %v1765, 7
    %v1767 = vsub.s32 2, %v1766
    %v1768 = vrot.slane %v1755, %v1767
    %v1769 = vlaneseq
    %v1770 = vshrl.u32 %v1769, 7
    %v1771 = vsub.s32 4, %v1770
    %v1772 = vrot.slane %v1755, %v1771
    %v1773 = vlaneseq
    %v1774 = vshrl.u32 %v1773, 7
    %v1775 = vsub.s32 0, %v1774
    %v1776 = vrot.slane %v1764, %v1775
    %v1777 = vlaneseq
    %v1778 = vshrl.u32 %v1777, 7
    %v1779 = vsub.s32 0, %v1778
    %v1780 = vrot.slane %v1768, %v1779
    %v1781 = vlaneseq
    %v1782 = vshrl.u32 %v1781, 7
    %v1783 = vsub.s32 0, %v1782
    %v1784 = vrot.slane %v1772, %v1783
    %vm1785 = vcmp.eq.s32.totalorder %v1757, %v1776
    %vm1786 = vcmp.eq.s32.totalorder %v1757, %v1780
    %vm1787 = vcmp.eq.s32.totalorder %v1757, %v1784
    %vm1788 = vcmp.eq.s32.totalorder %v1758, %v1776
    %vm1789 = vcmp.eq.s32.totalorder %v1758, %v1780
    %vm1790 = vcmp.eq.s32.totalorder %v1758, %v1784
    %vm1791 = vcmp.eq.s32.totalorder %v1759, %v1776
    %vm1792 = vcmp.eq.s32.totalorder %v1759, %v1780
    %vm1793 = vcmp.eq.s32.totalorder %v1759, %v1784
    %vm1794 = vcmp.eq.s32.totalorder %v1760, %v1776
    %vm1795 = vcmp.eq.s32.totalorder %v1760, %v1780
    %vm1796 = vcmp.eq.s32.totalorder %v1760, %v1784
    %v1797 = vadd.s32 %v1755, 16
    %v1798 = vlaneseq
    %v1799 = vshrl.u32 %v1798, 7
    %v1800 = vsub.s32 1, %v1799
    %v1801 = vrot.slane %v1797, %v1800
    %v1802 = vlaneseq
    %v1803 = vshrl.u32 %v1802, 7
    %v1804 = vsub.s32 3, %v1803
    %v1805 = vrot.slane %v1797, %v1804
    %v1806 = vlaneseq
    %v1807 = vshrl.u32 %v1806, 7
    %v1808 = vsub.s32 5, %v1807
    %v1809 = vrot.slane %v1797, %v1808
    %v1810 = vlaneseq
    %v1811 = vshrl.u32 %v1810, 7
    %v1812 = vsub.s32 1, %v1811
    %v1813 = vrot.slane %v1801, %v1812
    %v1814 = vlaneseq
    %v1815 = vshrl.u32 %v1814, 7
    %v1816 = vsub.s32 1, %v1815
    %v1817 = vrot.slane %v1805, %v1816
    %v1818 = vlaneseq
    %v1819 = vshrl.u32 %v1818, 7
    %v1820 = vsub.s32 1, %v1819
    %v1821 = vrot.slane %v1809, %v1820
    %vm1822 = vcmp.eq.s32.totalorder %v1757, %v1813
    %vm1823 = vcmp.eq.s32.totalorder %v1757, %v1817
    %vm1824 = vcmp.eq.s32.totalorder %v1757, %v1821
    %vm1825 = vcmp.eq.s32.totalorder %v1758, %v1813
    %vm1826 = vcmp.eq.s32.totalorder %v1758, %v1817
    %vm1827 = vcmp.eq.s32.totalorder %v1758, %v1821
    %vm1828 = vcmp.eq.s32.totalorder %v1759, %v1813
    %vm1829 = vcmp.eq.s32.totalorder %v1759, %v1817
    %vm1830 = vcmp.eq.s32.totalorder %v1759, %v1821
    %vm1831 = vcmp.eq.s32.totalorder %v1760, %v1813
    %vm1832 = vcmp.eq.s32.totalorder %v1760, %v1817
    %vm1833 = vcmp.eq.s32.totalorder %v1760, %v1821
    %vm1834 = vmor %vm1785, %vm1822
    %vm1835 = vmor %vm1786, %vm1823
    %vm1836 = vmor %vm1787, %vm1824
    %vm1837 = vmor %vm1788, %vm1825
    %vm1838 = vmor %vm1789, %vm1826
    %vm1839 = vmor %vm1790, %vm1827
    %vm1840 = vmor %vm1791, %vm1828
    %vm1841 = vmor %vm1792, %vm1829
    %vm1842 = vmor %vm1793, %vm1830
    %vm1843 = vmor %vm1794, %vm1831
    %vm1844 = vmor %vm1795, %vm1832
    %vm1845 = vmor %vm1796, %vm1833
    %v1846 = vsel %vm1834, 1.0, 0.0
    %v1847 = vsel %vm1835, 1.0, 0.0
    %v1848 = vsel %vm1836, 1.0, 0.0
    %v1849 = vsel %vm1837, 1.0, 0.0
    %v1850 = vsel %vm1838, 1.0, 0.0
    %v1851 = vsel %vm1839, 1.0, 0.0
    %v1852 = vsel %vm1840, 1.0, 0.0
    %v1853 = vsel %vm1841, 1.0, 0.0
    %v1854 = vsel %vm1842, 1.0, 0.0
    %v1855 = vsel %vm1843, 1.0, 0.0
    %v1856 = vsel %vm1844, 1.0, 0.0
    %v1857 = vsel %vm1845, 1.0, 0.0
    %v1858 = vld [vmem:[%s5] sm:$0x1]
    %v1860 = vlaneseq
    %v1861 = vshrl.u32 %v1860, 7
    %v1862 = vsub.s32 0, %v1861
    %v1863 = vrot.slane %v1858, %v1862
    %1865 = vxpose.xlu0.b32.start [1/16] %v1846, 128
    %1866 = vxpose.xlu0.b32.cont [2/16] %v1849, 128
    %1867 = vxpose.xlu0.b32.cont [3/16] %v1852, 128
    %1868 = vxpose.xlu0.b32.cont [4/16] %v1855, 128
    %1869 = vxpose.xlu0.b32.cont [5/16] 0.0, 128
    %1870 = vxpose.xlu0.b32.cont [6/16] 0.0, 128
    %1871 = vxpose.xlu0.b32.cont [7/16] 0.0, 128
    %1872 = vxpose.xlu0.b32.cont [8/16] 0.0, 128
    %1873 = vxpose.xlu0.b32.cont [9/16] 0.0, 128
    %1874 = vxpose.xlu0.b32.cont [10/16] 0.0, 128
    %1875 = vxpose.xlu0.b32.cont [11/16] 0.0, 128
    %1876 = vxpose.xlu0.b32.cont [12/16] 0.0, 128
    %1877 = vxpose.xlu0.b32.cont [13/16] 0.0, 128
    %1878 = vxpose.xlu0.b32.cont [14/16] 0.0, 128
    %1879 = vxpose.xlu0.b32.cont [15/16] 0.0, 128
    %1880 = vxpose.xlu0.b32.end [16/16] 0.0, 128
    %v1881 = vpop.trf.xlu0
    %v1882 = vpop.trf.xlu0
    %v1883 = vpop.trf.xlu0
    %v1884 = vpop.trf.xlu0
    %v1885 = vpop.trf.xlu0
    %v1886 = vpop.trf.xlu0
    %v1887 = vpop.trf.xlu0
    %v1888 = vpop.trf.xlu0
    %v1889 = vpop.trf.xlu0
    %v1890 = vpop.trf.xlu0
    %v1891 = vpop.trf.xlu0
    %v1892 = vpop.trf.xlu0
    %v1893 = vpop.trf.xlu0
    %v1894 = vpop.trf.xlu0
    %v1895 = vpop.trf.xlu0
    %v1896 = vpop.trf.xlu0
    %1897 = vxpose.xlu0.b32.start [1/16] %v1847, 128
    %1898 = vxpose.xlu0.b32.cont [2/16] %v1850, 128
    %1899 = vxpose.xlu0.b32.cont [3/16] %v1853, 128
    %1900 = vxpose.xlu0.b32.cont [4/16] %v1856, 128
    %1901 = vxpose.xlu0.b32.cont [5/16] 0.0, 128
    %1902 = vxpose.xlu0.b32.cont [6/16] 0.0, 128
    %1903 = vxpose.xlu0.b32.cont [7/16] 0.0, 128
    %1904 = vxpose.xlu0.b32.cont [8/16] 0.0, 128
    %1905 = vxpose.xlu0.b32.cont [9/16] 0.0, 128
    %1906 = vxpose.xlu0.b32.cont [10/16] 0.0, 128
    %1907 = vxpose.xlu0.b32.cont [11/16] 0.0, 128
    %1908 = vxpose.xlu0.b32.cont [12/16] 0.0, 128
    %1909 = vxpose.xlu0.b32.cont [13/16] 0.0, 128
    %1910 = vxpose.xlu0.b32.cont [14/16] 0.0, 128
    %1911 = vxpose.xlu0.b32.cont [15/16] 0.0, 128
    %1912 = vxpose.xlu0.b32.end [16/16] 0.0, 128
    %v1913 = vpop.trf.xlu0
    %v1914 = vpop.trf.xlu0
    %v1915 = vpop.trf.xlu0
    %v1916 = vpop.trf.xlu0
    %v1917 = vpop.trf.xlu0
    %v1918 = vpop.trf.xlu0
    %v1919 = vpop.trf.xlu0
    %v1920 = vpop.trf.xlu0
    %v1921 = vpop.trf.xlu0
    %v1922 = vpop.trf.xlu0
    %v1923 = vpop.trf.xlu0
    %v1924 = vpop.trf.xlu0
    %v1925 = vpop.trf.xlu0
    %v1926 = vpop.trf.xlu0
    %v1927 = vpop.trf.xlu0
    %v1928 = vpop.trf.xlu0
    %1929 = vxpose.xlu0.b32.start [1/16] %v1848, 128
    %1930 = vxpose.xlu0.b32.cont [2/16] %v1851, 128
    %1931 = vxpose.xlu0.b32.cont [3/16] %v1854, 128
    %1932 = vxpose.xlu0.b32.cont [4/16] %v1857, 128
    %1933 = vxpose.xlu0.b32.cont [5/16] 0.0, 128
    %1934 = vxpose.xlu0.b32.cont [6/16] 0.0, 128
    %1935 = vxpose.xlu0.b32.cont [7/16] 0.0, 128
    %1936 = vxpose.xlu0.b32.cont [8/16] 0.0, 128
    %1937 = vxpose.xlu0.b32.cont [9/16] 0.0, 128
    %1938 = vxpose.xlu0.b32.cont [10/16] 0.0, 128
    %1939 = vxpose.xlu0.b32.cont [11/16] 0.0, 128
    %1940 = vxpose.xlu0.b32.cont [12/16] 0.0, 128
    %1941 = vxpose.xlu0.b32.cont [13/16] 0.0, 128
    %1942 = vxpose.xlu0.b32.cont [14/16] 0.0, 128
    %1943 = vxpose.xlu0.b32.cont [15/16] 0.0, 128
    %1944 = vxpose.xlu0.b32.end [16/16] 0.0, 128
    %v1945 = vpop.trf.xlu0
    %v1946 = vpop.trf.xlu0
    %v1947 = vpop.trf.xlu0
    %v1948 = vpop.trf.xlu0
    %v1949 = vpop.trf.xlu0
    %v1950 = vpop.trf.xlu0
    %v1951 = vpop.trf.xlu0
    %v1952 = vpop.trf.xlu0
    %v1953 = vpop.trf.xlu0
    %v1954 = vpop.trf.xlu0
    %v1955 = vpop.trf.xlu0
    %v1956 = vpop.trf.xlu0
    %v1957 = vpop.trf.xlu0
    %v1958 = vpop.trf.xlu0
    %v1959 = vpop.trf.xlu0
    %v1960 = vpop.trf.xlu0
    %vm1961 = vcmask 261120
    %v1963 = vsel %vm1961, %v1881, 0
    %v1966 = vsel %vm1961, %v1882, 0
    %v1969 = vsel %vm1961, %v1883, 0
    %v1972 = vsel %vm1961, %v1884, 0
    %v1975 = vsel %vm1961, %v1885, 0
    %v1978 = vsel %vm1961, %v1886, 0
    %v1981 = vsel %vm1961, %v1887, 0
    %v1984 = vsel %vm1961, %v1888, 0
    %v1987 = vsel %vm1961, %v1889, 0
    %v1990 = vsel %vm1961, %v1890, 0
    %v1993 = vsel %vm1961, %v1891, 0
    %v1996 = vsel %vm1961, %v1892, 0
    %v1999 = vsel %vm1961, %v1893, 0
    %v2002 = vsel %vm1961, %v1894, 0
    %v2005 = vsel %vm1961, %v1895, 0
    %v2008 = vsel %vm1961, %v1896, 0
    %v2011 = vsel %vm1961, %v1913, 0
    %v2014 = vsel %vm1961, %v1914, 0
    %v2017 = vsel %vm1961, %v1915, 0
    %v2020 = vsel %vm1961, %v1916, 0
    %v2023 = vsel %vm1961, %v1917, 0
    %v2026 = vsel %vm1961, %v1918, 0
    %v2029 = vsel %vm1961, %v1919, 0
    %v2032 = vsel %vm1961, %v1920, 0
    %v2035 = vsel %vm1961, %v1921, 0
    %v2038 = vsel %vm1961, %v1922, 0
    %v2041 = vsel %vm1961, %v1923, 0
    %v2044 = vsel %vm1961, %v1924, 0
    %v2047 = vsel %vm1961, %v1925, 0
    %v2050 = vsel %vm1961, %v1926, 0
    %v2053 = vsel %vm1961, %v1927, 0
    %v2056 = vsel %vm1961, %v1928, 0
    %v2059 = vsel %vm1961, %v1945, 0
    %v2062 = vsel %vm1961, %v1946, 0
    %v2065 = vsel %vm1961, %v1947, 0
    %v2068 = vsel %vm1961, %v1948, 0
    %v2071 = vsel %vm1961, %v1949, 0
    %v2074 = vsel %vm1961, %v1950, 0
    %v2077 = vsel %vm1961, %v1951, 0
    %v2080 = vsel %vm1961, %v1952, 0
    %v2083 = vsel %vm1961, %v1953, 0
    %v2086 = vsel %vm1961, %v1954, 0
    %v2089 = vsel %vm1961, %v1955, 0
    %v2092 = vsel %vm1961, %v1956, 0
    %v2095 = vsel %vm1961, %v1957, 0
    %v2098 = vsel %vm1961, %v1958, 0
    %v2101 = vsel %vm1961, %v1959, 0
    %v2104 = vsel %vm1961, %v1960, 0
    %2106 = vmatprep.subr.mxu0 0.0
    %2107 = vmatpush1.msra.mxu0 0.0
    %2108 = vmatprep.subr.mxu0 0.0
    %2109 = vmatpush1.msra.mxu0 0.0
    %2110 = vmatprep.subr.mxu0 0.0
    %2111 = vmatpush1.msra.mxu0 0.0
    %2112 = vmatprep.subr.mxu0 0.0
    %2113 = vmatpush1.msra.mxu0 0.0
    %2114 = vmatprep.subr.mxu0 0.0
    %2115 = vmatpush1.msra.mxu0 0.0
    %2116 = vmatprep.subr.mxu0 0.0
    %2117 = vmatpush1.msra.mxu0 0.0
    %2118 = vmatprep.subr.mxu0 0.0
    %2119 = vmatpush1.msra.mxu0 0.0
    %2120 = vmatprep.subr.mxu0 0.0
    %2121 = vmatpush1.msra.mxu0 0.0
    %2122 = vmatprep.subr.mxu0 0.0
    %2123 = vmatpush1.msra.mxu0 0.0
    %2124 = vmatprep.subr.mxu0 0.0
    %2125 = vmatpush1.msra.mxu0 0.0
    %2126 = vmatprep.subr.mxu0 0.0
    %2127 = vmatpush1.msra.mxu0 0.0
    %2128 = vmatprep.subr.mxu0 0.0
    %2129 = vmatpush1.msra.mxu0 0.0
    %2130 = vmatprep.subr.mxu0 0.0
    %2131 = vmatpush1.msra.mxu0 %v1754
    %2132 = vmatprep.subr.mxu0 0.0
    %2133 = vmatpush1.msra.mxu0 %v1753
    %2134 = vmatprep.subr.mxu0 0.0
    %2135 = vmatpush1.msra.mxu0 %v1752
    %2136 = vmatprep.subr.mxu0 0.0
    %2137 = vmatpush1.msra.mxu0 %v1751
    %2138 = vmatprep.subr.mxu0 0.0
    %2139 = vmatpush2.msra.mxu0 0.0
    %2140 = vmatprep.subr.mxu0 0.0
    %2141 = vmatpush2.msra.mxu0 0.0
    %2142 = vmatprep.subr.mxu0 0.0
    %2143 = vmatpush2.msra.mxu0 0.0
    %2144 = vmatprep.subr.mxu0 0.0
    %2145 = vmatpush2.msra.mxu0 0.0
    %2146 = vmatprep.subr.mxu0 0.0
    %2147 = vmatpush2.msra.mxu0 0.0
    %2148 = vmatprep.subr.mxu0 0.0
    %2149 = vmatpush2.msra.mxu0 0.0
    %2150 = vmatprep.subr.mxu0 0.0
    %2151 = vmatpush2.msra.mxu0 0.0
    %2152 = vmatprep.subr.mxu0 0.0
    %2153 = vmatpush2.msra.mxu0 0.0
    %2154 = vmatprep.subr.mxu0 0.0
    %2155 = vmatpush2.msra.mxu0 0.0
    %2156 = vmatprep.subr.mxu0 0.0
    %2157 = vmatpush2.msra.mxu0 0.0
    %2158 = vmatprep.subr.mxu0 0.0
    %2159 = vmatpush2.msra.mxu0 0.0
    %2160 = vmatprep.subr.mxu0 0.0
    %2161 = vmatpush2.msra.mxu0 0.0
    %2162 = vmatprep.subr.mxu0 0.0
    %2163 = vmatpush2.msra.mxu0 0.0
    %2164 = vmatprep.subr.mxu0 0.0
    %2165 = vmatpush2.msra.mxu0 0.0
    %2166 = vmatprep.subr.mxu0 0.0
    %2167 = vmatpush2.msra.mxu0 0.0
    %2168 = vmatprep.subr.mxu0 0.0
    %2169 = vmatpush2.msra.mxu0 0.0
    %2170 = vmatprep.mubr.f32.mxu0 0.0
    %2171 = vmatmul.mubr.f32.gmra.mxu0 %v1963
    %v2172 = vpop.f32.mrf.mxu0
    %v2173 = vadd.f32 %v1863, %v2172
    %v2174 = vpop.f32.mrf.mxu0
    %2175 = vmatprep.mubr.f32.mxu0 0.0
    %2176 = vmatmul.mubr.f32.gmra.mxu0 %v1966
    %v2177 = vpop.f32.mrf.mxu0
    %v2178 = vadd.f32 %v1863, %v2177
    %v2179 = vpop.f32.mrf.mxu0
    %2180 = vmatprep.mubr.f32.mxu0 0.0
    %2181 = vmatmul.mubr.f32.gmra.mxu0 %v1969
    %v2182 = vpop.f32.mrf.mxu0
    %v2183 = vadd.f32 %v1863, %v2182
    %v2184 = vpop.f32.mrf.mxu0
    %2185 = vmatprep.mubr.f32.mxu0 0.0
    %2186 = vmatmul.mubr.f32.gmra.mxu0 %v1972
    %v2187 = vpop.f32.mrf.mxu0
    %v2188 = vadd.f32 %v1863, %v2187
    %v2189 = vpop.f32.mrf.mxu0
    %2190 = vmatprep.mubr.f32.mxu0 0.0
    %2191 = vmatmul.mubr.f32.gmra.mxu0 %v1975
    %v2192 = vpop.f32.mrf.mxu0
    %v2193 = vadd.f32 %v1863, %v2192
    %v2194 = vpop.f32.mrf.mxu0
    %2195 = vmatprep.mubr.f32.mxu0 0.0
    %2196 = vmatmul.mubr.f32.gmra.mxu0 %v1978
    %v2197 = vpop.f32.mrf.mxu0
    %v2198 = vadd.f32 %v1863, %v2197
    %v2199 = vpop.f32.mrf.mxu0
    %2200 = vmatprep.mubr.f32.mxu0 0.0
    %2201 = vmatmul.mubr.f32.gmra.mxu0 %v1981
    %v2202 = vpop.f32.mrf.mxu0
    %v2203 = vadd.f32 %v1863, %v2202
    %v2204 = vpop.f32.mrf.mxu0
    %2205 = vmatprep.mubr.f32.mxu0 0.0
    %2206 = vmatmul.mubr.f32.gmra.mxu0 %v1984
    %v2207 = vpop.f32.mrf.mxu0
    %v2208 = vadd.f32 %v1863, %v2207
    %v2209 = vpop.f32.mrf.mxu0
    %2210 = vmatprep.mubr.f32.mxu0 0.0
    %2211 = vmatmul.mubr.f32.gmra.mxu0 %v1987
    %v2212 = vpop.f32.mrf.mxu0
    %v2213 = vadd.f32 %v1863, %v2212
    %v2214 = vpop.f32.mrf.mxu0
    %2215 = vmatprep.mubr.f32.mxu0 0.0
    %2216 = vmatmul.mubr.f32.gmra.mxu0 %v1990
    %v2217 = vpop.f32.mrf.mxu0
    %v2218 = vadd.f32 %v1863, %v2217
    %v2219 = vpop.f32.mrf.mxu0
    %2220 = vmatprep.mubr.f32.mxu0 0.0
    %2221 = vmatmul.mubr.f32.gmra.mxu0 %v1993
    %v2222 = vpop.f32.mrf.mxu0
    %v2223 = vadd.f32 %v1863, %v2222
    %v2224 = vpop.f32.mrf.mxu0
    %2225 = vmatprep.mubr.f32.mxu0 0.0
    %2226 = vmatmul.mubr.f32.gmra.mxu0 %v1996
    %v2227 = vpop.f32.mrf.mxu0
    %v2228 = vadd.f32 %v1863, %v2227
    %v2229 = vpop.f32.mrf.mxu0
    %2230 = vmatprep.mubr.f32.mxu0 0.0
    %2231 = vmatmul.mubr.f32.gmra.mxu0 %v1999
    %v2232 = vpop.f32.mrf.mxu0
    %v2233 = vadd.f32 %v1863, %v2232
    %v2234 = vpop.f32.mrf.mxu0
    %2235 = vmatprep.mubr.f32.mxu0 0.0
    %2236 = vmatmul.mubr.f32.gmra.mxu0 %v2002
    %v2237 = vpop.f32.mrf.mxu0
    %v2238 = vadd.f32 %v1863, %v2237
    %v2239 = vpop.f32.mrf.mxu0
    %2240 = vmatprep.mubr.f32.mxu0 0.0
    %2241 = vmatmul.mubr.f32.gmra.mxu0 %v2005
    %v2242 = vpop.f32.mrf.mxu0
    %v2243 = vadd.f32 %v1863, %v2242
    %v2244 = vpop.f32.mrf.mxu0
    %2245 = vmatprep.mubr.f32.mxu0 0.0
    %2246 = vmatmul.mubr.f32.gmra.mxu0 %v2008
    %v2247 = vpop.f32.mrf.mxu0
    %v2248 = vadd.f32 %v1863, %v2247
    %v2249 = vpop.f32.mrf.mxu0
    %2250 = vmatprep.mubr.f32.mxu0 0.0
    %2251 = vmatmul.mubr.f32.gmra.mxu0 %v2011
    %v2252 = vpop.f32.mrf.mxu0
    %v2253 = vadd.f32 %v1863, %v2252
    %v2254 = vpop.f32.mrf.mxu0
    %2255 = vmatprep.mubr.f32.mxu0 0.0
    %2256 = vmatmul.mubr.f32.gmra.mxu0 %v2014
    %v2257 = vpop.f32.mrf.mxu0
    %v2258 = vadd.f32 %v1863, %v2257
    %v2259 = vpop.f32.mrf.mxu0
    %2260 = vmatprep.mubr.f32.mxu0 0.0
    %2261 = vmatmul.mubr.f32.gmra.mxu0 %v2017
    %v2262 = vpop.f32.mrf.mxu0
    %v2263 = vadd.f32 %v1863, %v2262
    %v2264 = vpop.f32.mrf.mxu0
    %2265 = vmatprep.mubr.f32.mxu0 0.0
    %2266 = vmatmul.mubr.f32.gmra.mxu0 %v2020
    %v2267 = vpop.f32.mrf.mxu0
    %v2268 = vadd.f32 %v1863, %v2267
    %v2269 = vpop.f32.mrf.mxu0
    %2270 = vmatprep.mubr.f32.mxu0 0.0
    %2271 = vmatmul.mubr.f32.gmra.mxu0 %v2023
    %v2272 = vpop.f32.mrf.mxu0
    %v2273 = vadd.f32 %v1863, %v2272
    %v2274 = vpop.f32.mrf.mxu0
    %2275 = vmatprep.mubr.f32.mxu0 0.0
    %2276 = vmatmul.mubr.f32.gmra.mxu0 %v2026
    %v2277 = vpop.f32.mrf.mxu0
    %v2278 = vadd.f32 %v1863, %v2277
    %v2279 = vpop.f32.mrf.mxu0
    %2280 = vmatprep.mubr.f32.mxu0 0.0
    %2281 = vmatmul.mubr.f32.gmra.mxu0 %v2029
    %v2282 = vpop.f32.mrf.mxu0
    %v2283 = vadd.f32 %v1863, %v2282
    %v2284 = vpop.f32.mrf.mxu0
    %2285 = vmatprep.mubr.f32.mxu0 0.0
    %2286 = vmatmul.mubr.f32.gmra.mxu0 %v2032
    %v2287 = vpop.f32.mrf.mxu0
    %v2288 = vadd.f32 %v1863, %v2287
    %v2289 = vpop.f32.mrf.mxu0
    %2290 = vmatprep.mubr.f32.mxu0 0.0
    %2291 = vmatmul.mubr.f32.gmra.mxu0 %v2035
    %v2292 = vpop.f32.mrf.mxu0
    %v2293 = vadd.f32 %v1863, %v2292
    %v2294 = vpop.f32.mrf.mxu0
    %2295 = vmatprep.mubr.f32.mxu0 0.0
    %2296 = vmatmul.mubr.f32.gmra.mxu0 %v2038
    %v2297 = vpop.f32.mrf.mxu0
    %v2298 = vadd.f32 %v1863, %v2297
    %v2299 = vpop.f32.mrf.mxu0
    %2300 = vmatprep.mubr.f32.mxu0 0.0
    %2301 = vmatmul.mubr.f32.gmra.mxu0 %v2041
    %v2302 = vpop.f32.mrf.mxu0
    %v2303 = vadd.f32 %v1863, %v2302
    %v2304 = vpop.f32.mrf.mxu0
    %2305 = vmatprep.mubr.f32.mxu0 0.0
    %2306 = vmatmul.mubr.f32.gmra.mxu0 %v2044
    %v2307 = vpop.f32.mrf.mxu0
    %v2308 = vadd.f32 %v1863, %v2307
    %v2309 = vpop.f32.mrf.mxu0
    %2310 = vmatprep.mubr.f32.mxu0 0.0
    %2311 = vmatmul.mubr.f32.gmra.mxu0 %v2047
    %v2312 = vpop.f32.mrf.mxu0
    %v2313 = vadd.f32 %v1863, %v2312
    %v2314 = vpop.f32.mrf.mxu0
    %2315 = vmatprep.mubr.f32.mxu0 0.0
    %2316 = vmatmul.mubr.f32.gmra.mxu0 %v2050
    %v2317 = vpop.f32.mrf.mxu0
    %v2318 = vadd.f32 %v1863, %v2317
    %v2319 = vpop.f32.mrf.mxu0
    %2320 = vmatprep.mubr.f32.mxu0 0.0
    %2321 = vmatmul.mubr.f32.gmra.mxu0 %v2053
    %v2322 = vpop.f32.mrf.mxu0
    %v2323 = vadd.f32 %v1863, %v2322
    %v2324 = vpop.f32.mrf.mxu0
    %2325 = vmatprep.mubr.f32.mxu0 0.0
    %2326 = vmatmul.mubr.f32.gmra.mxu0 %v2056
    %v2327 = vpop.f32.mrf.mxu0
    %v2328 = vadd.f32 %v1863, %v2327
    %v2329 = vpop.f32.mrf.mxu0
    %2330 = vmatprep.mubr.f32.mxu0 0.0
    %2331 = vmatmul.mubr.f32.gmra.mxu0 %v2059
    %v2332 = vpop.f32.mrf.mxu0
    %v2333 = vadd.f32 %v1863, %v2332
    %v2334 = vpop.f32.mrf.mxu0
    %2335 = vmatprep.mubr.f32.mxu0 0.0
    %2336 = vmatmul.mubr.f32.gmra.mxu0 %v2062
    %v2337 = vpop.f32.mrf.mxu0
    %v2338 = vadd.f32 %v1863, %v2337
    %v2339 = vpop.f32.mrf.mxu0
    %2340 = vmatprep.mubr.f32.mxu0 0.0
    %2341 = vmatmul.mubr.f32.gmra.mxu0 %v2065
    %v2342 = vpop.f32.mrf.mxu0
    %v2343 = vadd.f32 %v1863, %v2342
    %v2344 = vpop.f32.mrf.mxu0
    %2345 = vmatprep.mubr.f32.mxu0 0.0
    %2346 = vmatmul.mubr.f32.gmra.mxu0 %v2068
    %v2347 = vpop.f32.mrf.mxu0
    %v2348 = vadd.f32 %v1863, %v2347
    %v2349 = vpop.f32.mrf.mxu0
    %2350 = vmatprep.mubr.f32.mxu0 0.0
    %2351 = vmatmul.mubr.f32.gmra.mxu0 %v2071
    %v2352 = vpop.f32.mrf.mxu0
    %v2353 = vadd.f32 %v1863, %v2352
    %v2354 = vpop.f32.mrf.mxu0
    %2355 = vmatprep.mubr.f32.mxu0 0.0
    %2356 = vmatmul.mubr.f32.gmra.mxu0 %v2074
    %v2357 = vpop.f32.mrf.mxu0
    %v2358 = vadd.f32 %v1863, %v2357
    %v2359 = vpop.f32.mrf.mxu0
    %2360 = vmatprep.mubr.f32.mxu0 0.0
    %2361 = vmatmul.mubr.f32.gmra.mxu0 %v2077
    %v2362 = vpop.f32.mrf.mxu0
    %v2363 = vadd.f32 %v1863, %v2362
    %v2364 = vpop.f32.mrf.mxu0
    %2365 = vmatprep.mubr.f32.mxu0 0.0
    %2366 = vmatmul.mubr.f32.gmra.mxu0 %v2080
    %v2367 = vpop.f32.mrf.mxu0
    %v2368 = vadd.f32 %v1863, %v2367
    %v2369 = vpop.f32.mrf.mxu0
    %2370 = vmatprep.mubr.f32.mxu0 0.0
    %2371 = vmatmul.mubr.f32.gmra.mxu0 %v2083
    %v2372 = vpop.f32.mrf.mxu0
    %v2373 = vadd.f32 %v1863, %v2372
    %v2374 = vpop.f32.mrf.mxu0
    %2375 = vmatprep.mubr.f32.mxu0 0.0
    %2376 = vmatmul.mubr.f32.gmra.mxu0 %v2086
    %v2377 = vpop.f32.mrf.mxu0
    %v2378 = vadd.f32 %v1863, %v2377
    %v2379 = vpop.f32.mrf.mxu0
    %2380 = vmatprep.mubr.f32.mxu0 0.0
    %2381 = vmatmul.mubr.f32.gmra.mxu0 %v2089
    %v2382 = vpop.f32.mrf.mxu0
    %v2383 = vadd.f32 %v1863, %v2382
    %v2384 = vpop.f32.mrf.mxu0
    %2385 = vmatprep.mubr.f32.mxu0 0.0
    %2386 = vmatmul.mubr.f32.gmra.mxu0 %v2092
    %v2387 = vpop.f32.mrf.mxu0
    %v2388 = vadd.f32 %v1863, %v2387
    %v2389 = vpop.f32.mrf.mxu0
    %2390 = vmatprep.mubr.f32.mxu0 0.0
    %2391 = vmatmul.mubr.f32.gmra.mxu0 %v2095
    %v2392 = vpop.f32.mrf.mxu0
    %v2393 = vadd.f32 %v1863, %v2392
    %v2394 = vpop.f32.mrf.mxu0
    %2395 = vmatprep.mubr.f32.mxu0 0.0
    %2396 = vmatmul.mubr.f32.gmra.mxu0 %v2098
    %v2397 = vpop.f32.mrf.mxu0
    %v2398 = vadd.f32 %v1863, %v2397
    %v2399 = vpop.f32.mrf.mxu0
    %2400 = vmatprep.mubr.f32.mxu0 0.0
    %2401 = vmatmul.mubr.f32.gmra.mxu0 %v2101
    %v2402 = vpop.f32.mrf.mxu0
    %v2403 = vadd.f32 %v1863, %v2402
    %v2404 = vpop.f32.mrf.mxu0
    %2405 = vmatprep.mubr.f32.mxu0 0.0
    %2406 = vmatmul.mubr.f32.gmra.mxu0 %v2104
    %v2407 = vpop.f32.mrf.mxu0
    %v2408 = vadd.f32 %v1863, %v2407
    %v2409 = vpop.f32.mrf.mxu0
    %2410 = vdwg.mxu0
    %v2411 = vmax.f32 %v2173, 0.0
    %v2412 = vmax.f32 %v2178, 0.0
    %v2413 = vmax.f32 %v2183, 0.0
    %v2414 = vmax.f32 %v2188, 0.0
    %v2415 = vmax.f32 %v2193, 0.0
    %v2416 = vmax.f32 %v2198, 0.0
    %v2417 = vmax.f32 %v2203, 0.0
    %v2418 = vmax.f32 %v2208, 0.0
    %v2419 = vmax.f32 %v2213, 0.0
    %v2420 = vmax.f32 %v2218, 0.0
    %v2421 = vmax.f32 %v2223, 0.0
    %v2422 = vmax.f32 %v2228, 0.0
    %v2423 = vmax.f32 %v2233, 0.0
    %v2424 = vmax.f32 %v2238, 0.0
    %v2425 = vmax.f32 %v2243, 0.0
    %v2426 = vmax.f32 %v2248, 0.0
    %v2427 = vmax.f32 %v2253, 0.0
    %v2428 = vmax.f32 %v2258, 0.0
    %v2429 = vmax.f32 %v2263, 0.0
    %v2430 = vmax.f32 %v2268, 0.0
    %v2431 = vmax.f32 %v2273, 0.0
    %v2432 = vmax.f32 %v2278, 0.0
    %v2433 = vmax.f32 %v2283, 0.0
    %v2434 = vmax.f32 %v2288, 0.0
    %v2435 = vmax.f32 %v2293, 0.0
    %v2436 = vmax.f32 %v2298, 0.0
    %v2437 = vmax.f32 %v2303, 0.0
    %v2438 = vmax.f32 %v2308, 0.0
    %v2439 = vmax.f32 %v2313, 0.0
    %v2440 = vmax.f32 %v2318, 0.0
    %v2441 = vmax.f32 %v2323, 0.0
    %v2442 = vmax.f32 %v2328, 0.0
    %v2443 = vmax.f32 %v2333, 0.0
    %v2444 = vmax.f32 %v2338, 0.0
    %v2445 = vmax.f32 %v2343, 0.0
    %v2446 = vmax.f32 %v2348, 0.0
    %v2447 = vmax.f32 %v2353, 0.0
    %v2448 = vmax.f32 %v2358, 0.0
    %v2449 = vmax.f32 %v2363, 0.0
    %v2450 = vmax.f32 %v2368, 0.0
    %v2451 = vmax.f32 %v2373, 0.0
    %v2452 = vmax.f32 %v2378, 0.0
    %v2453 = vmax.f32 %v2383, 0.0
    %v2454 = vmax.f32 %v2388, 0.0
    %v2455 = vmax.f32 %v2393, 0.0
    %v2456 = vmax.f32 %v2398, 0.0
    %v2457 = vmax.f32 %v2403, 0.0
    %v2458 = vmax.f32 %v2408, 0.0
    %v2459 = vld [vmem:[%s6] sm:$0x1]
    %s2460 = sld [smem:[#allocation3]]
    %v2461 = vstv %s2460
    %v2463 = vsel %vm1961, %v2459, 0
    %v2466 = vsel %vm1961, %v2411, 0
    %v2469 = vsel %vm1961, %v2412, 0
    %v2472 = vsel %vm1961, %v2413, 0
    %v2475 = vsel %vm1961, %v2414, 0
    %v2478 = vsel %vm1961, %v2415, 0
    %v2481 = vsel %vm1961, %v2416, 0
    %v2484 = vsel %vm1961, %v2417, 0
    %v2487 = vsel %vm1961, %v2418, 0
    %v2490 = vsel %vm1961, %v2419, 0
    %v2493 = vsel %vm1961, %v2420, 0
    %v2496 = vsel %vm1961, %v2421, 0
    %v2499 = vsel %vm1961, %v2422, 0
    %v2502 = vsel %vm1961, %v2423, 0
    %v2505 = vsel %vm1961, %v2424, 0
    %v2508 = vsel %vm1961, %v2425, 0
    %v2511 = vsel %vm1961, %v2426, 0
    %v2514 = vsel %vm1961, %v2427, 0
    %v2517 = vsel %vm1961, %v2428, 0
    %v2520 = vsel %vm1961, %v2429, 0
    %v2523 = vsel %vm1961, %v2430, 0
    %v2526 = vsel %vm1961, %v2431, 0
    %v2529 = vsel %vm1961, %v2432, 0
    %v2532 = vsel %vm1961, %v2433, 0
    %v2535 = vsel %vm1961, %v2434, 0
    %v2538 = vsel %vm1961, %v2435, 0
    %v2541 = vsel %vm1961, %v2436, 0
    %v2544 = vsel %vm1961, %v2437, 0
    %v2547 = vsel %vm1961, %v2438, 0
    %v2550 = vsel %vm1961, %v2439, 0
    %v2553 = vsel %vm1961, %v2440, 0
    %v2556 = vsel %vm1961, %v2441, 0
    %v2559 = vsel %vm1961, %v2442, 0
    %v2562 = vsel %vm1961, %v2443, 0
    %v2565 = vsel %vm1961, %v2444, 0
    %v2568 = vsel %vm1961, %v2445, 0
    %v2571 = vsel %vm1961, %v2446, 0
    %v2574 = vsel %vm1961, %v2447, 0
    %v2577 = vsel %vm1961, %v2448, 0
    %v2580 = vsel %vm1961, %v2449, 0
    %v2583 = vsel %vm1961, %v2450, 0
    %v2586 = vsel %vm1961, %v2451, 0
    %v2589 = vsel %vm1961, %v2452, 0
    %v2592 = vsel %vm1961, %v2453, 0
    %v2595 = vsel %vm1961, %v2454, 0
    %v2598 = vsel %vm1961, %v2455, 0
    %v2601 = vsel %vm1961, %v2456, 0
    %v2604 = vsel %vm1961, %v2457, 0
    %v2607 = vsel %vm1961, %v2458, 0
    %2609 = vmatprep.subr.mxu0 0.0
    %2610 = vmatpush1.xpose.msra.mxu0 %v2511
    %2611 = vmatprep.subr.mxu0 0.0
    %2612 = vmatpush1.xpose.msra.mxu0 %v2508
    %2613 = vmatprep.subr.mxu0 0.0
    %2614 = vmatpush1.xpose.msra.mxu0 %v2505
    %2615 = vmatprep.subr.mxu0 0.0
    %2616 = vmatpush1.xpose.msra.mxu0 %v2502
    %2617 = vmatprep.subr.mxu0 0.0
    %2618 = vmatpush1.xpose.msra.mxu0 %v2499
    %2619 = vmatprep.subr.mxu0 0.0
    %2620 = vmatpush1.xpose.msra.mxu0 %v2496
    %2621 = vmatprep.subr.mxu0 0.0
    %2622 = vmatpush1.xpose.msra.mxu0 %v2493
    %2623 = vmatprep.subr.mxu0 0.0
    %2624 = vmatpush1.xpose.msra.mxu0 %v2490
    %2625 = vmatprep.subr.mxu0 0.0
    %2626 = vmatpush1.xpose.msra.mxu0 %v2487
    %2627 = vmatprep.subr.mxu0 0.0
    %2628 = vmatpush1.xpose.msra.mxu0 %v2484
    %2629 = vmatprep.subr.mxu0 0.0
    %2630 = vmatpush1.xpose.msra.mxu0 %v2481
    %2631 = vmatprep.subr.mxu0 0.0
    %2632 = vmatpush1.xpose.msra.mxu0 %v2478
    %2633 = vmatprep.subr.mxu0 0.0
    %2634 = vmatpush1.xpose.msra.mxu0 %v2475
    %2635 = vmatprep.subr.mxu0 0.0
    %2636 = vmatpush1.xpose.msra.mxu0 %v2472
    %2637 = vmatprep.subr.mxu0 0.0
    %2638 = vmatpush1.xpose.msra.mxu0 %v2469
    %2639 = vmatprep.subr.mxu0 0.0
    %2640 = vmatpush1.xpose.msra.mxu0 %v2466
    %2641 = vmatprep.subr.mxu0 0.0
    %2642 = vmatpush2.xpose.msra.mxu0 %v2559
    %2643 = vmatprep.subr.mxu0 0.0
    %2644 = vmatpush2.xpose.msra.mxu0 %v2556
    %2645 = vmatprep.subr.mxu0 0.0
    %2646 = vmatpush2.xpose.msra.mxu0 %v2553
    %2647 = vmatprep.subr.mxu0 0.0
    %2648 = vmatpush2.xpose.msra.mxu0 %v2550
    %2649 = vmatprep.subr.mxu0 0.0
    %2650 = vmatpush2.xpose.msra.mxu0 %v2547
    %2651 = vmatprep.subr.mxu0 0.0
    %2652 = vmatpush2.xpose.msra.mxu0 %v2544
    %2653 = vmatprep.subr.mxu0 0.0
    %2654 = vmatpush2.xpose.msra.mxu0 %v2541
    %2655 = vmatprep.subr.mxu0 0.0
    %2656 = vmatpush2.xpose.msra.mxu0 %v2538
    %2657 = vmatprep.subr.mxu0 0.0
    %2658 = vmatpush2.xpose.msra.mxu0 %v2535
    %2659 = vmatprep.subr.mxu0 0.0
    %2660 = vmatpush2.xpose.msra.mxu0 %v2532
    %2661 = vmatprep.subr.mxu0 0.0
    %2662 = vmatpush2.xpose.msra.mxu0 %v2529
    %2663 = vmatprep.subr.mxu0 0.0
    %2664 = vmatpush2.xpose.msra.mxu0 %v2526
    %2665 = vmatprep.subr.mxu0 0.0
    %2666 = vmatpush2.xpose.msra.mxu0 %v2523
    %2667 = vmatprep.subr.mxu0 0.0
    %2668 = vmatpush2.xpose.msra.mxu0 %v2520
    %2669 = vmatprep.subr.mxu0 0.0
    %2670 = vmatpush2.xpose.msra.mxu0 %v2517
    %2671 = vmatprep.subr.mxu0 0.0
    %2672 = vmatpush2.xpose.msra.mxu0 %v2514
    %2673 = vmatprep.mubr.f32.mxu0 0.0
    %2674 = vmatmul.mubr.f32.gmra.mxu0 %v2463
    %v2675 = vpop.f32.mrf.mxu0
    %v2676 = vadd.f32 %v2461, %v2675
    %v2677 = vpop.f32.mrf.mxu0
    %v2678 = vadd.f32 %v2461, %v2677
    %2679 = vdwg.mxu0
    %2680 = vmatprep.subr.mxu0 0.0
    %2681 = vmatpush1.xpose.msra.mxu0 %v2607
    %2682 = vmatprep.subr.mxu0 0.0
    %2683 = vmatpush1.xpose.msra.mxu0 %v2604
    %2684 = vmatprep.subr.mxu0 0.0
    %2685 = vmatpush1.xpose.msra.mxu0 %v2601
    %2686 = vmatprep.subr.mxu0 0.0
    %2687 = vmatpush1.xpose.msra.mxu0 %v2598
    %2688 = vmatprep.subr.mxu0 0.0
    %2689 = vmatpush1.xpose.msra.mxu0 %v2595
    %2690 = vmatprep.subr.mxu0 0.0
    %2691 = vmatpush1.xpose.msra.mxu0 %v2592
    %2692 = vmatprep.subr.mxu0 0.0
    %2693 = vmatpush1.xpose.msra.mxu0 %v2589
    %2694 = vmatprep.subr.mxu0 0.0
    %2695 = vmatpush1.xpose.msra.mxu0 %v2586
    %2696 = vmatprep.subr.mxu0 0.0
    %2697 = vmatpush1.xpose.msra.mxu0 %v2583
    %2698 = vmatprep.subr.mxu0 0.0
    %2699 = vmatpush1.xpose.msra.mxu0 %v2580
    %2700 = vmatprep.subr.mxu0 0.0
    %2701 = vmatpush1.xpose.msra.mxu0 %v2577
    %2702 = vmatprep.subr.mxu0 0.0
    %2703 = vmatpush1.xpose.msra.mxu0 %v2574
    %2704 = vmatprep.subr.mxu0 0.0
    %2705 = vmatpush1.xpose.msra.mxu0 %v2571
    %2706 = vmatprep.subr.mxu0 0.0
    %2707 = vmatpush1.xpose.msra.mxu0 %v2568
    %2708 = vmatprep.subr.mxu0 0.0
    %2709 = vmatpush1.xpose.msra.mxu0 %v2565
    %2710 = vmatprep.subr.mxu0 0.0
    %2711 = vmatpush1.xpose.msra.mxu0 %v2562
    %2712 = vmatprep.subr.mxu0 0.0
    %2713 = vmatpush2.xpose.msra.mxu0 0.0
    %2714 = vmatprep.subr.mxu0 0.0
    %2715 = vmatpush2.xpose.msra.mxu0 0.0
    %2716 = vmatprep.subr.mxu0 0.0
    %2717 = vmatpush2.xpose.msra.mxu0 0.0
    %2718 = vmatprep.subr.mxu0 0.0
    %2719 = vmatpush2.xpose.msra.mxu0 0.0
    %2720 = vmatprep.subr.mxu0 0.0
    %2721 = vmatpush2.xpose.msra.mxu0 0.0
    %2722 = vmatprep.subr.mxu0 0.0
    %2723 = vmatpush2.xpose.msra.mxu0 0.0
    %2724 = vmatprep.subr.mxu0 0.0
    %2725 = vmatpush2.xpose.msra.mxu0 0.0
    %2726 = vmatprep.subr.mxu0 0.0
    %2727 = vmatpush2.xpose.msra.mxu0 0.0
    %2728 = vmatprep.subr.mxu0 0.0
    %2729 = vmatpush2.xpose.msra.mxu0 0.0
    %2730 = vmatprep.subr.mxu0 0.0
    %2731 = vmatpush2.xpose.msra.mxu0 0.0
    %2732 = vmatprep.subr.mxu0 0.0
    %2733 = vmatpush2.xpose.msra.mxu0 0.0
    %2734 = vmatprep.subr.mxu0 0.0
    %2735 = vmatpush2.xpose.msra.mxu0 0.0
    %2736 = vmatprep.subr.mxu0 0.0
    %2737 = vmatpush2.xpose.msra.mxu0 0.0
    %2738 = vmatprep.subr.mxu0 0.0
    %2739 = vmatpush2.xpose.msra.mxu0 0.0
    %2740 = vmatprep.subr.mxu0 0.0
    %2741 = vmatpush2.xpose.msra.mxu0 0.0
    %2742 = vmatprep.subr.mxu0 0.0
    %2743 = vmatpush2.xpose.msra.mxu0 0.0
    %2744 = vmatprep.mubr.f32.mxu0 0.0
    %2745 = vmatmul.mubr.f32.gmra.mxu0 %v2463
    %v2746 = vpop.f32.mrf.mxu0
    %v2747 = vadd.f32 %v2461, %v2746
    %v2748 = vpop.f32.mrf.mxu0
    %2749 = vdwg.mxu0
    %v2753 = vcombine.low %v2676, %v2678
    %v2755 = vunpack.c.l.s4 1966171168
    %v2756 = vunpack.c.0.s8 %v2755
    %v2757 = vlaneseq
    %v2758 = vshrl.u32 %v2757, 7
    %v2759 = vsub.s32 %v2756, %v2758
    %v2760 = vrot.slane %v2753, %v2759
    %v2762 = vunpack.c.l.s4 1966171168
    %v2763 = vunpack.c.0.s8 %v2762
    %v2764 = vlaneseq
    %v2765 = vshrl.u32 %v2764, 7
    %v2766 = vsub.s32 %v2763, %v2765
    %v2767 = vrot.slane %v2747, %v2766
    %v2768 = vcombine.low %v2760, %v2767
    %v2770 = vunpack.c.l.s4 1966171168
    %v2771 = vunpack.c.0.s8 %v2770
    %v2772 = vlaneseq
    %v2773 = vshrl.u32 %v2772, 7
    %v2774 = vsub.s32 %v2771, %v2773
    %v2775 = vrot.slane %v2768, %v2774
    %v2777 = vlaneseq
    %vm2778 = vcmp.ge.s32.totalorder %v2777, 0
    %vm2779 = vcmp.lt.s32.totalorder %v2777, 384
    %vm2780 = vmand %vm2778, %vm2779
    %2781 = vst.msk [vmem:[#allocation7] sm:$0x7] %vm2780, %v2775
    // Predicated region
    $region46: #{tpu_custom_call.1} parent=1 // pred_check
      _
    $region47: #{tpu_custom_call.1} parent=1 // pred_check_branch
      %2783 = sbr.rel (0) target = $region49
    $region48: #{tpu_custom_call.1} parent=1 // pred_region
      %s2784 = sadd.s32 0, 0
      %s2785 = smul.u32 3, %s2784
      %s2787 = ssub.s32 48, 48
      %2788 = vsyncadd [#allocation6], %s2787
      %s2789 = smul.addr %s2785, 16
      %s2790 = scalar_lea.hbm %s9, %s2789
      %s2792 = sshll.u32 [#allocation7], 4
      %s2793 = int_to_ptr.vmem [resolvable:$true] %s2792
      %2795 = dma.vmem_to_hbm [thread:$0]  %s2793, 48, %s2790, [#allocation6]
    $region49: #{tpu_custom_call.1} parent=1 // pred_fallthru
      _
    // Predicated region
    $region50: #{tpu_custom_call.1} parent=1 // pred_check
      _
    $region51: #{tpu_custom_call.1} parent=1 // pred_check_branch
      %2797 = sbr.rel (0) target = $region53
    $region52: #{tpu_custom_call.1} parent=1 // pred_region
      %2798 = dma.done [#allocation6], 48
    $region53: #{tpu_custom_call.1} parent=1 // pred_fallthru
      _
    %2799 = vsyncpa [#allocation5], 1
    %2800 = vsyncpa [#allocation6], 1

// kernel: tpu_custom_call.1
$region0: #{tpu_custom_call.1}
  #allocation0 [shape = 'u32[]', space=smem, size = 0x4, offset = 0x4, fixed_abs, tag = 'smem constant byte address 0x4 - core index']
  #allocation1 [shape = 'u32[144,128]{1,0:T(1,128)}', space=vmem, size = 0x12000, scoped, tag = 'internal scratch']
  #allocation2 [shape = 'f32[32,32]{1,0:T(8,128)}', space=vmem, size = 0x4000, scoped, tag = 'scratch operand']
  #allocation3 [shape = 'f32[1,1]{1,0:T(1,128)S(6)}', space=smem, size = 0x200, scoped, tag = 'scoped memory for tpu_custom_call.1']
  %s0 = inlined_call_operand.vmem [shape: f32[16,8], index: 0, kind: input, shape index: {}]
  %s1 = inlined_call_operand.vmem [shape: f32[16,4], index: 1, kind: input, shape index: {}]
  %s2 = inlined_call_operand.vmem [shape: f32[8,4,32], index: 2, kind: input, shape index: {}]
  %s3 = inlined_call_operand.hbm [shape: f32[8,32,32], index: 3, kind: input, shape index: {}]
  %s4 = inlined_call_operand.vmem [shape: f32[64,32], index: 4, kind: input, shape index: {}]
  %s5 = inlined_call_operand.vmem [shape: f32[1,32], index: 5, kind: input, shape index: {}]
  %s6 = inlined_call_operand.vmem [shape: f32[1,32], index: 6, kind: input, shape index: {}]
  %s7 = inlined_call_operand.<no memory space> [shape: f32[1,1], index: 7, kind: input, shape index: {}]
  %s8 = inlined_call_operand.vmem [shape: s32[2,384], index: 8, kind: input, shape index: {}]
  %s9 = inlined_call_operand.hbm [shape: f32[1,384], index: 9, kind: output, shape index: {}]
  %s10 = sld [smem:[#allocation0]]
  $region54: #{tpu_custom_call.1} parent=0
    _
  %s12 = ssub.s32 1, %s10
  %s13 = scalar_select 0, %s12, %s10
  %14 = sst [smem:[#allocation3]] %s7
  $region1: #{tpu_custom_call.1} parent=0
    #allocation4 [shape = 'u8[131072]{0}', space=vmem, size = 0x20000, scoped, tag = 'input window, operand 3, single buffered']
    #allocation5 [shape = 's32[1]{0}', space=sflag, size = 0x4, scoped, tag = 'scoped memory for tpu_custom_call.1']
    #allocation6 [shape = 's32[1]{0}', space=sflag, size = 0x4, scoped, tag = 'scoped memory for tpu_custom_call.1']
    #allocation7 [shape = 'u8[1536]{0}', space=vmem, size = 0x800, scoped, tag = 'output window, operand 0, single buffered']
    %15 = vsyncpa [#allocation5], 0
    %16 = vsyncpa [#allocation6], 0
    // Predicated region
    $region2: #{tpu_custom_call.1} parent=1 // pred_check
      _
    $region3: #{tpu_custom_call.1} parent=1 // pred_check_branch
      %18 = sbr.rel (0) target = $region5
    $region4: #{tpu_custom_call.1} parent=1 // pred_region
      _
    $region5: #{tpu_custom_call.1} parent=1 // pred_fallthru
      _
    // Predicated region
    $region6: #{tpu_custom_call.1} parent=1 // pred_check
      _
    $region7: #{tpu_custom_call.1} parent=1 // pred_check_branch
      %20 = sbr.rel (0) target = $region9
    $region8: #{tpu_custom_call.1} parent=1 // pred_region
      _
    $region9: #{tpu_custom_call.1} parent=1 // pred_fallthru
      _
    // Predicated region
    $region10: #{tpu_custom_call.1} parent=1 // pred_check
      _
    $region11: #{tpu_custom_call.1} parent=1 // pred_check_branch
      %22 = sbr.rel (0) target = $region13
    $region12: #{tpu_custom_call.1} parent=1 // pred_region
      _
    $region13: #{tpu_custom_call.1} parent=1 // pred_fallthru
      _
    // Predicated region
    $region14: #{tpu_custom_call.1} parent=1 // pred_check
      _
    $region15: #{tpu_custom_call.1} parent=1 // pred_check_branch
      %24 = sbr.rel (0) target = $region17
    $region16: #{tpu_custom_call.1} parent=1 // pred_region
      %s26 = ssub.s32 4096, 4096
      %27 = vsyncadd [#allocation5], %s26
      %s28 = sshll.u32 [#allocation4], 4
      %s29 = int_to_ptr.vmem [resolvable:$true] %s28
      %34 = dma.hbm_to_vmem [thread:$0]  %s3, 4096, %s29, [#allocation5], 128, 128, 8
    $region17: #{tpu_custom_call.1} parent=1 // pred_fallthru
      _
    // Predicated region
    $region18: #{tpu_custom_call.1} parent=1 // pred_check
      _
    $region19: #{tpu_custom_call.1} parent=1 // pred_check_branch
      %36 = sbr.rel (0) target = $region21
    $region20: #{tpu_custom_call.1} parent=1 // pred_region
      _
    $region21: #{tpu_custom_call.1} parent=1 // pred_fallthru
      _
    // Predicated region
    $region22: #{tpu_custom_call.1} parent=1 // pred_check
      _
    $region23: #{tpu_custom_call.1} parent=1 // pred_check_branch
      %38 = sbr.rel (0) target = $region25
    $region24: #{tpu_custom_call.1} parent=1 // pred_region
      _
    $region25: #{tpu_custom_call.1} parent=1 // pred_fallthru
      _
    // Predicated region
    $region26: #{tpu_custom_call.1} parent=1 // pred_check
      _
    $region27: #{tpu_custom_call.1} parent=1 // pred_check_branch
      %40 = sbr.rel (0) target = $region29
    $region28: #{tpu_custom_call.1} parent=1 // pred_region
      _
    $region29: #{tpu_custom_call.1} parent=1 // pred_fallthru
      _
    // Predicated region
    $region30: #{tpu_custom_call.1} parent=1 // pred_check
      _
    $region31: #{tpu_custom_call.1} parent=1 // pred_check_branch
      %42 = sbr.rel (0) target = $region33
    $region32: #{tpu_custom_call.1} parent=1 // pred_region
      _
    $region33: #{tpu_custom_call.1} parent=1 // pred_fallthru
      _
    // Predicated region
    $region34: #{tpu_custom_call.1} parent=1 // pred_check
      _
    $region35: #{tpu_custom_call.1} parent=1 // pred_check_branch
      %44 = sbr.rel (0) target = $region37
    $region36: #{tpu_custom_call.1} parent=1 // pred_region
      %s45 = sadd.s32 0, 0
      %s46 = smul.u32 3, %s45
      %p47 = scmp.lt.s32.totalorder %s46, 2
      %s48 = scalar_select %p47, %s46, 2
      %s49 = smul.addr %s48, 2
      %s50 = scalar_lea.vmem %s8, %s49
      %s51 = sadd.s32 0, 0
      %s52 = smul.u32 3, %s51
    $region37: #{tpu_custom_call.1} parent=1 // pred_fallthru
      _
    // Predicated region
    $region38: #{tpu_custom_call.1} parent=1 // pred_check
      _
    $region39: #{tpu_custom_call.1} parent=1 // pred_check_branch
      %54 = sbr.rel (0) target = $region41
    $region40: #{tpu_custom_call.1} parent=1 // pred_region
      %55 = dma.done [#allocation5], 4096
    $region41: #{tpu_custom_call.1} parent=1 // pred_fallthru
      _
    %s56 = sadd.s32 0, 0
    %s57 = smul.u32 3, %s56
    %p58 = scmp.lt.s32.totalorder %s57, 2
    %s59 = scalar_select %p58, %s57, 2
    %s60 = smul.addr %s59, 2
    %s61 = scalar_lea.vmem %s8, %s60
    %s62 = sadd.s32 0, 0
    %s63 = smul.u32 3, %s62
    %p64 = scmp.lt.s32.totalorder %s63, 2
    %s65 = scalar_select %p64, %s63, 2
    %s66 = smul.addr %s65, 2
    %s67 = scalar_lea.vmem %s8, %s66
    %s68 = sadd.s32 0, 0
    %s69 = smul.u32 3, %s68
    %s70 = sadd.s32 0, 0
    %s71 = smul.u32 3, %s70
    %p72 = scmp.eq.s32.totalorder 0, 0
    // Predicated region
    $region42: #{tpu_custom_call.1} parent=1 // pred_check
      %p73 = pneg %p72
    $region43: #{tpu_custom_call.1} parent=1 // pred_check_branch
      %75 = sbr.rel (%p73) target = $region45
    $region44: #{tpu_custom_call.1} parent=1 // pred_region
      %v76 = vld [vmem:[%s0] sm:$0xff]
      %v77 = vld [vmem:[%s0 + $0x8] sm:$0xff]
      %v78 = vld [vmem:[%s1] sm:$0xff]
      %v79 = vld [vmem:[%s1 + $0x8] sm:$0xff]
      %80 = vxpose.xlu0.b32.start [1/16] %v76, 128
      %81 = vxpose.xlu0.b32.cont [2/16] %v77, 128
      %82 = vxpose.xlu0.b32.cont [3/16] 0.0, 128
      %83 = vxpose.xlu0.b32.cont [4/16] 0.0, 128
      %84 = vxpose.xlu0.b32.cont [5/16] 0.0, 128
      %85 = vxpose.xlu0.b32.cont [6/16] 0.0, 128
      %86 = vxpose.xlu0.b32.cont [7/16] 0.0, 128
      %87 = vxpose.xlu0.b32.cont [8/16] 0.0, 128
      %88 = vxpose.xlu0.b32.cont [9/16] 0.0, 128
      %89 = vxpose.xlu0.b32.cont [10/16] 0.0, 128
      %90 = vxpose.xlu0.b32.cont [11/16] 0.0, 128
      %91 = vxpose.xlu0.b32.cont [12/16] 0.0, 128
      %92 = vxpose.xlu0.b32.cont [13/16] 0.0, 128
      %93 = vxpose.xlu0.b32.cont [14/16] 0.0, 128
      %94 = vxpose.xlu0.b32.cont [15/16] 0.0, 128
      %95 = vxpose.xlu0.b32.end [16/16] 0.0, 128
      %v96 = vpop.trf.xlu0
      %v97 = vpop.trf.xlu0
      %v98 = vpop.trf.xlu0
      %v99 = vpop.trf.xlu0
      %v100 = vpop.trf.xlu0
      %v101 = vpop.trf.xlu0
      %v102 = vpop.trf.xlu0
      %v103 = vpop.trf.xlu0
      %v104 = vpop.trf.xlu0
      %v105 = vpop.trf.xlu0
      %v106 = vpop.trf.xlu0
      %v107 = vpop.trf.xlu0
      %v108 = vpop.trf.xlu0
      %v109 = vpop.trf.xlu0
      %v110 = vpop.trf.xlu0
      %v111 = vpop.trf.xlu0
      %vm112 = vcmask 130048
      %v114 = vsel %vm112, %v96, 0
      %116 = vmatprep.subr.mxu0 0.0
      %117 = vmatpush1.msra.mxu0 0.0
      %118 = vmatprep.subr.mxu0 0.0
      %119 = vmatpush1.msra.mxu0 0.0
      %120 = vmatprep.subr.mxu0 0.0
      %121 = vmatpush1.msra.mxu0 0.0
      %122 = vmatprep.subr.mxu0 0.0
      %123 = vmatpush1.msra.mxu0 0.0
      %124 = vmatprep.subr.mxu0 0.0
      %125 = vmatpush1.msra.mxu0 0.0
      %126 = vmatprep.subr.mxu0 0.0
      %127 = vmatpush1.msra.mxu0 0.0
      %128 = vmatprep.subr.mxu0 0.0
      %129 = vmatpush1.msra.mxu0 0.0
      %130 = vmatprep.subr.mxu0 0.0
      %131 = vmatpush1.msra.mxu0 0.0
      %132 = vmatprep.subr.mxu0 0.0
      %133 = vmatpush1.msra.mxu0 0.0
      %134 = vmatprep.subr.mxu0 0.0
      %135 = vmatpush1.msra.mxu0 0.0
      %136 = vmatprep.subr.mxu0 0.0
      %137 = vmatpush1.msra.mxu0 0.0
      %138 = vmatprep.subr.mxu0 0.0
      %139 = vmatpush1.msra.mxu0 0.0
      %140 = vmatprep.subr.mxu0 0.0
      %141 = vmatpush1.msra.mxu0 0.0
      %142 = vmatprep.subr.mxu0 0.0
      %143 = vmatpush1.msra.mxu0 0.0
      %144 = vmatprep.subr.mxu0 0.0
      %145 = vmatpush1.msra.mxu0 %v79
      %146 = vmatprep.subr.mxu0 0.0
      %147 = vmatpush1.msra.mxu0 %v78
      %148 = vmatprep.subr.mxu0 0.0
      %149 = vmatpush2.msra.mxu0 0.0
      %150 = vmatprep.subr.mxu0 0.0
      %151 = vmatpush2.msra.mxu0 0.0
      %152 = vmatprep.subr.mxu0 0.0
      %153 = vmatpush2.msra.mxu0 0.0
      %154 = vmatprep.subr.mxu0 0.0
      %155 = vmatpush2.msra.mxu0 0.0
      %156 = vmatprep.subr.mxu0 0.0
      %157 = vmatpush2.msra.mxu0 0.0
      %158 = vmatprep.subr.mxu0 0.0
      %159 = vmatpush2.msra.mxu0 0.0
      %160 = vmatprep.subr.mxu0 0.0
      %161 = vmatpush2.msra.mxu0 0.0
      %162 = vmatprep.subr.mxu0 0.0
      %163 = vmatpush2.msra.mxu0 0.0
      %164 = vmatprep.subr.mxu0 0.0
      %165 = vmatpush2.msra.mxu0 0.0
      %166 = vmatprep.subr.mxu0 0.0
      %167 = vmatpush2.msra.mxu0 0.0
      %168 = vmatprep.subr.mxu0 0.0
      %169 = vmatpush2.msra.mxu0 0.0
      %170 = vmatprep.subr.mxu0 0.0
      %171 = vmatpush2.msra.mxu0 0.0
      %172 = vmatprep.subr.mxu0 0.0
      %173 = vmatpush2.msra.mxu0 0.0
      %174 = vmatprep.subr.mxu0 0.0
      %175 = vmatpush2.msra.mxu0 0.0
      %176 = vmatprep.subr.mxu0 0.0
      %177 = vmatpush2.msra.mxu0 0.0
      %178 = vmatprep.subr.mxu0 0.0
      %179 = vmatpush2.msra.mxu0 0.0
      %180 = vmatprep.mubr.f32.mxu0 0.0
      %181 = vmatmul.mubr.f32.gmra.mxu0 %v114
      %v182 = vpop.f32.mrf.mxu0
      %v183 = vadd.f32 0.0, %v182
      %v184 = vpop.f32.mrf.mxu0
      %185 = vdwg.mxu0
      %v187 = vcombine.high %v183, %v183
      %v189 = vunpack.c.l.s4 1966171168
      %v190 = vunpack.c.0.s8 %v189
      %v191 = vlaneseq
      %v192 = vshrl.u32 %v191, 7
      %v193 = vsub.s32 %v190, %v192
      %v194 = vrot.slane %v183, %v193
      %v196 = vunpack.c.l.s4 1966171168
      %v197 = vunpack.c.0.s8 %v196
      %v198 = vlaneseq
      %v199 = vshrl.u32 %v198, 7
      %v200 = vsub.s32 %v197, %v199
      %v201 = vrot.slane %v187, %v200
      %v202 = vcombine.high %v194, %v194
      %v203 = vcombine.high %v201, %v201
      %v205 = vunpack.c.l.s4 1966171168
      %v206 = vunpack.c.0.s8 %v205
      %v207 = vlaneseq
      %v208 = vshrl.u32 %v207, 7
      %v209 = vsub.s32 %v206, %v208
      %v210 = vrot.slane %v194, %v209
      %v212 = vunpack.c.l.s4 1966171168
      %v213 = vunpack.c.0.s8 %v212
      %v214 = vlaneseq
      %v215 = vshrl.u32 %v214, 7
      %v216 = vsub.s32 %v213, %v215
      %v217 = vrot.slane %v201, %v216
      %v219 = vunpack.c.l.s4 1966171168
      %v220 = vunpack.c.0.s8 %v219
      %v221 = vlaneseq
      %v222 = vshrl.u32 %v221, 7
      %v223 = vsub.s32 %v220, %v222
      %v224 = vrot.slane %v202, %v223
      %v226 = vunpack.c.l.s4 1966171168
      %v227 = vunpack.c.0.s8 %v226
      %v228 = vlaneseq
      %v229 = vshrl.u32 %v228, 7
      %v230 = vsub.s32 %v227, %v229
      %v231 = vrot.slane %v203, %v230
      %v232 = vcombine.high %v210, %v210
      %v233 = vcombine.high %v217, %v217
      %v234 = vcombine.high %v224, %v224
      %v235 = vcombine.high %v231, %v231
      %v236 = vld [vmem:[%s2] sm:$0xf]
      %v237 = vld [vmem:[%s2 + $0x4] sm:$0xf]
      %v238 = vld [vmem:[%s2 + $0x8] sm:$0xf]
      %v239 = vld [vmem:[%s2 + $0xc] sm:$0xf]
      %v240 = vld [vmem:[%s2 + $0x10] sm:$0xf]
      %v241 = vld [vmem:[%s2 + $0x14] sm:$0xf]
      %v242 = vld [vmem:[%s2 + $0x18] sm:$0xf]
      %v243 = vld [vmem:[%s2 + $0x1c] sm:$0xf]
      %vm244 = vcmask 31744
      %v245 = vsel %vm244, %v210, 0
      %vm247 = vcmask 1043456
      %v249 = vsel %vm247, %v236, 0
      %251 = vmatprep.subr.mxu0 0.0
      %252 = vmatpush1.msra.mxu0 0.0
      %253 = vmatprep.subr.mxu0 0.0
      %254 = vmatpush1.msra.mxu0 0.0
      %255 = vmatprep.subr.mxu0 0.0
      %256 = vmatpush1.msra.mxu0 0.0
      %257 = vmatprep.subr.mxu0 0.0
      %258 = vmatpush1.msra.mxu0 0.0
      %259 = vmatprep.subr.mxu0 0.0
      %260 = vmatpush1.msra.mxu0 0.0
      %261 = vmatprep.subr.mxu0 0.0
      %262 = vmatpush1.msra.mxu0 0.0
      %263 = vmatprep.subr.mxu0 0.0
      %264 = vmatpush1.msra.mxu0 0.0
      %265 = vmatprep.subr.mxu0 0.0
      %266 = vmatpush1.msra.mxu0 0.0
      %267 = vmatprep.subr.mxu0 0.0
      %268 = vmatpush1.msra.mxu0 0.0
      %269 = vmatprep.subr.mxu0 0.0
      %270 = vmatpush1.msra.mxu0 0.0
      %271 = vmatprep.subr.mxu0 0.0
      %272 = vmatpush1.msra.mxu0 0.0
      %273 = vmatprep.subr.mxu0 0.0
      %274 = vmatpush1.msra.mxu0 0.0
      %275 = vmatprep.subr.mxu0 0.0
      %276 = vmatpush1.msra.mxu0 0.0
      %277 = vmatprep.subr.mxu0 0.0
      %278 = vmatpush1.msra.mxu0 0.0
      %279 = vmatprep.subr.mxu0 0.0
      %280 = vmatpush1.msra.mxu0 0.0
      %281 = vmatprep.subr.mxu0 0.0
      %282 = vmatpush1.msra.mxu0 %v249
      %283 = vmatprep.subr.mxu0 0.0
      %284 = vmatpush2.msra.mxu0 0.0
      %285 = vmatprep.subr.mxu0 0.0
      %286 = vmatpush2.msra.mxu0 0.0
      %287 = vmatprep.subr.mxu0 0.0
      %288 = vmatpush2.msra.mxu0 0.0
      %289 = vmatprep.subr.mxu0 0.0
      %290 = vmatpush2.msra.mxu0 0.0
      %291 = vmatprep.subr.mxu0 0.0
      %292 = vmatpush2.msra.mxu0 0.0
      %293 = vmatprep.subr.mxu0 0.0
      %294 = vmatpush2.msra.mxu0 0.0
      %295 = vmatprep.subr.mxu0 0.0
      %296 = vmatpush2.msra.mxu0 0.0
      %297 = vmatprep.subr.mxu0 0.0
      %298 = vmatpush2.msra.mxu0 0.0
      %299 = vmatprep.subr.mxu0 0.0
      %300 = vmatpush2.msra.mxu0 0.0
      %301 = vmatprep.subr.mxu0 0.0
      %302 = vmatpush2.msra.mxu0 0.0
      %303 = vmatprep.subr.mxu0 0.0
      %304 = vmatpush2.msra.mxu0 0.0
      %305 = vmatprep.subr.mxu0 0.0
      %306 = vmatpush2.msra.mxu0 0.0
      %307 = vmatprep.subr.mxu0 0.0
      %308 = vmatpush2.msra.mxu0 0.0
      %309 = vmatprep.subr.mxu0 0.0
      %310 = vmatpush2.msra.mxu0 0.0
      %311 = vmatprep.subr.mxu0 0.0
      %312 = vmatpush2.msra.mxu0 0.0
      %313 = vmatprep.subr.mxu0 0.0
      %314 = vmatpush2.msra.mxu0 0.0
      %315 = vmatprep.mubr.f32.mxu0 0.0
      %316 = vmatmul.mubr.f32.gmra.mxu0 %v245
      %v317 = vpop.f32.mrf.mxu0
      %v318 = vadd.f32 0.0, %v317
      %v319 = vpop.f32.mrf.mxu0
      %320 = vdwg.mxu0
      %v321 = vsel %vm244, %v224, 0
      %v324 = vsel %vm247, %v237, 0
      %326 = vmatprep.subr.mxu0 0.0
      %327 = vmatpush1.msra.mxu0 0.0
      %328 = vmatprep.subr.mxu0 0.0
      %329 = vmatpush1.msra.mxu0 0.0
      %330 = vmatprep.subr.mxu0 0.0
      %331 = vmatpush1.msra.mxu0 0.0
      %332 = vmatprep.subr.mxu0 0.0
      %333 = vmatpush1.msra.mxu0 0.0
      %334 = vmatprep.subr.mxu0 0.0
      %335 = vmatpush1.msra.mxu0 0.0
      %336 = vmatprep.subr.mxu0 0.0
      %337 = vmatpush1.msra.mxu0 0.0
      %338 = vmatprep.subr.mxu0 0.0
      %339 = vmatpush1.msra.mxu0 0.0
      %340 = vmatprep.subr.mxu0 0.0
      %341 = vmatpush1.msra.mxu0 0.0
      %342 = vmatprep.subr.mxu0 0.0
      %343 = vmatpush1.msra.mxu0 0.0
      %344 = vmatprep.subr.mxu0 0.0
      %345 = vmatpush1.msra.mxu0 0.0
      %346 = vmatprep.subr.mxu0 0.0
      %347 = vmatpush1.msra.mxu0 0.0
      %348 = vmatprep.subr.mxu0 0.0
      %349 = vmatpush1.msra.mxu0 0.0
      %350 = vmatprep.subr.mxu0 0.0
      %351 = vmatpush1.msra.mxu0 0.0
      %352 = vmatprep.subr.mxu0 0.0
      %353 = vmatpush1.msra.mxu0 0.0
      %354 = vmatprep.subr.mxu0 0.0
      %355 = vmatpush1.msra.mxu0 0.0
      %356 = vmatprep.subr.mxu0 0.0
      %357 = vmatpush1.msra.mxu0 %v324
      %358 = vmatprep.subr.mxu0 0.0
      %359 = vmatpush2.msra.mxu0 0.0
      %360 = vmatprep.subr.mxu0 0.0
      %361 = vmatpush2.msra.mxu0 0.0
      %362 = vmatprep.subr.mxu0 0.0
      %363 = vmatpush2.msra.mxu0 0.0
      %364 = vmatprep.subr.mxu0 0.0
      %365 = vmatpush2.msra.mxu0 0.0
      %366 = vmatprep.subr.mxu0 0.0
      %367 = vmatpush2.msra.mxu0 0.0
      %368 = vmatprep.subr.mxu0 0.0
      %369 = vmatpush2.msra.mxu0 0.0
      %370 = vmatprep.subr.mxu0 0.0
      %371 = vmatpush2.msra.mxu0 0.0
      %372 = vmatprep.subr.mxu0 0.0
      %373 = vmatpush2.msra.mxu0 0.0
      %374 = vmatprep.subr.mxu0 0.0
      %375 = vmatpush2.msra.mxu0 0.0
      %376 = vmatprep.subr.mxu0 0.0
      %377 = vmatpush2.msra.mxu0 0.0
      %378 = vmatprep.subr.mxu0 0.0
      %379 = vmatpush2.msra.mxu0 0.0
      %380 = vmatprep.subr.mxu0 0.0
      %381 = vmatpush2.msra.mxu0 0.0
      %382 = vmatprep.subr.mxu0 0.0
      %383 = vmatpush2.msra.mxu0 0.0
      %384 = vmatprep.subr.mxu0 0.0
      %385 = vmatpush2.msra.mxu0 0.0
      %386 = vmatprep.subr.mxu0 0.0
      %387 = vmatpush2.msra.mxu0 0.0
      %388 = vmatprep.subr.mxu0 0.0
      %389 = vmatpush2.msra.mxu0 0.0
      %390 = vmatprep.mubr.f32.mxu0 0.0
      %391 = vmatmul.mubr.f32.gmra.mxu0 %v321
      %v392 = vpop.f32.mrf.mxu0
      %v393 = vadd.f32 0.0, %v392
      %v394 = vpop.f32.mrf.mxu0
      %395 = vdwg.mxu0
      %v396 = vsel %vm244, %v232, 0
      %v399 = vsel %vm247, %v238, 0
      %401 = vmatprep.subr.mxu0 0.0
      %402 = vmatpush1.msra.mxu0 0.0
      %403 = vmatprep.subr.mxu0 0.0
      %404 = vmatpush1.msra.mxu0 0.0
      %405 = vmatprep.subr.mxu0 0.0
      %406 = vmatpush1.msra.mxu0 0.0
      %407 = vmatprep.subr.mxu0 0.0
      %408 = vmatpush1.msra.mxu0 0.0
      %409 = vmatprep.subr.mxu0 0.0
      %410 = vmatpush1.msra.mxu0 0.0
      %411 = vmatprep.subr.mxu0 0.0
      %412 = vmatpush1.msra.mxu0 0.0
      %413 = vmatprep.subr.mxu0 0.0
      %414 = vmatpush1.msra.mxu0 0.0
      %415 = vmatprep.subr.mxu0 0.0
      %416 = vmatpush1.msra.mxu0 0.0
      %417 = vmatprep.subr.mxu0 0.0
      %418 = vmatpush1.msra.mxu0 0.0
      %419 = vmatprep.subr.mxu0 0.0
      %420 = vmatpush1.msra.mxu0 0.0
      %421 = vmatprep.subr.mxu0 0.0
      %422 = vmatpush1.msra.mxu0 0.0
      %423 = vmatprep.subr.mxu0 0.0
      %424 = vmatpush1.msra.mxu0 0.0
      %425 = vmatprep.subr.mxu0 0.0
      %426 = vmatpush1.msra.mxu0 0.0
      %427 = vmatprep.subr.mxu0 0.0
      %428 = vmatpush1.msra.mxu0 0.0
      %429 = vmatprep.subr.mxu0 0.0
      %430 = vmatpush1.msra.mxu0 0.0
      %431 = vmatprep.subr.mxu0 0.0
      %432 = vmatpush1.msra.mxu0 %v399
      %433 = vmatprep.subr.mxu0 0.0
      %434 = vmatpush2.msra.mxu0 0.0
      %435 = vmatprep.subr.mxu0 0.0
      %436 = vmatpush2.msra.mxu0 0.0
      %437 = vmatprep.subr.mxu0 0.0
      %438 = vmatpush2.msra.mxu0 0.0
      %439 = vmatprep.subr.mxu0 0.0
      %440 = vmatpush2.msra.mxu0 0.0
      %441 = vmatprep.subr.mxu0 0.0
      %442 = vmatpush2.msra.mxu0 0.0
      %443 = vmatprep.subr.mxu0 0.0
      %444 = vmatpush2.msra.mxu0 0.0
      %445 = vmatprep.subr.mxu0 0.0
      %446 = vmatpush2.msra.mxu0 0.0
      %447 = vmatprep.subr.mxu0 0.0
      %448 = vmatpush2.msra.mxu0 0.0
      %449 = vmatprep.subr.mxu0 0.0
      %450 = vmatpush2.msra.mxu0 0.0
      %451 = vmatprep.subr.mxu0 0.0
      %452 = vmatpush2.msra.mxu0 0.0
      %453 = vmatprep.subr.mxu0 0.0
      %454 = vmatpush2.msra.mxu0 0.0
      %455 = vmatprep.subr.mxu0 0.0
      %456 = vmatpush2.msra.mxu0 0.0
      %457 = vmatprep.subr.mxu0 0.0
      %458 = vmatpush2.msra.mxu0 0.0
      %459 = vmatprep.subr.mxu0 0.0
      %460 = vmatpush2.msra.mxu0 0.0
      %461 = vmatprep.subr.mxu0 0.0
      %462 = vmatpush2.msra.mxu0 0.0
      %463 = vmatprep.subr.mxu0 0.0
      %464 = vmatpush2.msra.mxu0 0.0
      %465 = vmatprep.mubr.f32.mxu0 0.0
      %466 = vmatmul.mubr.f32.gmra.mxu0 %v396
      %v467 = vpop.f32.mrf.mxu0
      %v468 = vadd.f32 0.0, %v467
      %v469 = vpop.f32.mrf.mxu0
      %470 = vdwg.mxu0
      %v471 = vsel %vm244, %v234, 0
      %v474 = vsel %vm247, %v239, 0
      %476 = vmatprep.subr.mxu0 0.0
      %477 = vmatpush1.msra.mxu0 0.0
      %478 = vmatprep.subr.mxu0 0.0
      %479 = vmatpush1.msra.mxu0 0.0
      %480 = vmatprep.subr.mxu0 0.0
      %481 = vmatpush1.msra.mxu0 0.0
      %482 = vmatprep.subr.mxu0 0.0
      %483 = vmatpush1.msra.mxu0 0.0
      %484 = vmatprep.subr.mxu0 0.0
      %485 = vmatpush1.msra.mxu0 0.0
      %486 = vmatprep.subr.mxu0 0.0
      %487 = vmatpush1.msra.mxu0 0.0
      %488 = vmatprep.subr.mxu0 0.0
      %489 = vmatpush1.msra.mxu0 0.0
      %490 = vmatprep.subr.mxu0 0.0
      %491 = vmatpush1.msra.mxu0 0.0
      %492 = vmatprep.subr.mxu0 0.0
      %493 = vmatpush1.msra.mxu0 0.0
      %494 = vmatprep.subr.mxu0 0.0
      %495 = vmatpush1.msra.mxu0 0.0
      %496 = vmatprep.subr.mxu0 0.0
      %497 = vmatpush1.msra.mxu0 0.0
      %498 = vmatprep.subr.mxu0 0.0
      %499 = vmatpush1.msra.mxu0 0.0
      %500 = vmatprep.subr.mxu0 0.0
      %501 = vmatpush1.msra.mxu0 0.0
      %502 = vmatprep.subr.mxu0 0.0
      %503 = vmatpush1.msra.mxu0 0.0
      %504 = vmatprep.subr.mxu0 0.0
      %505 = vmatpush1.msra.mxu0 0.0
      %506 = vmatprep.subr.mxu0 0.0
      %507 = vmatpush1.msra.mxu0 %v474
      %508 = vmatprep.subr.mxu0 0.0
      %509 = vmatpush2.msra.mxu0 0.0
      %510 = vmatprep.subr.mxu0 0.0
      %511 = vmatpush2.msra.mxu0 0.0
      %512 = vmatprep.subr.mxu0 0.0
      %513 = vmatpush2.msra.mxu0 0.0
      %514 = vmatprep.subr.mxu0 0.0
      %515 = vmatpush2.msra.mxu0 0.0
      %516 = vmatprep.subr.mxu0 0.0
      %517 = vmatpush2.msra.mxu0 0.0
      %518 = vmatprep.subr.mxu0 0.0
      %519 = vmatpush2.msra.mxu0 0.0
      %520 = vmatprep.subr.mxu0 0.0
      %521 = vmatpush2.msra.mxu0 0.0
      %522 = vmatprep.subr.mxu0 0.0
      %523 = vmatpush2.msra.mxu0 0.0
      %524 = vmatprep.subr.mxu0 0.0
      %525 = vmatpush2.msra.mxu0 0.0
      %526 = vmatprep.subr.mxu0 0.0
      %527 = vmatpush2.msra.mxu0 0.0
      %528 = vmatprep.subr.mxu0 0.0
      %529 = vmatpush2.msra.mxu0 0.0
      %530 = vmatprep.subr.mxu0 0.0
      %531 = vmatpush2.msra.mxu0 0.0
      %532 = vmatprep.subr.mxu0 0.0
      %533 = vmatpush2.msra.mxu0 0.0
      %534 = vmatprep.subr.mxu0 0.0
      %535 = vmatpush2.msra.mxu0 0.0
      %536 = vmatprep.subr.mxu0 0.0
      %537 = vmatpush2.msra.mxu0 0.0
      %538 = vmatprep.subr.mxu0 0.0
      %539 = vmatpush2.msra.mxu0 0.0
      %540 = vmatprep.mubr.f32.mxu0 0.0
      %541 = vmatmul.mubr.f32.gmra.mxu0 %v471
      %v542 = vpop.f32.mrf.mxu0
      %v543 = vadd.f32 0.0, %v542
      %v544 = vpop.f32.mrf.mxu0
      %545 = vdwg.mxu0
      %v546 = vsel %vm244, %v217, 0
      %v549 = vsel %vm247, %v240, 0
      %551 = vmatprep.subr.mxu0 0.0
      %552 = vmatpush1.msra.mxu0 0.0
      %553 = vmatprep.subr.mxu0 0.0
      %554 = vmatpush1.msra.mxu0 0.0
      %555 = vmatprep.subr.mxu0 0.0
      %556 = vmatpush1.msra.mxu0 0.0
      %557 = vmatprep.subr.mxu0 0.0
      %558 = vmatpush1.msra.mxu0 0.0
      %559 = vmatprep.subr.mxu0 0.0
      %560 = vmatpush1.msra.mxu0 0.0
      %561 = vmatprep.subr.mxu0 0.0
      %562 = vmatpush1.msra.mxu0 0.0
      %563 = vmatprep.subr.mxu0 0.0
      %564 = vmatpush1.msra.mxu0 0.0
      %565 = vmatprep.subr.mxu0 0.0
      %566 = vmatpush1.msra.mxu0 0.0
      %567 = vmatprep.subr.mxu0 0.0
      %568 = vmatpush1.msra.mxu0 0.0
      %569 = vmatprep.subr.mxu0 0.0
      %570 = vmatpush1.msra.mxu0 0.0
      %571 = vmatprep.subr.mxu0 0.0
      %572 = vmatpush1.msra.mxu0 0.0
      %573 = vmatprep.subr.mxu0 0.0
      %574 = vmatpush1.msra.mxu0 0.0
      %575 = vmatprep.subr.mxu0 0.0
      %576 = vmatpush1.msra.mxu0 0.0
      %577 = vmatprep.subr.mxu0 0.0
      %578 = vmatpush1.msra.mxu0 0.0
      %579 = vmatprep.subr.mxu0 0.0
      %580 = vmatpush1.msra.mxu0 0.0
      %581 = vmatprep.subr.mxu0 0.0
      %582 = vmatpush1.msra.mxu0 %v549
      %583 = vmatprep.subr.mxu0 0.0
      %584 = vmatpush2.msra.mxu0 0.0
      %585 = vmatprep.subr.mxu0 0.0
      %586 = vmatpush2.msra.mxu0 0.0
      %587 = vmatprep.subr.mxu0 0.0
      %588 = vmatpush2.msra.mxu0 0.0
      %589 = vmatprep.subr.mxu0 0.0
      %590 = vmatpush2.msra.mxu0 0.0
      %591 = vmatprep.subr.mxu0 0.0
      %592 = vmatpush2.msra.mxu0 0.0
      %593 = vmatprep.subr.mxu0 0.0
      %594 = vmatpush2.msra.mxu0 0.0
      %595 = vmatprep.subr.mxu0 0.0
      %596 = vmatpush2.msra.mxu0 0.0
      %597 = vmatprep.subr.mxu0 0.0
      %598 = vmatpush2.msra.mxu0 0.0
      %599 = vmatprep.subr.mxu0 0.0
      %600 = vmatpush2.msra.mxu0 0.0
      %601 = vmatprep.subr.mxu0 0.0
      %602 = vmatpush2.msra.mxu0 0.0
      %603 = vmatprep.subr.mxu0 0.0
      %604 = vmatpush2.msra.mxu0 0.0
      %605 = vmatprep.subr.mxu0 0.0
      %606 = vmatpush2.msra.mxu0 0.0
      %607 = vmatprep.subr.mxu0 0.0
      %608 = vmatpush2.msra.mxu0 0.0
      %609 = vmatprep.subr.mxu0 0.0
      %610 = vmatpush2.msra.mxu0 0.0
      %611 = vmatprep.subr.mxu0 0.0
      %612 = vmatpush2.msra.mxu0 0.0
      %613 = vmatprep.subr.mxu0 0.0
      %614 = vmatpush2.msra.mxu0 0.0
      %615 = vmatprep.mubr.f32.mxu0 0.0
      %616 = vmatmul.mubr.f32.gmra.mxu0 %v546
      %v617 = vpop.f32.mrf.mxu0
      %v618 = vadd.f32 0.0, %v617
      %v619 = vpop.f32.mrf.mxu0
      %620 = vdwg.mxu0
      %v621 = vsel %vm244, %v231, 0
      %v624 = vsel %vm247, %v241, 0
      %626 = vmatprep.subr.mxu0 0.0
      %627 = vmatpush1.msra.mxu0 0.0
      %628 = vmatprep.subr.mxu0 0.0
      %629 = vmatpush1.msra.mxu0 0.0
      %630 = vmatprep.subr.mxu0 0.0
      %631 = vmatpush1.msra.mxu0 0.0
      %632 = vmatprep.subr.mxu0 0.0
      %633 = vmatpush1.msra.mxu0 0.0
      %634 = vmatprep.subr.mxu0 0.0
      %635 = vmatpush1.msra.mxu0 0.0
      %636 = vmatprep.subr.mxu0 0.0
      %637 = vmatpush1.msra.mxu0 0.0
      %638 = vmatprep.subr.mxu0 0.0
      %639 = vmatpush1.msra.mxu0 0.0
      %640 = vmatprep.subr.mxu0 0.0
      %641 = vmatpush1.msra.mxu0 0.0
      %642 = vmatprep.subr.mxu0 0.0
      %643 = vmatpush1.msra.mxu0 0.0
      %644 = vmatprep.subr.mxu0 0.0
      %645 = vmatpush1.msra.mxu0 0.0
      %646 = vmatprep.subr.mxu0 0.0
      %647 = vmatpush1.msra.mxu0 0.0
      %648 = vmatprep.subr.mxu0 0.0
      %649 = vmatpush1.msra.mxu0 0.0
      %650 = vmatprep.subr.mxu0 0.0
      %651 = vmatpush1.msra.mxu0 0.0
      %652 = vmatprep.subr.mxu0 0.0
      %653 = vmatpush1.msra.mxu0 0.0
      %654 = vmatprep.subr.mxu0 0.0
      %655 = vmatpush1.msra.mxu0 0.0
      %656 = vmatprep.subr.mxu0 0.0
      %657 = vmatpush1.msra.mxu0 %v624
      %658 = vmatprep.subr.mxu0 0.0
      %659 = vmatpush2.msra.mxu0 0.0
      %660 = vmatprep.subr.mxu0 0.0
      %661 = vmatpush2.msra.mxu0 0.0
      %662 = vmatprep.subr.mxu0 0.0
      %663 = vmatpush2.msra.mxu0 0.0
      %664 = vmatprep.subr.mxu0 0.0
      %665 = vmatpush2.msra.mxu0 0.0
      %666 = vmatprep.subr.mxu0 0.0
      %667 = vmatpush2.msra.mxu0 0.0
      %668 = vmatprep.subr.mxu0 0.0
      %669 = vmatpush2.msra.mxu0 0.0
      %670 = vmatprep.subr.mxu0 0.0
      %671 = vmatpush2.msra.mxu0 0.0
      %672 = vmatprep.subr.mxu0 0.0
      %673 = vmatpush2.msra.mxu0 0.0
      %674 = vmatprep.subr.mxu0 0.0
      %675 = vmatpush2.msra.mxu0 0.0
      %676 = vmatprep.subr.mxu0 0.0
      %677 = vmatpush2.msra.mxu0 0.0
      %678 = vmatprep.subr.mxu0 0.0
      %679 = vmatpush2.msra.mxu0 0.0
      %680 = vmatprep.subr.mxu0 0.0
      %681 = vmatpush2.msra.mxu0 0.0
      %682 = vmatprep.subr.mxu0 0.0
      %683 = vmatpush2.msra.mxu0 0.0
      %684 = vmatprep.subr.mxu0 0.0
      %685 = vmatpush2.msra.mxu0 0.0
      %686 = vmatprep.subr.mxu0 0.0
      %687 = vmatpush2.msra.mxu0 0.0
      %688 = vmatprep.subr.mxu0 0.0
      %689 = vmatpush2.msra.mxu0 0.0
      %690 = vmatprep.mubr.f32.mxu0 0.0
      %691 = vmatmul.mubr.f32.gmra.mxu0 %v621
      %v692 = vpop.f32.mrf.mxu0
      %v693 = vadd.f32 0.0, %v692
      %v694 = vpop.f32.mrf.mxu0
      %695 = vdwg.mxu0
      %v696 = vsel %vm244, %v233, 0
      %v699 = vsel %vm247, %v242, 0
      %701 = vmatprep.subr.mxu0 0.0
      %702 = vmatpush1.msra.mxu0 0.0
      %703 = vmatprep.subr.mxu0 0.0
      %704 = vmatpush1.msra.mxu0 0.0
      %705 = vmatprep.subr.mxu0 0.0
      %706 = vmatpush1.msra.mxu0 0.0
      %707 = vmatprep.subr.mxu0 0.0
      %708 = vmatpush1.msra.mxu0 0.0
      %709 = vmatprep.subr.mxu0 0.0
      %710 = vmatpush1.msra.mxu0 0.0
      %711 = vmatprep.subr.mxu0 0.0
      %712 = vmatpush1.msra.mxu0 0.0
      %713 = vmatprep.subr.mxu0 0.0
      %714 = vmatpush1.msra.mxu0 0.0
      %715 = vmatprep.subr.mxu0 0.0
      %716 = vmatpush1.msra.mxu0 0.0
      %717 = vmatprep.subr.mxu0 0.0
      %718 = vmatpush1.msra.mxu0 0.0
      %719 = vmatprep.subr.mxu0 0.0
      %720 = vmatpush1.msra.mxu0 0.0
      %721 = vmatprep.subr.mxu0 0.0
      %722 = vmatpush1.msra.mxu0 0.0
      %723 = vmatprep.subr.mxu0 0.0
      %724 = vmatpush1.msra.mxu0 0.0
      %725 = vmatprep.subr.mxu0 0.0
      %726 = vmatpush1.msra.mxu0 0.0
      %727 = vmatprep.subr.mxu0 0.0
      %728 = vmatpush1.msra.mxu0 0.0
      %729 = vmatprep.subr.mxu0 0.0
      %730 = vmatpush1.msra.mxu0 0.0
      %731 = vmatprep.subr.mxu0 0.0
      %732 = vmatpush1.msra.mxu0 %v699
      %733 = vmatprep.subr.mxu0 0.0
      %734 = vmatpush2.msra.mxu0 0.0
      %735 = vmatprep.subr.mxu0 0.0
      %736 = vmatpush2.msra.mxu0 0.0
      %737 = vmatprep.subr.mxu0 0.0
      %738 = vmatpush2.msra.mxu0 0.0
      %739 = vmatprep.subr.mxu0 0.0
      %740 = vmatpush2.msra.mxu0 0.0
      %741 = vmatprep.subr.mxu0 0.0
      %742 = vmatpush2.msra.mxu0 0.0
      %743 = vmatprep.subr.mxu0 0.0
      %744 = vmatpush2.msra.mxu0 0.0
      %745 = vmatprep.subr.mxu0 0.0
      %746 = vmatpush2.msra.mxu0 0.0
      %747 = vmatprep.subr.mxu0 0.0
      %748 = vmatpush2.msra.mxu0 0.0
      %749 = vmatprep.subr.mxu0 0.0
      %750 = vmatpush2.msra.mxu0 0.0
      %751 = vmatprep.subr.mxu0 0.0
      %752 = vmatpush2.msra.mxu0 0.0
      %753 = vmatprep.subr.mxu0 0.0
      %754 = vmatpush2.msra.mxu0 0.0
      %755 = vmatprep.subr.mxu0 0.0
      %756 = vmatpush2.msra.mxu0 0.0
      %757 = vmatprep.subr.mxu0 0.0
      %758 = vmatpush2.msra.mxu0 0.0
      %759 = vmatprep.subr.mxu0 0.0
      %760 = vmatpush2.msra.mxu0 0.0
      %761 = vmatprep.subr.mxu0 0.0
      %762 = vmatpush2.msra.mxu0 0.0
      %763 = vmatprep.subr.mxu0 0.0
      %764 = vmatpush2.msra.mxu0 0.0
      %765 = vmatprep.mubr.f32.mxu0 0.0
      %766 = vmatmul.mubr.f32.gmra.mxu0 %v696
      %v767 = vpop.f32.mrf.mxu0
      %v768 = vadd.f32 0.0, %v767
      %v769 = vpop.f32.mrf.mxu0
      %770 = vdwg.mxu0
      %v771 = vsel %vm244, %v235, 0
      %v774 = vsel %vm247, %v243, 0
      %776 = vmatprep.subr.mxu0 0.0
      %777 = vmatpush1.msra.mxu0 0.0
      %778 = vmatprep.subr.mxu0 0.0
      %779 = vmatpush1.msra.mxu0 0.0
      %780 = vmatprep.subr.mxu0 0.0
      %781 = vmatpush1.msra.mxu0 0.0
      %782 = vmatprep.subr.mxu0 0.0
      %783 = vmatpush1.msra.mxu0 0.0
      %784 = vmatprep.subr.mxu0 0.0
      %785 = vmatpush1.msra.mxu0 0.0
      %786 = vmatprep.subr.mxu0 0.0
      %787 = vmatpush1.msra.mxu0 0.0
      %788 = vmatprep.subr.mxu0 0.0
      %789 = vmatpush1.msra.mxu0 0.0
      %790 = vmatprep.subr.mxu0 0.0
      %791 = vmatpush1.msra.mxu0 0.0
      %792 = vmatprep.subr.mxu0 0.0
      %793 = vmatpush1.msra.mxu0 0.0
      %794 = vmatprep.subr.mxu0 0.0
      %795 = vmatpush1.msra.mxu0 0.0
      %796 = vmatprep.subr.mxu0 0.0
      %797 = vmatpush1.msra.mxu0 0.0
      %798 = vmatprep.subr.mxu0 0.0
      %799 = vmatpush1.msra.mxu0 0.0
      %800 = vmatprep.subr.mxu0 0.0
      %801 = vmatpush1.msra.mxu0 0.0
      %802 = vmatprep.subr.mxu0 0.0
      %803 = vmatpush1.msra.mxu0 0.0
      %804 = vmatprep.subr.mxu0 0.0
      %805 = vmatpush1.msra.mxu0 0.0
      %806 = vmatprep.subr.mxu0 0.0
      %807 = vmatpush1.msra.mxu0 %v774
      %808 = vmatprep.subr.mxu0 0.0
      %809 = vmatpush2.msra.mxu0 0.0
      %810 = vmatprep.subr.mxu0 0.0
      %811 = vmatpush2.msra.mxu0 0.0
      %812 = vmatprep.subr.mxu0 0.0
      %813 = vmatpush2.msra.mxu0 0.0
      %814 = vmatprep.subr.mxu0 0.0
      %815 = vmatpush2.msra.mxu0 0.0
      %816 = vmatprep.subr.mxu0 0.0
      %817 = vmatpush2.msra.mxu0 0.0
      %818 = vmatprep.subr.mxu0 0.0
      %819 = vmatpush2.msra.mxu0 0.0
      %820 = vmatprep.subr.mxu0 0.0
      %821 = vmatpush2.msra.mxu0 0.0
      %822 = vmatprep.subr.mxu0 0.0
      %823 = vmatpush2.msra.mxu0 0.0
      %824 = vmatprep.subr.mxu0 0.0
      %825 = vmatpush2.msra.mxu0 0.0
      %826 = vmatprep.subr.mxu0 0.0
      %827 = vmatpush2.msra.mxu0 0.0
      %828 = vmatprep.subr.mxu0 0.0
      %829 = vmatpush2.msra.mxu0 0.0
      %830 = vmatprep.subr.mxu0 0.0
      %831 = vmatpush2.msra.mxu0 0.0
      %832 = vmatprep.subr.mxu0 0.0
      %833 = vmatpush2.msra.mxu0 0.0
      %834 = vmatprep.subr.mxu0 0.0
      %835 = vmatpush2.msra.mxu0 0.0
      %836 = vmatprep.subr.mxu0 0.0
      %837 = vmatpush2.msra.mxu0 0.0
      %838 = vmatprep.subr.mxu0 0.0
      %839 = vmatpush2.msra.mxu0 0.0
      %840 = vmatprep.mubr.f32.mxu0 0.0
      %841 = vmatmul.mubr.f32.gmra.mxu0 %v771
      %v842 = vpop.f32.mrf.mxu0
      %v843 = vadd.f32 0.0, %v842
      %v844 = vpop.f32.mrf.mxu0
      %845 = vdwg.mxu0
      %v846 = vmax.f32 %v318, 0.0
      %v847 = vmax.f32 %v393, 0.0
      %v848 = vmax.f32 %v468, 0.0
      %v849 = vmax.f32 %v543, 0.0
      %v850 = vmax.f32 %v618, 0.0
      %v851 = vmax.f32 %v693, 0.0
      %v852 = vmax.f32 %v768, 0.0
      %v853 = vmax.f32 %v843, 0.0
      %v854 = vld [vmem:[#allocation4] sm:$0xff]
      %v855 = vld [vmem:[#allocation4 + $0x8] sm:$0xff]
      %v856 = vld [vmem:[#allocation4 + $0x10] sm:$0xff]
      %v857 = vld [vmem:[#allocation4 + $0x18] sm:$0xff]
      %v858 = vld [vmem:[#allocation4 + $0x20] sm:$0xff]
      %v859 = vld [vmem:[#allocation4 + $0x28] sm:$0xff]
      %v860 = vld [vmem:[#allocation4 + $0x30] sm:$0xff]
      %v861 = vld [vmem:[#allocation4 + $0x38] sm:$0xff]
      %v862 = vld [vmem:[#allocation4 + $0x40] sm:$0xff]
      %v863 = vld [vmem:[#allocation4 + $0x48] sm:$0xff]
      %v864 = vld [vmem:[#allocation4 + $0x50] sm:$0xff]
      %v865 = vld [vmem:[#allocation4 + $0x58] sm:$0xff]
      %v866 = vld [vmem:[#allocation4 + $0x60] sm:$0xff]
      %v867 = vld [vmem:[#allocation4 + $0x68] sm:$0xff]
      %v868 = vld [vmem:[#allocation4 + $0x70] sm:$0xff]
      %v869 = vld [vmem:[#allocation4 + $0x78] sm:$0xff]
      %v870 = vld [vmem:[#allocation4 + $0x80] sm:$0xff]
      %v871 = vld [vmem:[#allocation4 + $0x88] sm:$0xff]
      %v872 = vld [vmem:[#allocation4 + $0x90] sm:$0xff]
      %v873 = vld [vmem:[#allocation4 + $0x98] sm:$0xff]
      %v874 = vld [vmem:[#allocation4 + $0xa0] sm:$0xff]
      %v875 = vld [vmem:[#allocation4 + $0xa8] sm:$0xff]
      %v876 = vld [vmem:[#allocation4 + $0xb0] sm:$0xff]
      %v877 = vld [vmem:[#allocation4 + $0xb8] sm:$0xff]
      %v878 = vld [vmem:[#allocation4 + $0xc0] sm:$0xff]
      %v879 = vld [vmem:[#allocation4 + $0xc8] sm:$0xff]
      %v880 = vld [vmem:[#allocation4 + $0xd0] sm:$0xff]
      %v881 = vld [vmem:[#allocation4 + $0xd8] sm:$0xff]
      %v882 = vld [vmem:[#allocation4 + $0xe0] sm:$0xff]
      %v883 = vld [vmem:[#allocation4 + $0xe8] sm:$0xff]
      %v884 = vld [vmem:[#allocation4 + $0xf0] sm:$0xff]
      %v885 = vld [vmem:[#allocation4 + $0xf8] sm:$0xff]
      %vm886 = vcmask 261120
      %v888 = vsel %vm886, %v846, 0
      %890 = vmatprep.subr.mxu0 0.0
      %891 = vmatpush1.msra.mxu0 0.0
      %892 = vmatprep.subr.mxu0 0.0
      %893 = vmatpush1.msra.mxu0 0.0
      %894 = vmatprep.subr.mxu0 0.0
      %895 = vmatpush1.msra.mxu0 0.0
      %896 = vmatprep.subr.mxu0 0.0
      %897 = vmatpush1.msra.mxu0 0.0
      %898 = vmatprep.subr.mxu0 0.0
      %899 = vmatpush1.msra.mxu0 0.0
      %900 = vmatprep.subr.mxu0 0.0
      %901 = vmatpush1.msra.mxu0 0.0
      %902 = vmatprep.subr.mxu0 0.0
      %903 = vmatpush1.msra.mxu0 0.0
      %904 = vmatprep.subr.mxu0 0.0
      %905 = vmatpush1.msra.mxu0 0.0
      %906 = vmatprep.subr.mxu0 0.0
      %907 = vmatpush1.msra.mxu0 0.0
      %908 = vmatprep.subr.mxu0 0.0
      %909 = vmatpush1.msra.mxu0 0.0
      %910 = vmatprep.subr.mxu0 0.0
      %911 = vmatpush1.msra.mxu0 0.0
      %912 = vmatprep.subr.mxu0 0.0
      %913 = vmatpush1.msra.mxu0 0.0
      %914 = vmatprep.subr.mxu0 0.0
      %915 = vmatpush1.msra.mxu0 %v857
      %916 = vmatprep.subr.mxu0 0.0
      %917 = vmatpush1.msra.mxu0 %v856
      %918 = vmatprep.subr.mxu0 0.0
      %919 = vmatpush1.msra.mxu0 %v855
      %920 = vmatprep.subr.mxu0 0.0
      %921 = vmatpush1.msra.mxu0 %v854
      %922 = vmatprep.subr.mxu0 0.0
      %923 = vmatpush2.msra.mxu0 0.0
      %924 = vmatprep.subr.mxu0 0.0
      %925 = vmatpush2.msra.mxu0 0.0
      %926 = vmatprep.subr.mxu0 0.0
      %927 = vmatpush2.msra.mxu0 0.0
      %928 = vmatprep.subr.mxu0 0.0
      %929 = vmatpush2.msra.mxu0 0.0
      %930 = vmatprep.subr.mxu0 0.0
      %931 = vmatpush2.msra.mxu0 0.0
      %932 = vmatprep.subr.mxu0 0.0
      %933 = vmatpush2.msra.mxu0 0.0
      %934 = vmatprep.subr.mxu0 0.0
      %935 = vmatpush2.msra.mxu0 0.0
      %936 = vmatprep.subr.mxu0 0.0
      %937 = vmatpush2.msra.mxu0 0.0
      %938 = vmatprep.subr.mxu0 0.0
      %939 = vmatpush2.msra.mxu0 0.0
      %940 = vmatprep.subr.mxu0 0.0
      %941 = vmatpush2.msra.mxu0 0.0
      %942 = vmatprep.subr.mxu0 0.0
      %943 = vmatpush2.msra.mxu0 0.0
      %944 = vmatprep.subr.mxu0 0.0
      %945 = vmatpush2.msra.mxu0 0.0
      %946 = vmatprep.subr.mxu0 0.0
      %947 = vmatpush2.msra.mxu0 0.0
      %948 = vmatprep.subr.mxu0 0.0
      %949 = vmatpush2.msra.mxu0 0.0
      %950 = vmatprep.subr.mxu0 0.0
      %951 = vmatpush2.msra.mxu0 0.0
      %952 = vmatprep.subr.mxu0 0.0
      %953 = vmatpush2.msra.mxu0 0.0
      %954 = vmatprep.mubr.f32.mxu0 0.0
      %955 = vmatmul.mubr.f32.gmra.mxu0 %v888
      %v956 = vpop.f32.mrf.mxu0
      %v957 = vadd.f32 0.0, %v956
      %v958 = vpop.f32.mrf.mxu0
      %959 = vdwg.mxu0
      %v961 = vsel %vm886, %v847, 0
      %963 = vmatprep.subr.mxu0 0.0
      %964 = vmatpush1.msra.mxu0 0.0
      %965 = vmatprep.subr.mxu0 0.0
      %966 = vmatpush1.msra.mxu0 0.0
      %967 = vmatprep.subr.mxu0 0.0
      %968 = vmatpush1.msra.mxu0 0.0
      %969 = vmatprep.subr.mxu0 0.0
      %970 = vmatpush1.msra.mxu0 0.0
      %971 = vmatprep.subr.mxu0 0.0
      %972 = vmatpush1.msra.mxu0 0.0
      %973 = vmatprep.subr.mxu0 0.0
      %974 = vmatpush1.msra.mxu0 0.0
      %975 = vmatprep.subr.mxu0 0.0
      %976 = vmatpush1.msra.mxu0 0.0
      %977 = vmatprep.subr.mxu0 0.0
      %978 = vmatpush1.msra.mxu0 0.0
      %979 = vmatprep.subr.mxu0 0.0
      %980 = vmatpush1.msra.mxu0 0.0
      %981 = vmatprep.subr.mxu0 0.0
      %982 = vmatpush1.msra.mxu0 0.0
      %983 = vmatprep.subr.mxu0 0.0
      %984 = vmatpush1.msra.mxu0 0.0
      %985 = vmatprep.subr.mxu0 0.0
      %986 = vmatpush1.msra.mxu0 0.0
      %987 = vmatprep.subr.mxu0 0.0
      %988 = vmatpush1.msra.mxu0 %v861
      %989 = vmatprep.subr.mxu0 0.0
      %990 = vmatpush1.msra.mxu0 %v860
      %991 = vmatprep.subr.mxu0 0.0
      %992 = vmatpush1.msra.mxu0 %v859
      %993 = vmatprep.subr.mxu0 0.0
      %994 = vmatpush1.msra.mxu0 %v858
      %995 = vmatprep.subr.mxu0 0.0
      %996 = vmatpush2.msra.mxu0 0.0
      %997 = vmatprep.subr.mxu0 0.0
      %998 = vmatpush2.msra.mxu0 0.0
      %999 = vmatprep.subr.mxu0 0.0
      %1000 = vmatpush2.msra.mxu0 0.0
      %1001 = vmatprep.subr.mxu0 0.0
      %1002 = vmatpush2.msra.mxu0 0.0
      %1003 = vmatprep.subr.mxu0 0.0
      %1004 = vmatpush2.msra.mxu0 0.0
      %1005 = vmatprep.subr.mxu0 0.0
      %1006 = vmatpush2.msra.mxu0 0.0
      %1007 = vmatprep.subr.mxu0 0.0
      %1008 = vmatpush2.msra.mxu0 0.0
      %1009 = vmatprep.subr.mxu0 0.0
      %1010 = vmatpush2.msra.mxu0 0.0
      %1011 = vmatprep.subr.mxu0 0.0
      %1012 = vmatpush2.msra.mxu0 0.0
      %1013 = vmatprep.subr.mxu0 0.0
      %1014 = vmatpush2.msra.mxu0 0.0
      %1015 = vmatprep.subr.mxu0 0.0
      %1016 = vmatpush2.msra.mxu0 0.0
      %1017 = vmatprep.subr.mxu0 0.0
      %1018 = vmatpush2.msra.mxu0 0.0
      %1019 = vmatprep.subr.mxu0 0.0
      %1020 = vmatpush2.msra.mxu0 0.0
      %1021 = vmatprep.subr.mxu0 0.0
      %1022 = vmatpush2.msra.mxu0 0.0
      %1023 = vmatprep.subr.mxu0 0.0
      %1024 = vmatpush2.msra.mxu0 0.0
      %1025 = vmatprep.subr.mxu0 0.0
      %1026 = vmatpush2.msra.mxu0 0.0
      %1027 = vmatprep.mubr.f32.mxu0 0.0
      %1028 = vmatmul.mubr.f32.gmra.mxu0 %v961
      %v1029 = vpop.f32.mrf.mxu0
      %v1030 = vadd.f32 0.0, %v1029
      %v1031 = vpop.f32.mrf.mxu0
      %1032 = vdwg.mxu0
      %v1034 = vsel %vm886, %v848, 0
      %1036 = vmatprep.subr.mxu0 0.0
      %1037 = vmatpush1.msra.mxu0 0.0
      %1038 = vmatprep.subr.mxu0 0.0
      %1039 = vmatpush1.msra.mxu0 0.0
      %1040 = vmatprep.subr.mxu0 0.0
      %1041 = vmatpush1.msra.mxu0 0.0
      %1042 = vmatprep.subr.mxu0 0.0
      %1043 = vmatpush1.msra.mxu0 0.0
      %1044 = vmatprep.subr.mxu0 0.0
      %1045 = vmatpush1.msra.mxu0 0.0
      %1046 = vmatprep.subr.mxu0 0.0
      %1047 = vmatpush1.msra.mxu0 0.0
      %1048 = vmatprep.subr.mxu0 0.0
      %1049 = vmatpush1.msra.mxu0 0.0
      %1050 = vmatprep.subr.mxu0 0.0
      %1051 = vmatpush1.msra.mxu0 0.0
      %1052 = vmatprep.subr.mxu0 0.0
      %1053 = vmatpush1.msra.mxu0 0.0
      %1054 = vmatprep.subr.mxu0 0.0
      %1055 = vmatpush1.msra.mxu0 0.0
      %1056 = vmatprep.subr.mxu0 0.0
      %1057 = vmatpush1.msra.mxu0 0.0
      %1058 = vmatprep.subr.mxu0 0.0
      %1059 = vmatpush1.msra.mxu0 0.0
      %1060 = vmatprep.subr.mxu0 0.0
      %1061 = vmatpush1.msra.mxu0 %v865
      %1062 = vmatprep.subr.mxu0 0.0
      %1063 = vmatpush1.msra.mxu0 %v864
      %1064 = vmatprep.subr.mxu0 0.0
      %1065 = vmatpush1.msra.mxu0 %v863
      %1066 = vmatprep.subr.mxu0 0.0
      %1067 = vmatpush1.msra.mxu0 %v862
      %1068 = vmatprep.subr.mxu0 0.0
      %1069 = vmatpush2.msra.mxu0 0.0
      %1070 = vmatprep.subr.mxu0 0.0
      %1071 = vmatpush2.msra.mxu0 0.0
      %1072 = vmatprep.subr.mxu0 0.0
      %1073 = vmatpush2.msra.mxu0 0.0
      %1074 = vmatprep.subr.mxu0 0.0
      %1075 = vmatpush2.msra.mxu0 0.0
      %1076 = vmatprep.subr.mxu0 0.0
      %1077 = vmatpush2.msra.mxu0 0.0
      %1078 = vmatprep.subr.mxu0 0.0
      %1079 = vmatpush2.msra.mxu0 0.0
      %1080 = vmatprep.subr.mxu0 0.0
      %1081 = vmatpush2.msra.mxu0 0.0
      %1082 = vmatprep.subr.mxu0 0.0
      %1083 = vmatpush2.msra.mxu0 0.0
      %1084 = vmatprep.subr.mxu0 0.0
      %1085 = vmatpush2.msra.mxu0 0.0
      %1086 = vmatprep.subr.mxu0 0.0
      %1087 = vmatpush2.msra.mxu0 0.0
      %1088 = vmatprep.subr.mxu0 0.0
      %1089 = vmatpush2.msra.mxu0 0.0
      %1090 = vmatprep.subr.mxu0 0.0
      %1091 = vmatpush2.msra.mxu0 0.0
      %1092 = vmatprep.subr.mxu0 0.0
      %1093 = vmatpush2.msra.mxu0 0.0
      %1094 = vmatprep.subr.mxu0 0.0
      %1095 = vmatpush2.msra.mxu0 0.0
      %1096 = vmatprep.subr.mxu0 0.0
      %1097 = vmatpush2.msra.mxu0 0.0
      %1098 = vmatprep.subr.mxu0 0.0
      %1099 = vmatpush2.msra.mxu0 0.0
      %1100 = vmatprep.mubr.f32.mxu0 0.0
      %1101 = vmatmul.mubr.f32.gmra.mxu0 %v1034
      %v1102 = vpop.f32.mrf.mxu0
      %v1103 = vadd.f32 0.0, %v1102
      %v1104 = vpop.f32.mrf.mxu0
      %1105 = vdwg.mxu0
      %v1107 = vsel %vm886, %v849, 0
      %1109 = vmatprep.subr.mxu0 0.0
      %1110 = vmatpush1.msra.mxu0 0.0
      %1111 = vmatprep.subr.mxu0 0.0
      %1112 = vmatpush1.msra.mxu0 0.0
      %1113 = vmatprep.subr.mxu0 0.0
      %1114 = vmatpush1.msra.mxu0 0.0
      %1115 = vmatprep.subr.mxu0 0.0
      %1116 = vmatpush1.msra.mxu0 0.0
      %1117 = vmatprep.subr.mxu0 0.0
      %1118 = vmatpush1.msra.mxu0 0.0
      %1119 = vmatprep.subr.mxu0 0.0
      %1120 = vmatpush1.msra.mxu0 0.0
      %1121 = vmatprep.subr.mxu0 0.0
      %1122 = vmatpush1.msra.mxu0 0.0
      %1123 = vmatprep.subr.mxu0 0.0
      %1124 = vmatpush1.msra.mxu0 0.0
      %1125 = vmatprep.subr.mxu0 0.0
      %1126 = vmatpush1.msra.mxu0 0.0
      %1127 = vmatprep.subr.mxu0 0.0
      %1128 = vmatpush1.msra.mxu0 0.0
      %1129 = vmatprep.subr.mxu0 0.0
      %1130 = vmatpush1.msra.mxu0 0.0
      %1131 = vmatprep.subr.mxu0 0.0
      %1132 = vmatpush1.msra.mxu0 0.0
      %1133 = vmatprep.subr.mxu0 0.0
      %1134 = vmatpush1.msra.mxu0 %v869
      %1135 = vmatprep.subr.mxu0 0.0
      %1136 = vmatpush1.msra.mxu0 %v868
      %1137 = vmatprep.subr.mxu0 0.0
      %1138 = vmatpush1.msra.mxu0 %v867
      %1139 = vmatprep.subr.mxu0 0.0
      %1140 = vmatpush1.msra.mxu0 %v866
      %1141 = vmatprep.subr.mxu0 0.0
      %1142 = vmatpush2.msra.mxu0 0.0
      %1143 = vmatprep.subr.mxu0 0.0
      %1144 = vmatpush2.msra.mxu0 0.0
      %1145 = vmatprep.subr.mxu0 0.0
      %1146 = vmatpush2.msra.mxu0 0.0
      %1147 = vmatprep.subr.mxu0 0.0
      %1148 = vmatpush2.msra.mxu0 0.0
      %1149 = vmatprep.subr.mxu0 0.0
      %1150 = vmatpush2.msra.mxu0 0.0
      %1151 = vmatprep.subr.mxu0 0.0
      %1152 = vmatpush2.msra.mxu0 0.0
      %1153 = vmatprep.subr.mxu0 0.0
      %1154 = vmatpush2.msra.mxu0 0.0
      %1155 = vmatprep.subr.mxu0 0.0
      %1156 = vmatpush2.msra.mxu0 0.0
      %1157 = vmatprep.subr.mxu0 0.0
      %1158 = vmatpush2.msra.mxu0 0.0
      %1159 = vmatprep.subr.mxu0 0.0
      %1160 = vmatpush2.msra.mxu0 0.0
      %1161 = vmatprep.subr.mxu0 0.0
      %1162 = vmatpush2.msra.mxu0 0.0
      %1163 = vmatprep.subr.mxu0 0.0
      %1164 = vmatpush2.msra.mxu0 0.0
      %1165 = vmatprep.subr.mxu0 0.0
      %1166 = vmatpush2.msra.mxu0 0.0
      %1167 = vmatprep.subr.mxu0 0.0
      %1168 = vmatpush2.msra.mxu0 0.0
      %1169 = vmatprep.subr.mxu0 0.0
      %1170 = vmatpush2.msra.mxu0 0.0
      %1171 = vmatprep.subr.mxu0 0.0
      %1172 = vmatpush2.msra.mxu0 0.0
      %1173 = vmatprep.mubr.f32.mxu0 0.0
      %1174 = vmatmul.mubr.f32.gmra.mxu0 %v1107
      %v1175 = vpop.f32.mrf.mxu0
      %v1176 = vadd.f32 0.0, %v1175
      %v1177 = vpop.f32.mrf.mxu0
      %1178 = vdwg.mxu0
      %v1180 = vsel %vm886, %v850, 0
      %1182 = vmatprep.subr.mxu0 0.0
      %1183 = vmatpush1.msra.mxu0 0.0
      %1184 = vmatprep.subr.mxu0 0.0
      %1185 = vmatpush1.msra.mxu0 0.0
      %1186 = vmatprep.subr.mxu0 0.0
      %1187 = vmatpush1.msra.mxu0 0.0
      %1188 = vmatprep.subr.mxu0 0.0
      %1189 = vmatpush1.msra.mxu0 0.0
      %1190 = vmatprep.subr.mxu0 0.0
      %1191 = vmatpush1.msra.mxu0 0.0
      %1192 = vmatprep.subr.mxu0 0.0
      %1193 = vmatpush1.msra.mxu0 0.0
      %1194 = vmatprep.subr.mxu0 0.0
      %1195 = vmatpush1.msra.mxu0 0.0
      %1196 = vmatprep.subr.mxu0 0.0
      %1197 = vmatpush1.msra.mxu0 0.0
      %1198 = vmatprep.subr.mxu0 0.0
      %1199 = vmatpush1.msra.mxu0 0.0
      %1200 = vmatprep.subr.mxu0 0.0
      %1201 = vmatpush1.msra.mxu0 0.0
      %1202 = vmatprep.subr.mxu0 0.0
      %1203 = vmatpush1.msra.mxu0 0.0
      %1204 = vmatprep.subr.mxu0 0.0
      %1205 = vmatpush1.msra.mxu0 0.0
      %1206 = vmatprep.subr.mxu0 0.0
      %1207 = vmatpush1.msra.mxu0 %v873
      %1208 = vmatprep.subr.mxu0 0.0
      %1209 = vmatpush1.msra.mxu0 %v872
      %1210 = vmatprep.subr.mxu0 0.0
      %1211 = vmatpush1.msra.mxu0 %v871
      %1212 = vmatprep.subr.mxu0 0.0
      %1213 = vmatpush1.msra.mxu0 %v870
      %1214 = vmatprep.subr.mxu0 0.0
      %1215 = vmatpush2.msra.mxu0 0.0
      %1216 = vmatprep.subr.mxu0 0.0
      %1217 = vmatpush2.msra.mxu0 0.0
      %1218 = vmatprep.subr.mxu0 0.0
      %1219 = vmatpush2.msra.mxu0 0.0
      %1220 = vmatprep.subr.mxu0 0.0
      %1221 = vmatpush2.msra.mxu0 0.0
      %1222 = vmatprep.subr.mxu0 0.0
      %1223 = vmatpush2.msra.mxu0 0.0
      %1224 = vmatprep.subr.mxu0 0.0
      %1225 = vmatpush2.msra.mxu0 0.0
      %1226 = vmatprep.subr.mxu0 0.0
      %1227 = vmatpush2.msra.mxu0 0.0
      %1228 = vmatprep.subr.mxu0 0.0
      %1229 = vmatpush2.msra.mxu0 0.0
      %1230 = vmatprep.subr.mxu0 0.0
      %1231 = vmatpush2.msra.mxu0 0.0
      %1232 = vmatprep.subr.mxu0 0.0
      %1233 = vmatpush2.msra.mxu0 0.0
      %1234 = vmatprep.subr.mxu0 0.0
      %1235 = vmatpush2.msra.mxu0 0.0
      %1236 = vmatprep.subr.mxu0 0.0
      %1237 = vmatpush2.msra.mxu0 0.0
      %1238 = vmatprep.subr.mxu0 0.0
      %1239 = vmatpush2.msra.mxu0 0.0
      %1240 = vmatprep.subr.mxu0 0.0
      %1241 = vmatpush2.msra.mxu0 0.0
      %1242 = vmatprep.subr.mxu0 0.0
      %1243 = vmatpush2.msra.mxu0 0.0
      %1244 = vmatprep.subr.mxu0 0.0
      %1245 = vmatpush2.msra.mxu0 0.0
      %1246 = vmatprep.mubr.f32.mxu0 0.0
      %1247 = vmatmul.mubr.f32.gmra.mxu0 %v1180
      %v1248 = vpop.f32.mrf.mxu0
      %v1249 = vadd.f32 0.0, %v1248
      %v1250 = vpop.f32.mrf.mxu0
      %1251 = vdwg.mxu0
      %v1253 = vsel %vm886, %v851, 0
      %1255 = vmatprep.subr.mxu0 0.0
      %1256 = vmatpush1.msra.mxu0 0.0
      %1257 = vmatprep.subr.mxu0 0.0
      %1258 = vmatpush1.msra.mxu0 0.0
      %1259 = vmatprep.subr.mxu0 0.0
      %1260 = vmatpush1.msra.mxu0 0.0
      %1261 = vmatprep.subr.mxu0 0.0
      %1262 = vmatpush1.msra.mxu0 0.0
      %1263 = vmatprep.subr.mxu0 0.0
      %1264 = vmatpush1.msra.mxu0 0.0
      %1265 = vmatprep.subr.mxu0 0.0
      %1266 = vmatpush1.msra.mxu0 0.0
      %1267 = vmatprep.subr.mxu0 0.0
      %1268 = vmatpush1.msra.mxu0 0.0
      %1269 = vmatprep.subr.mxu0 0.0
      %1270 = vmatpush1.msra.mxu0 0.0
      %1271 = vmatprep.subr.mxu0 0.0
      %1272 = vmatpush1.msra.mxu0 0.0
      %1273 = vmatprep.subr.mxu0 0.0
      %1274 = vmatpush1.msra.mxu0 0.0
      %1275 = vmatprep.subr.mxu0 0.0
      %1276 = vmatpush1.msra.mxu0 0.0
      %1277 = vmatprep.subr.mxu0 0.0
      %1278 = vmatpush1.msra.mxu0 0.0
      %1279 = vmatprep.subr.mxu0 0.0
      %1280 = vmatpush1.msra.mxu0 %v877
      %1281 = vmatprep.subr.mxu0 0.0
      %1282 = vmatpush1.msra.mxu0 %v876
      %1283 = vmatprep.subr.mxu0 0.0
      %1284 = vmatpush1.msra.mxu0 %v875
      %1285 = vmatprep.subr.mxu0 0.0
      %1286 = vmatpush1.msra.mxu0 %v874
      %1287 = vmatprep.subr.mxu0 0.0
      %1288 = vmatpush2.msra.mxu0 0.0
      %1289 = vmatprep.subr.mxu0 0.0
      %1290 = vmatpush2.msra.mxu0 0.0
      %1291 = vmatprep.subr.mxu0 0.0
      %1292 = vmatpush2.msra.mxu0 0.0
      %1293 = vmatprep.subr.mxu0 0.0
      %1294 = vmatpush2.msra.mxu0 0.0
      %1295 = vmatprep.subr.mxu0 0.0
      %1296 = vmatpush2.msra.mxu0 0.0
      %1297 = vmatprep.subr.mxu0 0.0
      %1298 = vmatpush2.msra.mxu0 0.0
      %1299 = vmatprep.subr.mxu0 0.0
      %1300 = vmatpush2.msra.mxu0 0.0
      %1301 = vmatprep.subr.mxu0 0.0
      %1302 = vmatpush2.msra.mxu0 0.0
      %1303 = vmatprep.subr.mxu0 0.0
      %1304 = vmatpush2.msra.mxu0 0.0
      %1305 = vmatprep.subr.mxu0 0.0
      %1306 = vmatpush2.msra.mxu0 0.0
      %1307 = vmatprep.subr.mxu0 0.0
      %1308 = vmatpush2.msra.mxu0 0.0
      %1309 = vmatprep.subr.mxu0 0.0
      %1310 = vmatpush2.msra.mxu0 0.0
      %1311 = vmatprep.subr.mxu0 0.0
      %1312 = vmatpush2.msra.mxu0 0.0
      %1313 = vmatprep.subr.mxu0 0.0
      %1314 = vmatpush2.msra.mxu0 0.0
      %1315 = vmatprep.subr.mxu0 0.0
      %1316 = vmatpush2.msra.mxu0 0.0
      %1317 = vmatprep.subr.mxu0 0.0
      %1318 = vmatpush2.msra.mxu0 0.0
      %1319 = vmatprep.mubr.f32.mxu0 0.0
      %1320 = vmatmul.mubr.f32.gmra.mxu0 %v1253
      %v1321 = vpop.f32.mrf.mxu0
      %v1322 = vadd.f32 0.0, %v1321
      %v1323 = vpop.f32.mrf.mxu0
      %1324 = vdwg.mxu0
      %v1326 = vsel %vm886, %v852, 0
      %1328 = vmatprep.subr.mxu0 0.0
      %1329 = vmatpush1.msra.mxu0 0.0
      %1330 = vmatprep.subr.mxu0 0.0
      %1331 = vmatpush1.msra.mxu0 0.0
      %1332 = vmatprep.subr.mxu0 0.0
      %1333 = vmatpush1.msra.mxu0 0.0
      %1334 = vmatprep.subr.mxu0 0.0
      %1335 = vmatpush1.msra.mxu0 0.0
      %1336 = vmatprep.subr.mxu0 0.0
      %1337 = vmatpush1.msra.mxu0 0.0
      %1338 = vmatprep.subr.mxu0 0.0
      %1339 = vmatpush1.msra.mxu0 0.0
      %1340 = vmatprep.subr.mxu0 0.0
      %1341 = vmatpush1.msra.mxu0 0.0
      %1342 = vmatprep.subr.mxu0 0.0
      %1343 = vmatpush1.msra.mxu0 0.0
      %1344 = vmatprep.subr.mxu0 0.0
      %1345 = vmatpush1.msra.mxu0 0.0
      %1346 = vmatprep.subr.mxu0 0.0
      %1347 = vmatpush1.msra.mxu0 0.0
      %1348 = vmatprep.subr.mxu0 0.0
      %1349 = vmatpush1.msra.mxu0 0.0
      %1350 = vmatprep.subr.mxu0 0.0
      %1351 = vmatpush1.msra.mxu0 0.0
      %1352 = vmatprep.subr.mxu0 0.0
      %1353 = vmatpush1.msra.mxu0 %v881
      %1354 = vmatprep.subr.mxu0 0.0
      %1355 = vmatpush1.msra.mxu0 %v880
      %1356 = vmatprep.subr.mxu0 0.0
      %1357 = vmatpush1.msra.mxu0 %v879
      %1358 = vmatprep.subr.mxu0 0.0
      %1359 = vmatpush1.msra.mxu0 %v878
      %1360 = vmatprep.subr.mxu0 0.0
      %1361 = vmatpush2.msra.mxu0 0.0
      %1362 = vmatprep.subr.mxu0 0.0
      %1363 = vmatpush2.msra.mxu0 0.0
      %1364 = vmatprep.subr.mxu0 0.0
      %1365 = vmatpush2.msra.mxu0 0.0
      %1366 = vmatprep.subr.mxu0 0.0
      %1367 = vmatpush2.msra.mxu0 0.0
      %1368 = vmatprep.subr.mxu0 0.0
      %1369 = vmatpush2.msra.mxu0 0.0
      %1370 = vmatprep.subr.mxu0 0.0
      %1371 = vmatpush2.msra.mxu0 0.0
      %1372 = vmatprep.subr.mxu0 0.0
      %1373 = vmatpush2.msra.mxu0 0.0
      %1374 = vmatprep.subr.mxu0 0.0
      %1375 = vmatpush2.msra.mxu0 0.0
      %1376 = vmatprep.subr.mxu0 0.0
      %1377 = vmatpush2.msra.mxu0 0.0
      %1378 = vmatprep.subr.mxu0 0.0
      %1379 = vmatpush2.msra.mxu0 0.0
      %1380 = vmatprep.subr.mxu0 0.0
      %1381 = vmatpush2.msra.mxu0 0.0
      %1382 = vmatprep.subr.mxu0 0.0
      %1383 = vmatpush2.msra.mxu0 0.0
      %1384 = vmatprep.subr.mxu0 0.0
      %1385 = vmatpush2.msra.mxu0 0.0
      %1386 = vmatprep.subr.mxu0 0.0
      %1387 = vmatpush2.msra.mxu0 0.0
      %1388 = vmatprep.subr.mxu0 0.0
      %1389 = vmatpush2.msra.mxu0 0.0
      %1390 = vmatprep.subr.mxu0 0.0
      %1391 = vmatpush2.msra.mxu0 0.0
      %1392 = vmatprep.mubr.f32.mxu0 0.0
      %1393 = vmatmul.mubr.f32.gmra.mxu0 %v1326
      %v1394 = vpop.f32.mrf.mxu0
      %v1395 = vadd.f32 0.0, %v1394
      %v1396 = vpop.f32.mrf.mxu0
      %1397 = vdwg.mxu0
      %v1399 = vsel %vm886, %v853, 0
      %1401 = vmatprep.subr.mxu0 0.0
      %1402 = vmatpush1.msra.mxu0 0.0
      %1403 = vmatprep.subr.mxu0 0.0
      %1404 = vmatpush1.msra.mxu0 0.0
      %1405 = vmatprep.subr.mxu0 0.0
      %1406 = vmatpush1.msra.mxu0 0.0
      %1407 = vmatprep.subr.mxu0 0.0
      %1408 = vmatpush1.msra.mxu0 0.0
      %1409 = vmatprep.subr.mxu0 0.0
      %1410 = vmatpush1.msra.mxu0 0.0
      %1411 = vmatprep.subr.mxu0 0.0
      %1412 = vmatpush1.msra.mxu0 0.0
      %1413 = vmatprep.subr.mxu0 0.0
      %1414 = vmatpush1.msra.mxu0 0.0
      %1415 = vmatprep.subr.mxu0 0.0
      %1416 = vmatpush1.msra.mxu0 0.0
      %1417 = vmatprep.subr.mxu0 0.0
      %1418 = vmatpush1.msra.mxu0 0.0
      %1419 = vmatprep.subr.mxu0 0.0
      %1420 = vmatpush1.msra.mxu0 0.0
      %1421 = vmatprep.subr.mxu0 0.0
      %1422 = vmatpush1.msra.mxu0 0.0
      %1423 = vmatprep.subr.mxu0 0.0
      %1424 = vmatpush1.msra.mxu0 0.0
      %1425 = vmatprep.subr.mxu0 0.0
      %1426 = vmatpush1.msra.mxu0 %v885
      %1427 = vmatprep.subr.mxu0 0.0
      %1428 = vmatpush1.msra.mxu0 %v884
      %1429 = vmatprep.subr.mxu0 0.0
      %1430 = vmatpush1.msra.mxu0 %v883
      %1431 = vmatprep.subr.mxu0 0.0
      %1432 = vmatpush1.msra.mxu0 %v882
      %1433 = vmatprep.subr.mxu0 0.0
      %1434 = vmatpush2.msra.mxu0 0.0
      %1435 = vmatprep.subr.mxu0 0.0
      %1436 = vmatpush2.msra.mxu0 0.0
      %1437 = vmatprep.subr.mxu0 0.0
      %1438 = vmatpush2.msra.mxu0 0.0
      %1439 = vmatprep.subr.mxu0 0.0
      %1440 = vmatpush2.msra.mxu0 0.0
      %1441 = vmatprep.subr.mxu0 0.0
      %1442 = vmatpush2.msra.mxu0 0.0
      %1443 = vmatprep.subr.mxu0 0.0
      %1444 = vmatpush2.msra.mxu0 0.0
      %1445 = vmatprep.subr.mxu0 0.0
      %1446 = vmatpush2.msra.mxu0 0.0
      %1447 = vmatprep.subr.mxu0 0.0
      %1448 = vmatpush2.msra.mxu0 0.0
      %1449 = vmatprep.subr.mxu0 0.0
      %1450 = vmatpush2.msra.mxu0 0.0
      %1451 = vmatprep.subr.mxu0 0.0
      %1452 = vmatpush2.msra.mxu0 0.0
      %1453 = vmatprep.subr.mxu0 0.0
      %1454 = vmatpush2.msra.mxu0 0.0
      %1455 = vmatprep.subr.mxu0 0.0
      %1456 = vmatpush2.msra.mxu0 0.0
      %1457 = vmatprep.subr.mxu0 0.0
      %1458 = vmatpush2.msra.mxu0 0.0
      %1459 = vmatprep.subr.mxu0 0.0
      %1460 = vmatpush2.msra.mxu0 0.0
      %1461 = vmatprep.subr.mxu0 0.0
      %1462 = vmatpush2.msra.mxu0 0.0
      %1463 = vmatprep.subr.mxu0 0.0
      %1464 = vmatpush2.msra.mxu0 0.0
      %1465 = vmatprep.mubr.f32.mxu0 0.0
      %1466 = vmatmul.mubr.f32.gmra.mxu0 %v1399
      %v1467 = vpop.f32.mrf.mxu0
      %v1468 = vadd.f32 0.0, %v1467
      %v1469 = vpop.f32.mrf.mxu0
      %1470 = vdwg.mxu0
      %v1479 = vrot.slane %v1030, 7
      %vm1480 = vcmask 1041409
      %v1481 = vsel %vm1480, %v1479, %v957
      %v1482 = vrot.slane %v1103, 6
      %vm1483 = vcmask 1042434
      %v1484 = vsel %vm1483, %v1482, %v1481
      %v1485 = vrot.slane %v1176, 5
      %vm1486 = vcmask 1043459
      %v1487 = vsel %vm1486, %v1485, %v1484
      %v1488 = vrot.slane %v1249, 4
      %vm1489 = vcmask 1044484
      %v1490 = vsel %vm1489, %v1488, %v1487
      %v1491 = vrot.slane %v1322, 3
      %vm1492 = vcmask 1045509
      %v1493 = vsel %vm1492, %v1491, %v1490
      %v1494 = vrot.slane %v1395, 2
      %vm1495 = vcmask 1046534
      %v1496 = vsel %vm1495, %v1494, %v1493
      %v1497 = vrot.slane %v1468, 1
      %vm1498 = vcmask 1047559
      %v1499 = vsel %vm1498, %v1497, %v1496
      %vm1501 = vcmask 64512
      %v1503 = vsel %vm1501, %v76, 0
      %v1506 = vsel %vm1501, %v77, 0
      %1508 = vmatprep.subr.mxu0 0.0
      %1509 = vmatpush1.msra.mxu0 0.0
      %1510 = vmatprep.subr.mxu0 0.0
      %1511 = vmatpush1.msra.mxu0 0.0
      %1512 = vmatprep.subr.mxu0 0.0
      %1513 = vmatpush1.msra.mxu0 0.0
      %1514 = vmatprep.subr.mxu0 0.0
      %1515 = vmatpush1.msra.mxu0 0.0
      %1516 = vmatprep.subr.mxu0 0.0
      %1517 = vmatpush1.msra.mxu0 0.0
      %1518 = vmatprep.subr.mxu0 0.0
      %1519 = vmatpush1.msra.mxu0 0.0
      %1520 = vmatprep.subr.mxu0 0.0
      %1521 = vmatpush1.msra.mxu0 0.0
      %1522 = vmatprep.subr.mxu0 0.0
      %1523 = vmatpush1.msra.mxu0 0.0
      %1524 = vmatprep.subr.mxu0 0.0
      %1525 = vmatpush1.msra.mxu0 0.0
      %1526 = vmatprep.subr.mxu0 0.0
      %1527 = vmatpush1.msra.mxu0 0.0
      %1528 = vmatprep.subr.mxu0 0.0
      %1529 = vmatpush1.msra.mxu0 0.0
      %1530 = vmatprep.subr.mxu0 0.0
      %1531 = vmatpush1.msra.mxu0 0.0
      %1532 = vmatprep.subr.mxu0 0.0
      %1533 = vmatpush1.msra.mxu0 0.0
      %1534 = vmatprep.subr.mxu0 0.0
      %1535 = vmatpush1.msra.mxu0 0.0
      %1536 = vmatprep.subr.mxu0 0.0
      %1537 = vmatpush1.msra.mxu0 0.0
      %1538 = vmatprep.subr.mxu0 0.0
      %1539 = vmatpush1.msra.mxu0 %v1499
      %1540 = vmatprep.subr.mxu0 0.0
      %1541 = vmatpush2.msra.mxu0 0.0
      %1542 = vmatprep.subr.mxu0 0.0
      %1543 = vmatpush2.msra.mxu0 0.0
      %1544 = vmatprep.subr.mxu0 0.0
      %1545 = vmatpush2.msra.mxu0 0.0
      %1546 = vmatprep.subr.mxu0 0.0
      %1547 = vmatpush2.msra.mxu0 0.0
      %1548 = vmatprep.subr.mxu0 0.0
      %1549 = vmatpush2.msra.mxu0 0.0
      %1550 = vmatprep.subr.mxu0 0.0
      %1551 = vmatpush2.msra.mxu0 0.0
      %1552 = vmatprep.subr.mxu0 0.0
      %1553 = vmatpush2.msra.mxu0 0.0
      %1554 = vmatprep.subr.mxu0 0.0
      %1555 = vmatpush2.msra.mxu0 0.0
      %1556 = vmatprep.subr.mxu0 0.0
      %1557 = vmatpush2.msra.mxu0 0.0
      %1558 = vmatprep.subr.mxu0 0.0
      %1559 = vmatpush2.msra.mxu0 0.0
      %1560 = vmatprep.subr.mxu0 0.0
      %1561 = vmatpush2.msra.mxu0 0.0
      %1562 = vmatprep.subr.mxu0 0.0
      %1563 = vmatpush2.msra.mxu0 0.0
      %1564 = vmatprep.subr.mxu0 0.0
      %1565 = vmatpush2.msra.mxu0 0.0
      %1566 = vmatprep.subr.mxu0 0.0
      %1567 = vmatpush2.msra.mxu0 0.0
      %1568 = vmatprep.subr.mxu0 0.0
      %1569 = vmatpush2.msra.mxu0 0.0
      %1570 = vmatprep.subr.mxu0 0.0
      %1571 = vmatpush2.msra.mxu0 0.0
      %1572 = vmatprep.mubr.f32.mxu0 0.0
      %1573 = vmatmul.mubr.f32.gmra.mxu0 %v1503
      %v1574 = vpop.f32.mrf.mxu0
      %v1575 = vadd.f32 0.0, %v1574
      %v1576 = vpop.f32.mrf.mxu0
      %1577 = vmatprep.mubr.f32.mxu0 0.0
      %1578 = vmatmul.mubr.f32.gmra.mxu0 %v1506
      %v1579 = vpop.f32.mrf.mxu0
      %v1580 = vadd.f32 0.0, %v1579
      %v1581 = vpop.f32.mrf.mxu0
      %1582 = vdwg.mxu0
      %v1583 = vld [vmem:[%s4] sm:$0xff]
      %v1584 = vld [vmem:[%s4 + $0x8] sm:$0xff]
      %v1585 = vld [vmem:[%s4 + $0x10] sm:$0xff]
      %v1586 = vld [vmem:[%s4 + $0x18] sm:$0xff]
      %v1588 = vsel %vm886, %v1575, 0
      %v1591 = vsel %vm886, %v1580, 0
      %1593 = vmatprep.subr.mxu0 0.0
      %1594 = vmatpush1.msra.mxu0 0.0
      %1595 = vmatprep.subr.mxu0 0.0
      %1596 = vmatpush1.msra.mxu0 0.0
      %1597 = vmatprep.subr.mxu0 0.0
      %1598 = vmatpush1.msra.mxu0 0.0
      %1599 = vmatprep.subr.mxu0 0.0
      %1600 = vmatpush1.msra.mxu0 0.0
      %1601 = vmatprep.subr.mxu0 0.0
      %1602 = vmatpush1.msra.mxu0 0.0
      %1603 = vmatprep.subr.mxu0 0.0
      %1604 = vmatpush1.msra.mxu0 0.0
      %1605 = vmatprep.subr.mxu0 0.0
      %1606 = vmatpush1.msra.mxu0 0.0
      %1607 = vmatprep.subr.mxu0 0.0
      %1608 = vmatpush1.msra.mxu0 0.0
      %1609 = vmatprep.subr.mxu0 0.0
      %1610 = vmatpush1.msra.mxu0 0.0
      %1611 = vmatprep.subr.mxu0 0.0
      %1612 = vmatpush1.msra.mxu0 0.0
      %1613 = vmatprep.subr.mxu0 0.0
      %1614 = vmatpush1.msra.mxu0 0.0
      %1615 = vmatprep.subr.mxu0 0.0
      %1616 = vmatpush1.msra.mxu0 0.0
      %1617 = vmatprep.subr.mxu0 0.0
      %1618 = vmatpush1.msra.mxu0 %v1586
      %1619 = vmatprep.subr.mxu0 0.0
      %1620 = vmatpush1.msra.mxu0 %v1585
      %1621 = vmatprep.subr.mxu0 0.0
      %1622 = vmatpush1.msra.mxu0 %v1584
      %1623 = vmatprep.subr.mxu0 0.0
      %1624 = vmatpush1.msra.mxu0 %v1583
      %1625 = vmatprep.subr.mxu0 0.0
      %1626 = vmatpush2.msra.mxu0 0.0
      %1627 = vmatprep.subr.mxu0 0.0
      %1628 = vmatpush2.msra.mxu0 0.0
      %1629 = vmatprep.subr.mxu0 0.0
      %1630 = vmatpush2.msra.mxu0 0.0
      %1631 = vmatprep.subr.mxu0 0.0
      %1632 = vmatpush2.msra.mxu0 0.0
      %1633 = vmatprep.subr.mxu0 0.0
      %1634 = vmatpush2.msra.mxu0 0.0
      %1635 = vmatprep.subr.mxu0 0.0
      %1636 = vmatpush2.msra.mxu0 0.0
      %1637 = vmatprep.subr.mxu0 0.0
      %1638 = vmatpush2.msra.mxu0 0.0
      %1639 = vmatprep.subr.mxu0 0.0
      %1640 = vmatpush2.msra.mxu0 0.0
      %1641 = vmatprep.subr.mxu0 0.0
      %1642 = vmatpush2.msra.mxu0 0.0
      %1643 = vmatprep.subr.mxu0 0.0
      %1644 = vmatpush2.msra.mxu0 0.0
      %1645 = vmatprep.subr.mxu0 0.0
      %1646 = vmatpush2.msra.mxu0 0.0
      %1647 = vmatprep.subr.mxu0 0.0
      %1648 = vmatpush2.msra.mxu0 0.0
      %1649 = vmatprep.subr.mxu0 0.0
      %1650 = vmatpush2.msra.mxu0 0.0
      %1651 = vmatprep.subr.mxu0 0.0
      %1652 = vmatpush2.msra.mxu0 0.0
      %1653 = vmatprep.subr.mxu0 0.0
      %1654 = vmatpush2.msra.mxu0 0.0
      %1655 = vmatprep.subr.mxu0 0.0
      %1656 = vmatpush2.msra.mxu0 0.0
      %1657 = vmatprep.mubr.f32.mxu0 0.0
      %1658 = vmatmul.mubr.f32.gmra.mxu0 %v1588
      %v1659 = vpop.f32.mrf.mxu0
      %v1660 = vadd.f32 0.0, %v1659
      %v1661 = vpop.f32.mrf.mxu0
      %1662 = vmatprep.mubr.f32.mxu0 0.0
      %1663 = vmatmul.mubr.f32.gmra.mxu0 %v1591
      %v1664 = vpop.f32.mrf.mxu0
      %v1665 = vadd.f32 0.0, %v1664
      %v1666 = vpop.f32.mrf.mxu0
      %1667 = vdwg.mxu0
      %v1668 = vld [vmem:[%s4 + $0x20] sm:$0xff]
      %v1669 = vld [vmem:[%s4 + $0x28] sm:$0xff]
      %v1670 = vld [vmem:[%s4 + $0x30] sm:$0xff]
      %v1671 = vld [vmem:[%s4 + $0x38] sm:$0xff]
      %1672 = vmatprep.subr.mxu0 0.0
      %1673 = vmatpush1.msra.mxu0 0.0
      %1674 = vmatprep.subr.mxu0 0.0
      %1675 = vmatpush1.msra.mxu0 0.0
      %1676 = vmatprep.subr.mxu0 0.0
      %1677 = vmatpush1.msra.mxu0 0.0
      %1678 = vmatprep.subr.mxu0 0.0
      %1679 = vmatpush1.msra.mxu0 0.0
      %1680 = vmatprep.subr.mxu0 0.0
      %1681 = vmatpush1.msra.mxu0 0.0
      %1682 = vmatprep.subr.mxu0 0.0
      %1683 = vmatpush1.msra.mxu0 0.0
      %1684 = vmatprep.subr.mxu0 0.0
      %1685 = vmatpush1.msra.mxu0 0.0
      %1686 = vmatprep.subr.mxu0 0.0
      %1687 = vmatpush1.msra.mxu0 0.0
      %1688 = vmatprep.subr.mxu0 0.0
      %1689 = vmatpush1.msra.mxu0 0.0
      %1690 = vmatprep.subr.mxu0 0.0
      %1691 = vmatpush1.msra.mxu0 0.0
      %1692 = vmatprep.subr.mxu0 0.0
      %1693 = vmatpush1.msra.mxu0 0.0
      %1694 = vmatprep.subr.mxu0 0.0
      %1695 = vmatpush1.msra.mxu0 0.0
      %1696 = vmatprep.subr.mxu0 0.0
      %1697 = vmatpush1.msra.mxu0 %v1671
      %1698 = vmatprep.subr.mxu0 0.0
      %1699 = vmatpush1.msra.mxu0 %v1670
      %1700 = vmatprep.subr.mxu0 0.0
      %1701 = vmatpush1.msra.mxu0 %v1669
      %1702 = vmatprep.subr.mxu0 0.0
      %1703 = vmatpush1.msra.mxu0 %v1668
      %1704 = vmatprep.subr.mxu0 0.0
      %1705 = vmatpush2.msra.mxu0 0.0
      %1706 = vmatprep.subr.mxu0 0.0
      %1707 = vmatpush2.msra.mxu0 0.0
      %1708 = vmatprep.subr.mxu0 0.0
      %1709 = vmatpush2.msra.mxu0 0.0
      %1710 = vmatprep.subr.mxu0 0.0
      %1711 = vmatpush2.msra.mxu0 0.0
      %1712 = vmatprep.subr.mxu0 0.0
      %1713 = vmatpush2.msra.mxu0 0.0
      %1714 = vmatprep.subr.mxu0 0.0
      %1715 = vmatpush2.msra.mxu0 0.0
      %1716 = vmatprep.subr.mxu0 0.0
      %1717 = vmatpush2.msra.mxu0 0.0
      %1718 = vmatprep.subr.mxu0 0.0
      %1719 = vmatpush2.msra.mxu0 0.0
      %1720 = vmatprep.subr.mxu0 0.0
      %1721 = vmatpush2.msra.mxu0 0.0
      %1722 = vmatprep.subr.mxu0 0.0
      %1723 = vmatpush2.msra.mxu0 0.0
      %1724 = vmatprep.subr.mxu0 0.0
      %1725 = vmatpush2.msra.mxu0 0.0
      %1726 = vmatprep.subr.mxu0 0.0
      %1727 = vmatpush2.msra.mxu0 0.0
      %1728 = vmatprep.subr.mxu0 0.0
      %1729 = vmatpush2.msra.mxu0 0.0
      %1730 = vmatprep.subr.mxu0 0.0
      %1731 = vmatpush2.msra.mxu0 0.0
      %1732 = vmatprep.subr.mxu0 0.0
      %1733 = vmatpush2.msra.mxu0 0.0
      %1734 = vmatprep.subr.mxu0 0.0
      %1735 = vmatpush2.msra.mxu0 0.0
      %1736 = vmatprep.mubr.f32.mxu0 0.0
      %1737 = vmatmul.mubr.f32.gmra.mxu0 %v1588
      %v1738 = vpop.f32.mrf.mxu0
      %v1739 = vadd.f32 0.0, %v1738
      %v1740 = vpop.f32.mrf.mxu0
      %1741 = vmatprep.mubr.f32.mxu0 0.0
      %1742 = vmatmul.mubr.f32.gmra.mxu0 %v1591
      %v1743 = vpop.f32.mrf.mxu0
      %v1744 = vadd.f32 0.0, %v1743
      %v1745 = vpop.f32.mrf.mxu0
      %1746 = vdwg.mxu0
      %1747 = vst.msk [vmem:[#allocation2] sm:$0xff] %vm886, %v1660
      %1748 = vst.msk [vmem:[#allocation2 + $0x8] sm:$0xff] %vm886, %v1665
      %1749 = vst.msk [vmem:[#allocation2 + $0x10] sm:$0xff] %vm886, %v1739
      %1750 = vst.msk [vmem:[#allocation2 + $0x18] sm:$0xff] %vm886, %v1744
    $region45: #{tpu_custom_call.1} parent=1 // pred_fallthru
      _
    %v1751 = vld [vmem:[#allocation2] sm:$0xff]
    %v1752 = vld [vmem:[#allocation2 + $0x8] sm:$0xff]
    %v1753 = vld [vmem:[#allocation2 + $0x10] sm:$0xff]
    %v1754 = vld [vmem:[#allocation2 + $0x18] sm:$0xff]
    %v1755 = vld [vmem:[%s67] sm:$0x3f]
    %v1756 = vlaneseq
    %v1757 = vshrl.u32 %v1756, 7
    %v1758 = vadd.s32 %v1757, 8
    %v1759 = vadd.s32 %v1757, 16
    %v1760 = vadd.s32 %v1757, 24
    %v1761 = vlaneseq
    %v1762 = vshrl.u32 %v1761, 7
    %v1763 = vsub.s32 0, %v1762
    %v1764 = vrot.slane %v1755, %v1763
    %v1765 = vlaneseq
    %v1766 = vshrl.u32 %v1765, 7
    %v1767 = vsub.s32 2, %v1766
    %v1768 = vrot.slane %v1755, %v1767
    %v1769 = vlaneseq
    %v1770 = vshrl.u32 %v1769, 7
    %v1771 = vsub.s32 4, %v1770
    %v1772 = vrot.slane %v1755, %v1771
    %v1773 = vlaneseq
    %v1774 = vshrl.u32 %v1773, 7
    %v1775 = vsub.s32 0, %v1774
    %v1776 = vrot.slane %v1764, %v1775
    %v1777 = vlaneseq
    %v1778 = vshrl.u32 %v1777, 7
    %v1779 = vsub.s32 0, %v1778
    %v1780 = vrot.slane %v1768, %v1779
    %v1781 = vlaneseq
    %v1782 = vshrl.u32 %v1781, 7
    %v1783 = vsub.s32 0, %v1782
    %v1784 = vrot.slane %v1772, %v1783
    %vm1785 = vcmp.eq.s32.totalorder %v1757, %v1776
    %vm1786 = vcmp.eq.s32.totalorder %v1757, %v1780
    %vm1787 = vcmp.eq.s32.totalorder %v1757, %v1784
    %vm1788 = vcmp.eq.s32.totalorder %v1758, %v1776
    %vm1789 = vcmp.eq.s32.totalorder %v1758, %v1780
    %vm1790 = vcmp.eq.s32.totalorder %v1758, %v1784
    %vm1791 = vcmp.eq.s32.totalorder %v1759, %v1776
    %vm1792 = vcmp.eq.s32.totalorder %v1759, %v1780
    %vm1793 = vcmp.eq.s32.totalorder %v1759, %v1784
    %vm1794 = vcmp.eq.s32.totalorder %v1760, %v1776
    %vm1795 = vcmp.eq.s32.totalorder %v1760, %v1780
    %vm1796 = vcmp.eq.s32.totalorder %v1760, %v1784
    %v1797 = vadd.s32 %v1755, 16
    %v1798 = vlaneseq
    %v1799 = vshrl.u32 %v1798, 7
    %v1800 = vsub.s32 1, %v1799
    %v1801 = vrot.slane %v1797, %v1800
    %v1802 = vlaneseq
    %v1803 = vshrl.u32 %v1802, 7
    %v1804 = vsub.s32 3, %v1803
    %v1805 = vrot.slane %v1797, %v1804
    %v1806 = vlaneseq
    %v1807 = vshrl.u32 %v1806, 7
    %v1808 = vsub.s32 5, %v1807
    %v1809 = vrot.slane %v1797, %v1808
    %v1810 = vlaneseq
    %v1811 = vshrl.u32 %v1810, 7
    %v1812 = vsub.s32 1, %v1811
    %v1813 = vrot.slane %v1801, %v1812
    %v1814 = vlaneseq
    %v1815 = vshrl.u32 %v1814, 7
    %v1816 = vsub.s32 1, %v1815
    %v1817 = vrot.slane %v1805, %v1816
    %v1818 = vlaneseq
    %v1819 = vshrl.u32 %v1818, 7
    %v1820 = vsub.s32 1, %v1819
    %v1821 = vrot.slane %v1809, %v1820
    %vm1822 = vcmp.eq.s32.totalorder %v1757, %v1813
    %vm1823 = vcmp.eq.s32.totalorder %v1757, %v1817
    %vm1824 = vcmp.eq.s32.totalorder %v1757, %v1821
    %vm1825 = vcmp.eq.s32.totalorder %v1758, %v1813
    %vm1826 = vcmp.eq.s32.totalorder %v1758, %v1817
    %vm1827 = vcmp.eq.s32.totalorder %v1758, %v1821
    %vm1828 = vcmp.eq.s32.totalorder %v1759, %v1813
    %vm1829 = vcmp.eq.s32.totalorder %v1759, %v1817
    %vm1830 = vcmp.eq.s32.totalorder %v1759, %v1821
    %vm1831 = vcmp.eq.s32.totalorder %v1760, %v1813
    %vm1832 = vcmp.eq.s32.totalorder %v1760, %v1817
    %vm1833 = vcmp.eq.s32.totalorder %v1760, %v1821
    %vm1834 = vmor %vm1785, %vm1822
    %vm1835 = vmor %vm1786, %vm1823
    %vm1836 = vmor %vm1787, %vm1824
    %vm1837 = vmor %vm1788, %vm1825
    %vm1838 = vmor %vm1789, %vm1826
    %vm1839 = vmor %vm1790, %vm1827
    %vm1840 = vmor %vm1791, %vm1828
    %vm1841 = vmor %vm1792, %vm1829
    %vm1842 = vmor %vm1793, %vm1830
    %vm1843 = vmor %vm1794, %vm1831
    %vm1844 = vmor %vm1795, %vm1832
    %vm1845 = vmor %vm1796, %vm1833
    %v1846 = vsel %vm1834, 1.0, 0.0
    %v1847 = vsel %vm1835, 1.0, 0.0
    %v1848 = vsel %vm1836, 1.0, 0.0
    %v1849 = vsel %vm1837, 1.0, 0.0
    %v1850 = vsel %vm1838, 1.0, 0.0
    %v1851 = vsel %vm1839, 1.0, 0.0
    %v1852 = vsel %vm1840, 1.0, 0.0
    %v1853 = vsel %vm1841, 1.0, 0.0
    %v1854 = vsel %vm1842, 1.0, 0.0
    %v1855 = vsel %vm1843, 1.0, 0.0
    %v1856 = vsel %vm1844, 1.0, 0.0
    %v1857 = vsel %vm1845, 1.0, 0.0
    %v1858 = vld [vmem:[%s5] sm:$0x1]
    %v1860 = vlaneseq
    %v1861 = vshrl.u32 %v1860, 7
    %v1862 = vsub.s32 0, %v1861
    %v1863 = vrot.slane %v1858, %v1862
    %1865 = vxpose.xlu0.b32.start [1/16] %v1846, 128
    %1866 = vxpose.xlu0.b32.cont [2/16] %v1849, 128
    %1867 = vxpose.xlu0.b32.cont [3/16] %v1852, 128
    %1868 = vxpose.xlu0.b32.cont [4/16] %v1855, 128
    %1869 = vxpose.xlu0.b32.cont [5/16] 0.0, 128
    %1870 = vxpose.xlu0.b32.cont [6/16] 0.0, 128
    %1871 = vxpose.xlu0.b32.cont [7/16] 0.0, 128
    %1872 = vxpose.xlu0.b32.cont [8/16] 0.0, 128
    %1873 = vxpose.xlu0.b32.cont [9/16] 0.0, 128
    %1874 = vxpose.xlu0.b32.cont [10/16] 0.0, 128
    %1875 = vxpose.xlu0.b32.cont [11/16] 0.0, 128
    %1876 = vxpose.xlu0.b32.cont [12/16] 0.0, 128
    %1877 = vxpose.xlu0.b32.cont [13/16] 0.0, 128
    %1878 = vxpose.xlu0.b32.cont [14/16] 0.0, 128
    %1879 = vxpose.xlu0.b32.cont [15/16] 0.0, 128
    %1880 = vxpose.xlu0.b32.end [16/16] 0.0, 128
    %v1881 = vpop.trf.xlu0
    %v1882 = vpop.trf.xlu0
    %v1883 = vpop.trf.xlu0
    %v1884 = vpop.trf.xlu0
    %v1885 = vpop.trf.xlu0
    %v1886 = vpop.trf.xlu0
    %v1887 = vpop.trf.xlu0
    %v1888 = vpop.trf.xlu0
    %v1889 = vpop.trf.xlu0
    %v1890 = vpop.trf.xlu0
    %v1891 = vpop.trf.xlu0
    %v1892 = vpop.trf.xlu0
    %v1893 = vpop.trf.xlu0
    %v1894 = vpop.trf.xlu0
    %v1895 = vpop.trf.xlu0
    %v1896 = vpop.trf.xlu0
    %1897 = vxpose.xlu0.b32.start [1/16] %v1847, 128
    %1898 = vxpose.xlu0.b32.cont [2/16] %v1850, 128
    %1899 = vxpose.xlu0.b32.cont [3/16] %v1853, 128
    %1900 = vxpose.xlu0.b32.cont [4/16] %v1856, 128
    %1901 = vxpose.xlu0.b32.cont [5/16] 0.0, 128
    %1902 = vxpose.xlu0.b32.cont [6/16] 0.0, 128
    %1903 = vxpose.xlu0.b32.cont [7/16] 0.0, 128
    %1904 = vxpose.xlu0.b32.cont [8/16] 0.0, 128
    %1905 = vxpose.xlu0.b32.cont [9/16] 0.0, 128
    %1906 = vxpose.xlu0.b32.cont [10/16] 0.0, 128
    %1907 = vxpose.xlu0.b32.cont [11/16] 0.0, 128
    %1908 = vxpose.xlu0.b32.cont [12/16] 0.0, 128
    %1909 = vxpose.xlu0.b32.cont [13/16] 0.0, 128
    %1910 = vxpose.xlu0.b32.cont [14/16] 0.0, 128
    %1911 = vxpose.xlu0.b32.cont [15/16] 0.0, 128
    %1912 = vxpose.xlu0.b32.end [16/16] 0.0, 128
    %v1913 = vpop.trf.xlu0
    %v1914 = vpop.trf.xlu0
    %v1915 = vpop.trf.xlu0
    %v1916 = vpop.trf.xlu0
    %v1917 = vpop.trf.xlu0
    %v1918 = vpop.trf.xlu0
    %v1919 = vpop.trf.xlu0
    %v1920 = vpop.trf.xlu0
    %v1921 = vpop.trf.xlu0
    %v1922 = vpop.trf.xlu0
    %v1923 = vpop.trf.xlu0
    %v1924 = vpop.trf.xlu0
    %v1925 = vpop.trf.xlu0
    %v1926 = vpop.trf.xlu0
    %v1927 = vpop.trf.xlu0
    %v1928 = vpop.trf.xlu0
    %1929 = vxpose.xlu0.b32.start [1/16] %v1848, 128
    %1930 = vxpose.xlu0.b32.cont [2/16] %v1851, 128
    %1931 = vxpose.xlu0.b32.cont [3/16] %v1854, 128
    %1932 = vxpose.xlu0.b32.cont [4/16] %v1857, 128
    %1933 = vxpose.xlu0.b32.cont [5/16] 0.0, 128
    %1934 = vxpose.xlu0.b32.cont [6/16] 0.0, 128
    %1935 = vxpose.xlu0.b32.cont [7/16] 0.0, 128
    %1936 = vxpose.xlu0.b32.cont [8/16] 0.0, 128
    %1937 = vxpose.xlu0.b32.cont [9/16] 0.0, 128
    %1938 = vxpose.xlu0.b32.cont [10/16] 0.0, 128
    %1939 = vxpose.xlu0.b32.cont [11/16] 0.0, 128
    %1940 = vxpose.xlu0.b32.cont [12/16] 0.0, 128
    %1941 = vxpose.xlu0.b32.cont [13/16] 0.0, 128
    %1942 = vxpose.xlu0.b32.cont [14/16] 0.0, 128
    %1943 = vxpose.xlu0.b32.cont [15/16] 0.0, 128
    %1944 = vxpose.xlu0.b32.end [16/16] 0.0, 128
    %v1945 = vpop.trf.xlu0
    %v1946 = vpop.trf.xlu0
    %v1947 = vpop.trf.xlu0
    %v1948 = vpop.trf.xlu0
    %v1949 = vpop.trf.xlu0
    %v1950 = vpop.trf.xlu0
    %v1951 = vpop.trf.xlu0
    %v1952 = vpop.trf.xlu0
    %v1953 = vpop.trf.xlu0
    %v1954 = vpop.trf.xlu0
    %v1955 = vpop.trf.xlu0
    %v1956 = vpop.trf.xlu0
    %v1957 = vpop.trf.xlu0
    %v1958 = vpop.trf.xlu0
    %v1959 = vpop.trf.xlu0
    %v1960 = vpop.trf.xlu0
    %vm1961 = vcmask 261120
    %v1963 = vsel %vm1961, %v1881, 0
    %v1966 = vsel %vm1961, %v1882, 0
    %v1969 = vsel %vm1961, %v1883, 0
    %v1972 = vsel %vm1961, %v1884, 0
    %v1975 = vsel %vm1961, %v1885, 0
    %v1978 = vsel %vm1961, %v1886, 0
    %v1981 = vsel %vm1961, %v1887, 0
    %v1984 = vsel %vm1961, %v1888, 0
    %v1987 = vsel %vm1961, %v1889, 0
    %v1990 = vsel %vm1961, %v1890, 0
    %v1993 = vsel %vm1961, %v1891, 0
    %v1996 = vsel %vm1961, %v1892, 0
    %v1999 = vsel %vm1961, %v1893, 0
    %v2002 = vsel %vm1961, %v1894, 0
    %v2005 = vsel %vm1961, %v1895, 0
    %v2008 = vsel %vm1961, %v1896, 0
    %v2011 = vsel %vm1961, %v1913, 0
    %v2014 = vsel %vm1961, %v1914, 0
    %v2017 = vsel %vm1961, %v1915, 0
    %v2020 = vsel %vm1961, %v1916, 0
    %v2023 = vsel %vm1961, %v1917, 0
    %v2026 = vsel %vm1961, %v1918, 0
    %v2029 = vsel %vm1961, %v1919, 0
    %v2032 = vsel %vm1961, %v1920, 0
    %v2035 = vsel %vm1961, %v1921, 0
    %v2038 = vsel %vm1961, %v1922, 0
    %v2041 = vsel %vm1961, %v1923, 0
    %v2044 = vsel %vm1961, %v1924, 0
    %v2047 = vsel %vm1961, %v1925, 0
    %v2050 = vsel %vm1961, %v1926, 0
    %v2053 = vsel %vm1961, %v1927, 0
    %v2056 = vsel %vm1961, %v1928, 0
    %v2059 = vsel %vm1961, %v1945, 0
    %v2062 = vsel %vm1961, %v1946, 0
    %v2065 = vsel %vm1961, %v1947, 0
    %v2068 = vsel %vm1961, %v1948, 0
    %v2071 = vsel %vm1961, %v1949, 0
    %v2074 = vsel %vm1961, %v1950, 0
    %v2077 = vsel %vm1961, %v1951, 0
    %v2080 = vsel %vm1961, %v1952, 0
    %v2083 = vsel %vm1961, %v1953, 0
    %v2086 = vsel %vm1961, %v1954, 0
    %v2089 = vsel %vm1961, %v1955, 0
    %v2092 = vsel %vm1961, %v1956, 0
    %v2095 = vsel %vm1961, %v1957, 0
    %v2098 = vsel %vm1961, %v1958, 0
    %v2101 = vsel %vm1961, %v1959, 0
    %v2104 = vsel %vm1961, %v1960, 0
    %2106 = vmatprep.subr.mxu0 0.0
    %2107 = vmatpush1.msra.mxu0 0.0
    %2108 = vmatprep.subr.mxu0 0.0
    %2109 = vmatpush1.msra.mxu0 0.0
    %2110 = vmatprep.subr.mxu0 0.0
    %2111 = vmatpush1.msra.mxu0 0.0
    %2112 = vmatprep.subr.mxu0 0.0
    %2113 = vmatpush1.msra.mxu0 0.0
    %2114 = vmatprep.subr.mxu0 0.0
    %2115 = vmatpush1.msra.mxu0 0.0
    %2116 = vmatprep.subr.mxu0 0.0
    %2117 = vmatpush1.msra.mxu0 0.0
    %2118 = vmatprep.subr.mxu0 0.0
    %2119 = vmatpush1.msra.mxu0 0.0
    %2120 = vmatprep.subr.mxu0 0.0
    %2121 = vmatpush1.msra.mxu0 0.0
    %2122 = vmatprep.subr.mxu0 0.0
    %2123 = vmatpush1.msra.mxu0 0.0
    %2124 = vmatprep.subr.mxu0 0.0
    %2125 = vmatpush1.msra.mxu0 0.0
    %2126 = vmatprep.subr.mxu0 0.0
    %2127 = vmatpush1.msra.mxu0 0.0
    %2128 = vmatprep.subr.mxu0 0.0
    %2129 = vmatpush1.msra.mxu0 0.0
    %2130 = vmatprep.subr.mxu0 0.0
    %2131 = vmatpush1.msra.mxu0 %v1754
    %2132 = vmatprep.subr.mxu0 0.0
    %2133 = vmatpush1.msra.mxu0 %v1753
    %2134 = vmatprep.subr.mxu0 0.0
    %2135 = vmatpush1.msra.mxu0 %v1752
    %2136 = vmatprep.subr.mxu0 0.0
    %2137 = vmatpush1.msra.mxu0 %v1751
    %2138 = vmatprep.subr.mxu0 0.0
    %2139 = vmatpush2.msra.mxu0 0.0
    %2140 = vmatprep.subr.mxu0 0.0
    %2141 = vmatpush2.msra.mxu0 0.0
    %2142 = vmatprep.subr.mxu0 0.0
    %2143 = vmatpush2.msra.mxu0 0.0
    %2144 = vmatprep.subr.mxu0 0.0
    %2145 = vmatpush2.msra.mxu0 0.0
    %2146 = vmatprep.subr.mxu0 0.0
    %2147 = vmatpush2.msra.mxu0 0.0
    %2148 = vmatprep.subr.mxu0 0.0
    %2149 = vmatpush2.msra.mxu0 0.0
    %2150 = vmatprep.subr.mxu0 0.0
    %2151 = vmatpush2.msra.mxu0 0.0
    %2152 = vmatprep.subr.mxu0 0.0
    %2153 = vmatpush2.msra.mxu0 0.0
    %2154 = vmatprep.subr.mxu0 0.0
    %2155 = vmatpush2.msra.mxu0 0.0
    %2156 = vmatprep.subr.mxu0 0.0
    %2157 = vmatpush2.msra.mxu0 0.0
    %2158 = vmatprep.subr.mxu0 0.0
    %2159 = vmatpush2.msra.mxu0 0.0
    %2160 = vmatprep.subr.mxu0 0.0
    %2161 = vmatpush2.msra.mxu0 0.0
    %2162 = vmatprep.subr.mxu0 0.0
    %2163 = vmatpush2.msra.mxu0 0.0
    %2164 = vmatprep.subr.mxu0 0.0
    %2165 = vmatpush2.msra.mxu0 0.0
    %2166 = vmatprep.subr.mxu0 0.0
    %2167 = vmatpush2.msra.mxu0 0.0
    %2168 = vmatprep.subr.mxu0 0.0
    %2169 = vmatpush2.msra.mxu0 0.0
    %2170 = vmatprep.mubr.f32.mxu0 0.0
    %2171 = vmatmul.mubr.f32.gmra.mxu0 %v1963
    %v2172 = vpop.f32.mrf.mxu0
    %v2173 = vadd.f32 %v1863, %v2172
    %v2174 = vpop.f32.mrf.mxu0
    %2175 = vmatprep.mubr.f32.mxu0 0.0
    %2176 = vmatmul.mubr.f32.gmra.mxu0 %v1966
    %v2177 = vpop.f32.mrf.mxu0
    %v2178 = vadd.f32 %v1863, %v2177
    %v2179 = vpop.f32.mrf.mxu0
    %2180 = vmatprep.mubr.f32.mxu0 0.0
    %2181 = vmatmul.mubr.f32.gmra.mxu0 %v1969
    %v2182 = vpop.f32.mrf.mxu0
    %v2183 = vadd.f32 %v1863, %v2182
    %v2184 = vpop.f32.mrf.mxu0
    %2185 = vmatprep.mubr.f32.mxu0 0.0
    %2186 = vmatmul.mubr.f32.gmra.mxu0 %v1972
    %v2187 = vpop.f32.mrf.mxu0
    %v2188 = vadd.f32 %v1863, %v2187
    %v2189 = vpop.f32.mrf.mxu0
    %2190 = vmatprep.mubr.f32.mxu0 0.0
    %2191 = vmatmul.mubr.f32.gmra.mxu0 %v1975
    %v2192 = vpop.f32.mrf.mxu0
    %v2193 = vadd.f32 %v1863, %v2192
    %v2194 = vpop.f32.mrf.mxu0
    %2195 = vmatprep.mubr.f32.mxu0 0.0
    %2196 = vmatmul.mubr.f32.gmra.mxu0 %v1978
    %v2197 = vpop.f32.mrf.mxu0
    %v2198 = vadd.f32 %v1863, %v2197
    %v2199 = vpop.f32.mrf.mxu0
    %2200 = vmatprep.mubr.f32.mxu0 0.0
    %2201 = vmatmul.mubr.f32.gmra.mxu0 %v1981
    %v2202 = vpop.f32.mrf.mxu0
    %v2203 = vadd.f32 %v1863, %v2202
    %v2204 = vpop.f32.mrf.mxu0
    %2205 = vmatprep.mubr.f32.mxu0 0.0
    %2206 = vmatmul.mubr.f32.gmra.mxu0 %v1984
    %v2207 = vpop.f32.mrf.mxu0
    %v2208 = vadd.f32 %v1863, %v2207
    %v2209 = vpop.f32.mrf.mxu0
    %2210 = vmatprep.mubr.f32.mxu0 0.0
    %2211 = vmatmul.mubr.f32.gmra.mxu0 %v1987
    %v2212 = vpop.f32.mrf.mxu0
    %v2213 = vadd.f32 %v1863, %v2212
    %v2214 = vpop.f32.mrf.mxu0
    %2215 = vmatprep.mubr.f32.mxu0 0.0
    %2216 = vmatmul.mubr.f32.gmra.mxu0 %v1990
    %v2217 = vpop.f32.mrf.mxu0
    %v2218 = vadd.f32 %v1863, %v2217
    %v2219 = vpop.f32.mrf.mxu0
    %2220 = vmatprep.mubr.f32.mxu0 0.0
    %2221 = vmatmul.mubr.f32.gmra.mxu0 %v1993
    %v2222 = vpop.f32.mrf.mxu0
    %v2223 = vadd.f32 %v1863, %v2222
    %v2224 = vpop.f32.mrf.mxu0
    %2225 = vmatprep.mubr.f32.mxu0 0.0
    %2226 = vmatmul.mubr.f32.gmra.mxu0 %v1996
    %v2227 = vpop.f32.mrf.mxu0
    %v2228 = vadd.f32 %v1863, %v2227
    %v2229 = vpop.f32.mrf.mxu0
    %2230 = vmatprep.mubr.f32.mxu0 0.0
    %2231 = vmatmul.mubr.f32.gmra.mxu0 %v1999
    %v2232 = vpop.f32.mrf.mxu0
    %v2233 = vadd.f32 %v1863, %v2232
    %v2234 = vpop.f32.mrf.mxu0
    %2235 = vmatprep.mubr.f32.mxu0 0.0
    %2236 = vmatmul.mubr.f32.gmra.mxu0 %v2002
    %v2237 = vpop.f32.mrf.mxu0
    %v2238 = vadd.f32 %v1863, %v2237
    %v2239 = vpop.f32.mrf.mxu0
    %2240 = vmatprep.mubr.f32.mxu0 0.0
    %2241 = vmatmul.mubr.f32.gmra.mxu0 %v2005
    %v2242 = vpop.f32.mrf.mxu0
    %v2243 = vadd.f32 %v1863, %v2242
    %v2244 = vpop.f32.mrf.mxu0
    %2245 = vmatprep.mubr.f32.mxu0 0.0
    %2246 = vmatmul.mubr.f32.gmra.mxu0 %v2008
    %v2247 = vpop.f32.mrf.mxu0
    %v2248 = vadd.f32 %v1863, %v2247
    %v2249 = vpop.f32.mrf.mxu0
    %2250 = vmatprep.mubr.f32.mxu0 0.0
    %2251 = vmatmul.mubr.f32.gmra.mxu0 %v2011
    %v2252 = vpop.f32.mrf.mxu0
    %v2253 = vadd.f32 %v1863, %v2252
    %v2254 = vpop.f32.mrf.mxu0
    %2255 = vmatprep.mubr.f32.mxu0 0.0
    %2256 = vmatmul.mubr.f32.gmra.mxu0 %v2014
    %v2257 = vpop.f32.mrf.mxu0
    %v2258 = vadd.f32 %v1863, %v2257
    %v2259 = vpop.f32.mrf.mxu0
    %2260 = vmatprep.mubr.f32.mxu0 0.0
    %2261 = vmatmul.mubr.f32.gmra.mxu0 %v2017
    %v2262 = vpop.f32.mrf.mxu0
    %v2263 = vadd.f32 %v1863, %v2262
    %v2264 = vpop.f32.mrf.mxu0
    %2265 = vmatprep.mubr.f32.mxu0 0.0
    %2266 = vmatmul.mubr.f32.gmra.mxu0 %v2020
    %v2267 = vpop.f32.mrf.mxu0
    %v2268 = vadd.f32 %v1863, %v2267
    %v2269 = vpop.f32.mrf.mxu0
    %2270 = vmatprep.mubr.f32.mxu0 0.0
    %2271 = vmatmul.mubr.f32.gmra.mxu0 %v2023
    %v2272 = vpop.f32.mrf.mxu0
    %v2273 = vadd.f32 %v1863, %v2272
    %v2274 = vpop.f32.mrf.mxu0
    %2275 = vmatprep.mubr.f32.mxu0 0.0
    %2276 = vmatmul.mubr.f32.gmra.mxu0 %v2026
    %v2277 = vpop.f32.mrf.mxu0
    %v2278 = vadd.f32 %v1863, %v2277
    %v2279 = vpop.f32.mrf.mxu0
    %2280 = vmatprep.mubr.f32.mxu0 0.0
    %2281 = vmatmul.mubr.f32.gmra.mxu0 %v2029
    %v2282 = vpop.f32.mrf.mxu0
    %v2283 = vadd.f32 %v1863, %v2282
    %v2284 = vpop.f32.mrf.mxu0
    %2285 = vmatprep.mubr.f32.mxu0 0.0
    %2286 = vmatmul.mubr.f32.gmra.mxu0 %v2032
    %v2287 = vpop.f32.mrf.mxu0
    %v2288 = vadd.f32 %v1863, %v2287
    %v2289 = vpop.f32.mrf.mxu0
    %2290 = vmatprep.mubr.f32.mxu0 0.0
    %2291 = vmatmul.mubr.f32.gmra.mxu0 %v2035
    %v2292 = vpop.f32.mrf.mxu0
    %v2293 = vadd.f32 %v1863, %v2292
    %v2294 = vpop.f32.mrf.mxu0
    %2295 = vmatprep.mubr.f32.mxu0 0.0
    %2296 = vmatmul.mubr.f32.gmra.mxu0 %v2038
    %v2297 = vpop.f32.mrf.mxu0
    %v2298 = vadd.f32 %v1863, %v2297
    %v2299 = vpop.f32.mrf.mxu0
    %2300 = vmatprep.mubr.f32.mxu0 0.0
    %2301 = vmatmul.mubr.f32.gmra.mxu0 %v2041
    %v2302 = vpop.f32.mrf.mxu0
    %v2303 = vadd.f32 %v1863, %v2302
    %v2304 = vpop.f32.mrf.mxu0
    %2305 = vmatprep.mubr.f32.mxu0 0.0
    %2306 = vmatmul.mubr.f32.gmra.mxu0 %v2044
    %v2307 = vpop.f32.mrf.mxu0
    %v2308 = vadd.f32 %v1863, %v2307
    %v2309 = vpop.f32.mrf.mxu0
    %2310 = vmatprep.mubr.f32.mxu0 0.0
    %2311 = vmatmul.mubr.f32.gmra.mxu0 %v2047
    %v2312 = vpop.f32.mrf.mxu0
    %v2313 = vadd.f32 %v1863, %v2312
    %v2314 = vpop.f32.mrf.mxu0
    %2315 = vmatprep.mubr.f32.mxu0 0.0
    %2316 = vmatmul.mubr.f32.gmra.mxu0 %v2050
    %v2317 = vpop.f32.mrf.mxu0
    %v2318 = vadd.f32 %v1863, %v2317
    %v2319 = vpop.f32.mrf.mxu0
    %2320 = vmatprep.mubr.f32.mxu0 0.0
    %2321 = vmatmul.mubr.f32.gmra.mxu0 %v2053
    %v2322 = vpop.f32.mrf.mxu0
    %v2323 = vadd.f32 %v1863, %v2322
    %v2324 = vpop.f32.mrf.mxu0
    %2325 = vmatprep.mubr.f32.mxu0 0.0
    %2326 = vmatmul.mubr.f32.gmra.mxu0 %v2056
    %v2327 = vpop.f32.mrf.mxu0
    %v2328 = vadd.f32 %v1863, %v2327
    %v2329 = vpop.f32.mrf.mxu0
    %2330 = vmatprep.mubr.f32.mxu0 0.0
    %2331 = vmatmul.mubr.f32.gmra.mxu0 %v2059
    %v2332 = vpop.f32.mrf.mxu0
    %v2333 = vadd.f32 %v1863, %v2332
    %v2334 = vpop.f32.mrf.mxu0
    %2335 = vmatprep.mubr.f32.mxu0 0.0
    %2336 = vmatmul.mubr.f32.gmra.mxu0 %v2062
    %v2337 = vpop.f32.mrf.mxu0
    %v2338 = vadd.f32 %v1863, %v2337
    %v2339 = vpop.f32.mrf.mxu0
    %2340 = vmatprep.mubr.f32.mxu0 0.0
    %2341 = vmatmul.mubr.f32.gmra.mxu0 %v2065
    %v2342 = vpop.f32.mrf.mxu0
    %v2343 = vadd.f32 %v1863, %v2342
    %v2344 = vpop.f32.mrf.mxu0
    %2345 = vmatprep.mubr.f32.mxu0 0.0
    %2346 = vmatmul.mubr.f32.gmra.mxu0 %v2068
    %v2347 = vpop.f32.mrf.mxu0
    %v2348 = vadd.f32 %v1863, %v2347
    %v2349 = vpop.f32.mrf.mxu0
    %2350 = vmatprep.mubr.f32.mxu0 0.0
    %2351 = vmatmul.mubr.f32.gmra.mxu0 %v2071
    %v2352 = vpop.f32.mrf.mxu0
    %v2353 = vadd.f32 %v1863, %v2352
    %v2354 = vpop.f32.mrf.mxu0
    %2355 = vmatprep.mubr.f32.mxu0 0.0
    %2356 = vmatmul.mubr.f32.gmra.mxu0 %v2074
    %v2357 = vpop.f32.mrf.mxu0
    %v2358 = vadd.f32 %v1863, %v2357
    %v2359 = vpop.f32.mrf.mxu0
    %2360 = vmatprep.mubr.f32.mxu0 0.0
    %2361 = vmatmul.mubr.f32.gmra.mxu0 %v2077
    %v2362 = vpop.f32.mrf.mxu0
    %v2363 = vadd.f32 %v1863, %v2362
    %v2364 = vpop.f32.mrf.mxu0
    %2365 = vmatprep.mubr.f32.mxu0 0.0
    %2366 = vmatmul.mubr.f32.gmra.mxu0 %v2080
    %v2367 = vpop.f32.mrf.mxu0
    %v2368 = vadd.f32 %v1863, %v2367
    %v2369 = vpop.f32.mrf.mxu0
    %2370 = vmatprep.mubr.f32.mxu0 0.0
    %2371 = vmatmul.mubr.f32.gmra.mxu0 %v2083
    %v2372 = vpop.f32.mrf.mxu0
    %v2373 = vadd.f32 %v1863, %v2372
    %v2374 = vpop.f32.mrf.mxu0
    %2375 = vmatprep.mubr.f32.mxu0 0.0
    %2376 = vmatmul.mubr.f32.gmra.mxu0 %v2086
    %v2377 = vpop.f32.mrf.mxu0
    %v2378 = vadd.f32 %v1863, %v2377
    %v2379 = vpop.f32.mrf.mxu0
    %2380 = vmatprep.mubr.f32.mxu0 0.0
    %2381 = vmatmul.mubr.f32.gmra.mxu0 %v2089
    %v2382 = vpop.f32.mrf.mxu0
    %v2383 = vadd.f32 %v1863, %v2382
    %v2384 = vpop.f32.mrf.mxu0
    %2385 = vmatprep.mubr.f32.mxu0 0.0
    %2386 = vmatmul.mubr.f32.gmra.mxu0 %v2092
    %v2387 = vpop.f32.mrf.mxu0
    %v2388 = vadd.f32 %v1863, %v2387
    %v2389 = vpop.f32.mrf.mxu0
    %2390 = vmatprep.mubr.f32.mxu0 0.0
    %2391 = vmatmul.mubr.f32.gmra.mxu0 %v2095
    %v2392 = vpop.f32.mrf.mxu0
    %v2393 = vadd.f32 %v1863, %v2392
    %v2394 = vpop.f32.mrf.mxu0
    %2395 = vmatprep.mubr.f32.mxu0 0.0
    %2396 = vmatmul.mubr.f32.gmra.mxu0 %v2098
    %v2397 = vpop.f32.mrf.mxu0
    %v2398 = vadd.f32 %v1863, %v2397
    %v2399 = vpop.f32.mrf.mxu0
    %2400 = vmatprep.mubr.f32.mxu0 0.0
    %2401 = vmatmul.mubr.f32.gmra.mxu0 %v2101
    %v2402 = vpop.f32.mrf.mxu0
    %v2403 = vadd.f32 %v1863, %v2402
    %v2404 = vpop.f32.mrf.mxu0
    %2405 = vmatprep.mubr.f32.mxu0 0.0
    %2406 = vmatmul.mubr.f32.gmra.mxu0 %v2104
    %v2407 = vpop.f32.mrf.mxu0
    %v2408 = vadd.f32 %v1863, %v2407
    %v2409 = vpop.f32.mrf.mxu0
    %2410 = vdwg.mxu0
    %v2411 = vmax.f32 %v2173, 0.0
    %v2412 = vmax.f32 %v2178, 0.0
    %v2413 = vmax.f32 %v2183, 0.0
    %v2414 = vmax.f32 %v2188, 0.0
    %v2415 = vmax.f32 %v2193, 0.0
    %v2416 = vmax.f32 %v2198, 0.0
    %v2417 = vmax.f32 %v2203, 0.0
    %v2418 = vmax.f32 %v2208, 0.0
    %v2419 = vmax.f32 %v2213, 0.0
    %v2420 = vmax.f32 %v2218, 0.0
    %v2421 = vmax.f32 %v2223, 0.0
    %v2422 = vmax.f32 %v2228, 0.0
    %v2423 = vmax.f32 %v2233, 0.0
    %v2424 = vmax.f32 %v2238, 0.0
    %v2425 = vmax.f32 %v2243, 0.0
    %v2426 = vmax.f32 %v2248, 0.0
    %v2427 = vmax.f32 %v2253, 0.0
    %v2428 = vmax.f32 %v2258, 0.0
    %v2429 = vmax.f32 %v2263, 0.0
    %v2430 = vmax.f32 %v2268, 0.0
    %v2431 = vmax.f32 %v2273, 0.0
    %v2432 = vmax.f32 %v2278, 0.0
    %v2433 = vmax.f32 %v2283, 0.0
    %v2434 = vmax.f32 %v2288, 0.0
    %v2435 = vmax.f32 %v2293, 0.0
    %v2436 = vmax.f32 %v2298, 0.0
    %v2437 = vmax.f32 %v2303, 0.0
    %v2438 = vmax.f32 %v2308, 0.0
    %v2439 = vmax.f32 %v2313, 0.0
    %v2440 = vmax.f32 %v2318, 0.0
    %v2441 = vmax.f32 %v2323, 0.0
    %v2442 = vmax.f32 %v2328, 0.0
    %v2443 = vmax.f32 %v2333, 0.0
    %v2444 = vmax.f32 %v2338, 0.0
    %v2445 = vmax.f32 %v2343, 0.0
    %v2446 = vmax.f32 %v2348, 0.0
    %v2447 = vmax.f32 %v2353, 0.0
    %v2448 = vmax.f32 %v2358, 0.0
    %v2449 = vmax.f32 %v2363, 0.0
    %v2450 = vmax.f32 %v2368, 0.0
    %v2451 = vmax.f32 %v2373, 0.0
    %v2452 = vmax.f32 %v2378, 0.0
    %v2453 = vmax.f32 %v2383, 0.0
    %v2454 = vmax.f32 %v2388, 0.0
    %v2455 = vmax.f32 %v2393, 0.0
    %v2456 = vmax.f32 %v2398, 0.0
    %v2457 = vmax.f32 %v2403, 0.0
    %v2458 = vmax.f32 %v2408, 0.0
    %v2459 = vld [vmem:[%s6] sm:$0x1]
    %s2460 = sld [smem:[#allocation3]]
    %v2461 = vstv %s2460
    %v2463 = vsel %vm1961, %v2459, 0
    %v2466 = vsel %vm1961, %v2411, 0
    %v2469 = vsel %vm1961, %v2412, 0
    %v2472 = vsel %vm1961, %v2413, 0
    %v2475 = vsel %vm1961, %v2414, 0
    %v2478 = vsel %vm1961, %v2415, 0
    %v2481 = vsel %vm1961, %v2416, 0
    %v2484 = vsel %vm1961, %v2417, 0
    %v2487 = vsel %vm1961, %v2418, 0
    %v2490 = vsel %vm1961, %v2419, 0
    %v2493 = vsel %vm1961, %v2420, 0
    %v2496 = vsel %vm1961, %v2421, 0
    %v2499 = vsel %vm1961, %v2422, 0
    %v2502 = vsel %vm1961, %v2423, 0
    %v2505 = vsel %vm1961, %v2424, 0
    %v2508 = vsel %vm1961, %v2425, 0
    %v2511 = vsel %vm1961, %v2426, 0
    %v2514 = vsel %vm1961, %v2427, 0
    %v2517 = vsel %vm1961, %v2428, 0
    %v2520 = vsel %vm1961, %v2429, 0
    %v2523 = vsel %vm1961, %v2430, 0
    %v2526 = vsel %vm1961, %v2431, 0
    %v2529 = vsel %vm1961, %v2432, 0
    %v2532 = vsel %vm1961, %v2433, 0
    %v2535 = vsel %vm1961, %v2434, 0
    %v2538 = vsel %vm1961, %v2435, 0
    %v2541 = vsel %vm1961, %v2436, 0
    %v2544 = vsel %vm1961, %v2437, 0
    %v2547 = vsel %vm1961, %v2438, 0
    %v2550 = vsel %vm1961, %v2439, 0
    %v2553 = vsel %vm1961, %v2440, 0
    %v2556 = vsel %vm1961, %v2441, 0
    %v2559 = vsel %vm1961, %v2442, 0
    %v2562 = vsel %vm1961, %v2443, 0
    %v2565 = vsel %vm1961, %v2444, 0
    %v2568 = vsel %vm1961, %v2445, 0
    %v2571 = vsel %vm1961, %v2446, 0
    %v2574 = vsel %vm1961, %v2447, 0
    %v2577 = vsel %vm1961, %v2448, 0
    %v2580 = vsel %vm1961, %v2449, 0
    %v2583 = vsel %vm1961, %v2450, 0
    %v2586 = vsel %vm1961, %v2451, 0
    %v2589 = vsel %vm1961, %v2452, 0
    %v2592 = vsel %vm1961, %v2453, 0
    %v2595 = vsel %vm1961, %v2454, 0
    %v2598 = vsel %vm1961, %v2455, 0
    %v2601 = vsel %vm1961, %v2456, 0
    %v2604 = vsel %vm1961, %v2457, 0
    %v2607 = vsel %vm1961, %v2458, 0
    %2609 = vmatprep.subr.mxu0 0.0
    %2610 = vmatpush1.xpose.msra.mxu0 %v2511
    %2611 = vmatprep.subr.mxu0 0.0
    %2612 = vmatpush1.xpose.msra.mxu0 %v2508
    %2613 = vmatprep.subr.mxu0 0.0
    %2614 = vmatpush1.xpose.msra.mxu0 %v2505
    %2615 = vmatprep.subr.mxu0 0.0
    %2616 = vmatpush1.xpose.msra.mxu0 %v2502
    %2617 = vmatprep.subr.mxu0 0.0
    %2618 = vmatpush1.xpose.msra.mxu0 %v2499
    %2619 = vmatprep.subr.mxu0 0.0
    %2620 = vmatpush1.xpose.msra.mxu0 %v2496
    %2621 = vmatprep.subr.mxu0 0.0
    %2622 = vmatpush1.xpose.msra.mxu0 %v2493
    %2623 = vmatprep.subr.mxu0 0.0
    %2624 = vmatpush1.xpose.msra.mxu0 %v2490
    %2625 = vmatprep.subr.mxu0 0.0
    %2626 = vmatpush1.xpose.msra.mxu0 %v2487
    %2627 = vmatprep.subr.mxu0 0.0
    %2628 = vmatpush1.xpose.msra.mxu0 %v2484
    %2629 = vmatprep.subr.mxu0 0.0
    %2630 = vmatpush1.xpose.msra.mxu0 %v2481
    %2631 = vmatprep.subr.mxu0 0.0
    %2632 = vmatpush1.xpose.msra.mxu0 %v2478
    %2633 = vmatprep.subr.mxu0 0.0
    %2634 = vmatpush1.xpose.msra.mxu0 %v2475
    %2635 = vmatprep.subr.mxu0 0.0
    %2636 = vmatpush1.xpose.msra.mxu0 %v2472
    %2637 = vmatprep.subr.mxu0 0.0
    %2638 = vmatpush1.xpose.msra.mxu0 %v2469
    %2639 = vmatprep.subr.mxu0 0.0
    %2640 = vmatpush1.xpose.msra.mxu0 %v2466
    %2641 = vmatprep.subr.mxu0 0.0
    %2642 = vmatpush2.xpose.msra.mxu0 %v2559
    %2643 = vmatprep.subr.mxu0 0.0
    %2644 = vmatpush2.xpose.msra.mxu0 %v2556
    %2645 = vmatprep.subr.mxu0 0.0
    %2646 = vmatpush2.xpose.msra.mxu0 %v2553
    %2647 = vmatprep.subr.mxu0 0.0
    %2648 = vmatpush2.xpose.msra.mxu0 %v2550
    %2649 = vmatprep.subr.mxu0 0.0
    %2650 = vmatpush2.xpose.msra.mxu0 %v2547
    %2651 = vmatprep.subr.mxu0 0.0
    %2652 = vmatpush2.xpose.msra.mxu0 %v2544
    %2653 = vmatprep.subr.mxu0 0.0
    %2654 = vmatpush2.xpose.msra.mxu0 %v2541
    %2655 = vmatprep.subr.mxu0 0.0
    %2656 = vmatpush2.xpose.msra.mxu0 %v2538
    %2657 = vmatprep.subr.mxu0 0.0
    %2658 = vmatpush2.xpose.msra.mxu0 %v2535
    %2659 = vmatprep.subr.mxu0 0.0
    %2660 = vmatpush2.xpose.msra.mxu0 %v2532
    %2661 = vmatprep.subr.mxu0 0.0
    %2662 = vmatpush2.xpose.msra.mxu0 %v2529
    %2663 = vmatprep.subr.mxu0 0.0
    %2664 = vmatpush2.xpose.msra.mxu0 %v2526
    %2665 = vmatprep.subr.mxu0 0.0
    %2666 = vmatpush2.xpose.msra.mxu0 %v2523
    %2667 = vmatprep.subr.mxu0 0.0
    %2668 = vmatpush2.xpose.msra.mxu0 %v2520
    %2669 = vmatprep.subr.mxu0 0.0
    %2670 = vmatpush2.xpose.msra.mxu0 %v2517
    %2671 = vmatprep.subr.mxu0 0.0
    %2672 = vmatpush2.xpose.msra.mxu0 %v2514
    %2673 = vmatprep.mubr.f32.mxu0 0.0
    %2674 = vmatmul.mubr.f32.gmra.mxu0 %v2463
    %v2675 = vpop.f32.mrf.mxu0
    %v2676 = vadd.f32 %v2461, %v2675
    %v2677 = vpop.f32.mrf.mxu0
    %v2678 = vadd.f32 %v2461, %v2677
    %2679 = vdwg.mxu0
    %2680 = vmatprep.subr.mxu0 0.0
    %2681 = vmatpush1.xpose.msra.mxu0 %v2607
    %2682 = vmatprep.subr.mxu0 0.0
    %2683 = vmatpush1.xpose.msra.mxu0 %v2604
    %2684 = vmatprep.subr.mxu0 0.0
    %2685 = vmatpush1.xpose.msra.mxu0 %v2601
    %2686 = vmatprep.subr.mxu0 0.0
    %2687 = vmatpush1.xpose.msra.mxu0 %v2598
    %2688 = vmatprep.subr.mxu0 0.0
    %2689 = vmatpush1.xpose.msra.mxu0 %v2595
    %2690 = vmatprep.subr.mxu0 0.0
    %2691 = vmatpush1.xpose.msra.mxu0 %v2592
    %2692 = vmatprep.subr.mxu0 0.0
    %2693 = vmatpush1.xpose.msra.mxu0 %v2589
    %2694 = vmatprep.subr.mxu0 0.0
    %2695 = vmatpush1.xpose.msra.mxu0 %v2586
    %2696 = vmatprep.subr.mxu0 0.0
    %2697 = vmatpush1.xpose.msra.mxu0 %v2583
    %2698 = vmatprep.subr.mxu0 0.0
    %2699 = vmatpush1.xpose.msra.mxu0 %v2580
    %2700 = vmatprep.subr.mxu0 0.0
    %2701 = vmatpush1.xpose.msra.mxu0 %v2577
    %2702 = vmatprep.subr.mxu0 0.0
    %2703 = vmatpush1.xpose.msra.mxu0 %v2574
    %2704 = vmatprep.subr.mxu0 0.0
    %2705 = vmatpush1.xpose.msra.mxu0 %v2571
    %2706 = vmatprep.subr.mxu0 0.0
    %2707 = vmatpush1.xpose.msra.mxu0 %v2568
    %2708 = vmatprep.subr.mxu0 0.0
    %2709 = vmatpush1.xpose.msra.mxu0 %v2565
    %2710 = vmatprep.subr.mxu0 0.0
    %2711 = vmatpush1.xpose.msra.mxu0 %v2562
    %2712 = vmatprep.subr.mxu0 0.0
    %2713 = vmatpush2.xpose.msra.mxu0 0.0
    %2714 = vmatprep.subr.mxu0 0.0
    %2715 = vmatpush2.xpose.msra.mxu0 0.0
    %2716 = vmatprep.subr.mxu0 0.0
    %2717 = vmatpush2.xpose.msra.mxu0 0.0
    %2718 = vmatprep.subr.mxu0 0.0
    %2719 = vmatpush2.xpose.msra.mxu0 0.0
    %2720 = vmatprep.subr.mxu0 0.0
    %2721 = vmatpush2.xpose.msra.mxu0 0.0
    %2722 = vmatprep.subr.mxu0 0.0
    %2723 = vmatpush2.xpose.msra.mxu0 0.0
    %2724 = vmatprep.subr.mxu0 0.0
    %2725 = vmatpush2.xpose.msra.mxu0 0.0
    %2726 = vmatprep.subr.mxu0 0.0
    %2727 = vmatpush2.xpose.msra.mxu0 0.0
    %2728 = vmatprep.subr.mxu0 0.0
    %2729 = vmatpush2.xpose.msra.mxu0 0.0
    %2730 = vmatprep.subr.mxu0 0.0
    %2731 = vmatpush2.xpose.msra.mxu0 0.0
    %2732 = vmatprep.subr.mxu0 0.0
    %2733 = vmatpush2.xpose.msra.mxu0 0.0
    %2734 = vmatprep.subr.mxu0 0.0
    %2735 = vmatpush2.xpose.msra.mxu0 0.0
    %2736 = vmatprep.subr.mxu0 0.0
    %2737 = vmatpush2.xpose.msra.mxu0 0.0
    %2738 = vmatprep.subr.mxu0 0.0
    %2739 = vmatpush2.xpose.msra.mxu0 0.0
    %2740 = vmatprep.subr.mxu0 0.0
    %2741 = vmatpush2.xpose.msra.mxu0 0.0
    %2742 = vmatprep.subr.mxu0 0.0
    %2743 = vmatpush2.xpose.msra.mxu0 0.0
    %2744 = vmatprep.mubr.f32.mxu0 0.0
    %2745 = vmatmul.mubr.f32.gmra.mxu0 %v2463
    %v2746 = vpop.f32.mrf.mxu0
    %v2747 = vadd.f32 %v2461, %v2746
    %v2748 = vpop.f32.mrf.mxu0
    %2749 = vdwg.mxu0
    %v2753 = vcombine.low %v2676, %v2678
    %v2755 = vunpack.c.l.s4 1966171168
    %v2756 = vunpack.c.0.s8 %v2755
    %v2757 = vlaneseq
    %v2758 = vshrl.u32 %v2757, 7
    %v2759 = vsub.s32 %v2756, %v2758
    %v2760 = vrot.slane %v2753, %v2759
    %v2762 = vunpack.c.l.s4 1966171168
    %v2763 = vunpack.c.0.s8 %v2762
    %v2764 = vlaneseq
    %v2765 = vshrl.u32 %v2764, 7
    %v2766 = vsub.s32 %v2763, %v2765
    %v2767 = vrot.slane %v2747, %v2766
    %v2768 = vcombine.low %v2760, %v2767
    %v2770 = vunpack.c.l.s4 1966171168
    %v2771 = vunpack.c.0.s8 %v2770
    %v2772 = vlaneseq
    %v2773 = vshrl.u32 %v2772, 7
    %v2774 = vsub.s32 %v2771, %v2773
    %v2775 = vrot.slane %v2768, %v2774
    %v2777 = vlaneseq
    %vm2778 = vcmp.ge.s32.totalorder %v2777, 0
    %vm2779 = vcmp.lt.s32.totalorder %v2777, 384
    %vm2780 = vmand %vm2778, %vm2779
    %2781 = vst.msk [vmem:[#allocation7] sm:$0x7] %vm2780, %v2775
    // Predicated region
    $region46: #{tpu_custom_call.1} parent=1 // pred_check
      _
    $region47: #{tpu_custom_call.1} parent=1 // pred_check_branch
      %2783 = sbr.rel (0) target = $region49
    $region48: #{tpu_custom_call.1} parent=1 // pred_region
      %s2784 = sadd.s32 0, 0
      %s2785 = smul.u32 3, %s2784
      %s2787 = ssub.s32 48, 48
      %2788 = vsyncadd [#allocation6], %s2787
      %s2789 = smul.addr %s2785, 16
      %s2790 = scalar_lea.hbm %s9, %s2789
      %s2792 = sshll.u32 [#allocation7], 4
      %s2793 = int_to_ptr.vmem [resolvable:$true] %s2792
      %2795 = dma.vmem_to_hbm [thread:$0]  %s2793, 48, %s2790, [#allocation6]
    $region49: #{tpu_custom_call.1} parent=1 // pred_fallthru
      _
    // Predicated region
    $region50: #{tpu_custom_call.1} parent=1 // pred_check
      _
    $region51: #{tpu_custom_call.1} parent=1 // pred_check_branch
      %2797 = sbr.rel (0) target = $region53
    $region52: #{tpu_custom_call.1} parent=1 // pred_region
      %2798 = dma.done [#allocation6], 48
    $region53: #{tpu_custom_call.1} parent=1 // pred_fallthru
      _
    %2799 = vsyncpa [#allocation5], 1
    %2800 = vsyncpa [#allocation6], 1

</llo_original>
